<compile_context>
chip_gen: v5e
topology: v5e:2x2
jax: 0.10.0
libtpu: 0.0.40
codegen_flags: <defaults>
</compile_context>

<pallas_src>
import jax
import jax.numpy as jnp
import numpy as np
from jax.experimental import pallas as pl
from jax.experimental.pallas import tpu as pltpu

D_IN = 350        # true input feature count
D_OUT = 4         # true output feature count
N_OUT_PAD = 128   # output lanes padded so stores are unmasked / lane-dense


def _sigmoid(z):
    # sigmoid(z) == 0.5 * tanh(z / 2) + 0.5: a single EUP transcendental per
    # element (the previous exp + approx-reciprocal form used two).
    return 0.5 * jnp.tanh(0.5 * z) + 0.5


def mlp_kernel(x_ref,
               w1_ref, b1_ref,
               w2_ref, b2_ref,
               w3_ref, b3_ref,
               w4_ref, b4_ref,
               o_ref):
    """One batch tile of the full 4-layer MLP (bf16 MXU operands, f32 accumulate)."""
    # x arrives as f32 straight from HBM (no wrapper pad/cast pass); cast to
    # bf16 right at the MXU operand. The kernel is strongly compute-bound so
    # the doubled input DMA bytes hide under the matmuls.
    x = x_ref[...].astype(jnp.bfloat16)

    h1 = _sigmoid(jnp.dot(x, w1_ref[...],
                          preferred_element_type=jnp.float32) + b1_ref[...])
    h2 = _sigmoid(jnp.dot(h1.astype(jnp.bfloat16), w2_ref[...],
                          preferred_element_type=jnp.float32) + b2_ref[...])
    h3 = _sigmoid(jnp.dot(h2.astype(jnp.bfloat16), w3_ref[...],
                          preferred_element_type=jnp.float32) + b3_ref[...])
    out = jnp.dot(h3.astype(jnp.bfloat16), w4_ref[...],
                  preferred_element_type=jnp.float32) + b4_ref[...]
    o_ref[...] = out.astype(o_ref.dtype)


def init_params(key):
    """Deterministic init mirroring nn.Linear's U(-1/sqrt(fan_in), 1/sqrt(fan_in)).

    Weights stored as (in_features, out_features) f32 (unpadded)."""
    dims = [(D_IN, 1024), (1024, 512), (512, 256), (256, D_OUT)]
    params = []
    for (fan_in, fan_out) in dims:
        key, kw, kb = jax.random.split(key, 3)
        bound = 1.0 / np.sqrt(fan_in)
        w = jax.random.uniform(kw, (fan_in, fan_out), jnp.float32, -bound, bound)
        b = jax.random.uniform(kb, (1, fan_out), jnp.float32, -bound, bound)
        params.append((w, b))
    return params


def prepare_params(params):
    """Cast weights to bf16; pad only the final N (4 -> 128) with zeros.

    w1 keeps its true 350 rows (no host-side K padding). Biases stay f32."""
    (w1, b1), (w2, b2), (w3, b3), (w4, b4) = params

    w4p = jnp.zeros((w4.shape[0], N_OUT_PAD), jnp.bfloat16)
    w4p = w4p.at[:, :w4.shape[1]].set(w4.astype(jnp.bfloat16))
    b4p = jnp.zeros((1, N_OUT_PAD), jnp.float32)
    b4p = b4p.at[:, :b4.shape[1]].set(b4)

    return ((w1.astype(jnp.bfloat16), b1),
            (w2.astype(jnp.bfloat16), b2),
            (w3.astype(jnp.bfloat16), b3),
            (w4p, b4p))


def _round_up(n, m):
    return ((n + m - 1) // m) * m


def _choose_tile_b(batch, max_tile_b=512):
    """Pick a batch tile: multiple of 8, capped for VMEM (v7x has 64 MiB),
    and sized so there are >= 2 roughly balanced tiles to feed both v7x
    TensorCores via the "parallel" grid axis."""
    if batch <= 8:
        return 8
    half = _round_up(pl.cdiv(batch, 2), 8)
    return int(min(max_tile_b, half))


def net_forward(x, prepared_params, *, max_tile_b=512):
    """x: (B, 350) float32 -> (B, 4) float32. B may be any positive size."""
    (w1, b1), (w2, b2), (w3, b3), (w4, b4) = prepared_params
    B, d_in = x.shape
    assert d_in == D_IN

    tile_b = _choose_tile_b(B, max_tile_b)
    n_tiles = pl.cdiv(B, tile_b)   # edge tile is padded/masked by Pallas

    def const_spec(shape):
        # Whole (small) constant array as one block; index never changes, so
        # the pipeline does not re-fetch it across grid steps.
        return pl.BlockSpec(shape, lambda i: (0, 0))

    out = pl.pallas_call(
        mlp_kernel,
        out_shape=jax.ShapeDtypeStruct((B, N_OUT_PAD), jnp.float32),
        grid_spec=pltpu.PrefetchScalarGridSpec(
            num_scalar_prefetch=0,
            grid=(n_tiles,),
            in_specs=[
                # x batch tile: full-extent minor dim (350) is legal.
                pl.BlockSpec((tile_b, D_IN), lambda i: (i, 0)),
                const_spec(w1.shape), const_spec(b1.shape),
                const_spec(w2.shape), const_spec(b2.shape),
                const_spec(w3.shape), const_spec(b3.shape),
                const_spec(w4.shape), const_spec(b4.shape),
            ],
            out_specs=pl.BlockSpec((tile_b, N_OUT_PAD), lambda i: (i, 0)),
        ),
        compiler_params=pltpu.CompilerParams(
            dimension_semantics=("parallel",),     # megacore-shard batch tiles
            vmem_limit_bytes=48 * 1024 * 1024,     # headroom, still < v7x 64 MiB
        ),
    )(x, w1, b1, w2, b2, w3, b3, w4, b4)

    return out[:, :D_OUT]


def reference_forward(x, params):
    """Pure-JAX reference matching the kernel's bf16-operand / f32-accumulate math."""
    h = x
    for i, (w, b) in enumerate(params):
        h = jnp.dot(h.astype(jnp.bfloat16), w.astype(jnp.bfloat16),
                    preferred_element_type=jnp.float32) + b
        if i < 3:
            h = jax.nn.sigmoid(h)
    return h


if __name__ == "__main__":
    key = jax.random.PRNGKey(0)
    key, kx = jax.random.split(key)

    # Small batch, deliberately NOT a multiple of the chosen tile: exercises
    # the 2-tile "parallel" grid (both v7x TCs) and the padded edge block.
    B = 100
    x = jax.random.normal(kx, (B, D_IN), jnp.float32)

    params = init_params(key)           # f32, unpadded (for the reference)
    prepared = prepare_params(params)   # bf16, N-padded (for the kernel)

    out = net_forward(x, prepared)
    out = jax.block_until_ready(out)
    assert out.shape == (B, D_OUT)

    ref = reference_forward(x, params)
    np.testing.assert_allclose(np.asarray(out), np.asarray(ref), rtol=1e-2, atol=1e-2)

    print("KERNEL_OK")
</pallas_src>

<mosaic_0001>
module attributes {stable_mosaic.version = 11 : i64} {
  func.func @mlp_kernel(%arg0: i32, %arg1: memref<56x350xf32, #tpu.memory_space<vmem>>, %arg2: memref<350x1024xbf16, #tpu.memory_space<vmem>>, %arg3: memref<1x1024xf32, #tpu.memory_space<vmem>>, %arg4: memref<1024x512xbf16, #tpu.memory_space<vmem>>, %arg5: memref<1x512xf32, #tpu.memory_space<vmem>>, %arg6: memref<512x256xbf16, #tpu.memory_space<vmem>>, %arg7: memref<1x256xf32, #tpu.memory_space<vmem>>, %arg8: memref<256x128xbf16, #tpu.memory_space<vmem>>, %arg9: memref<1x128xf32, #tpu.memory_space<vmem>>, %arg10: memref<56x128xf32, #tpu.memory_space<vmem>>) attributes {dimension_semantics = [#tpu.dimension_semantics<parallel>], iteration_bounds = array<i64: 2>, scalar_prefetch = 0 : i64, scratch_operands = 0 : i64, tpu.core_type = #tpu.core_type<tc>, window_params = [{transform_indices = @transform_0, window_bounds = array<i64: 56, 350>}, {pipeline_mode = #tpu.pipeline_mode<synchronous>, transform_indices = @transform_1, window_bounds = array<i64: 350, 1024>}, {pipeline_mode = #tpu.pipeline_mode<synchronous>, transform_indices = @transform_2, window_bounds = array<i64: 1, 1024>}, {pipeline_mode = #tpu.pipeline_mode<synchronous>, transform_indices = @transform_3, window_bounds = array<i64: 1024, 512>}, {pipeline_mode = #tpu.pipeline_mode<synchronous>, transform_indices = @transform_4, window_bounds = array<i64: 1, 512>}, {pipeline_mode = #tpu.pipeline_mode<synchronous>, transform_indices = @transform_5, window_bounds = array<i64: 512, 256>}, {pipeline_mode = #tpu.pipeline_mode<synchronous>, transform_indices = @transform_6, window_bounds = array<i64: 1, 256>}, {pipeline_mode = #tpu.pipeline_mode<synchronous>, transform_indices = @transform_7, window_bounds = array<i64: 256, 128>}, {pipeline_mode = #tpu.pipeline_mode<synchronous>, transform_indices = @transform_8, window_bounds = array<i64: 1, 128>}, {transform_indices = @transform_9, window_bounds = array<i64: 56, 128>}]} {
    %c0 = arith.constant 0 : index
    %c0_0 = arith.constant 0 : index
    %0 = vector.load %arg1[%c0, %c0_0] : memref<56x350xf32, #tpu.memory_space<vmem>>, vector<56x350xf32>
    %1 = arith.truncf %0 : vector<56x350xf32> to vector<56x350xbf16>
    %c0_1 = arith.constant 0 : index
    %c0_2 = arith.constant 0 : index
    %2 = vector.load %arg2[%c0_1, %c0_2] : memref<350x1024xbf16, #tpu.memory_space<vmem>>, vector<350x1024xbf16>
    %cst = arith.constant dense<0.000000e+00> : vector<56x1024xf32>
    %3 = tpu.matmul %1, %2, %cst {dimension_numbers = #tpu.dot_dimension_numbers<[1], [0], [0], [1], [0, 0, 1, 1], [], []>} : vector<56x350xbf16>, vector<350x1024xbf16>, vector<56x1024xf32> -> vector<56x1024xf32>
    %c0_3 = arith.constant 0 : index
    %c0_4 = arith.constant 0 : index
    %4 = vector.load %arg3[%c0_3, %c0_4] : memref<1x1024xf32, #tpu.memory_space<vmem>>, vector<1x1024xf32>
    %5 = vector.broadcast %4 : vector<1x1024xf32> to vector<56x1024xf32>
    %6 = arith.addf %3, %5 : vector<56x1024xf32>
    %cst_5 = arith.constant 5.000000e-01 : f32
    %7 = vector.broadcast %cst_5 : f32 to vector<56x1024xf32>
    %8 = arith.mulf %7, %6 : vector<56x1024xf32>
    %9 = math.tanh %8 : vector<56x1024xf32>
    %cst_6 = arith.constant 5.000000e-01 : f32
    %10 = vector.broadcast %cst_6 : f32 to vector<56x1024xf32>
    %11 = arith.mulf %10, %9 : vector<56x1024xf32>
    %cst_7 = arith.constant 5.000000e-01 : f32
    %12 = vector.broadcast %cst_7 : f32 to vector<56x1024xf32>
    %13 = arith.addf %11, %12 : vector<56x1024xf32>
    %14 = arith.truncf %13 : vector<56x1024xf32> to vector<56x1024xbf16>
    %c0_8 = arith.constant 0 : index
    %c0_9 = arith.constant 0 : index
    %15 = vector.load %arg4[%c0_8, %c0_9] : memref<1024x512xbf16, #tpu.memory_space<vmem>>, vector<1024x512xbf16>
    %cst_10 = arith.constant dense<0.000000e+00> : vector<56x512xf32>
    %16 = tpu.matmul %14, %15, %cst_10 {dimension_numbers = #tpu.dot_dimension_numbers<[1], [0], [0], [1], [0, 0, 1, 1], [], []>} : vector<56x1024xbf16>, vector<1024x512xbf16>, vector<56x512xf32> -> vector<56x512xf32>
    %c0_11 = arith.constant 0 : index
    %c0_12 = arith.constant 0 : index
    %17 = vector.load %arg5[%c0_11, %c0_12] : memref<1x512xf32, #tpu.memory_space<vmem>>, vector<1x512xf32>
    %18 = vector.broadcast %17 : vector<1x512xf32> to vector<56x512xf32>
    %19 = arith.addf %16, %18 : vector<56x512xf32>
    %cst_13 = arith.constant 5.000000e-01 : f32
    %20 = vector.broadcast %cst_13 : f32 to vector<56x512xf32>
    %21 = arith.mulf %20, %19 : vector<56x512xf32>
    %22 = math.tanh %21 : vector<56x512xf32>
    %cst_14 = arith.constant 5.000000e-01 : f32
    %23 = vector.broadcast %cst_14 : f32 to vector<56x512xf32>
    %24 = arith.mulf %23, %22 : vector<56x512xf32>
    %cst_15 = arith.constant 5.000000e-01 : f32
    %25 = vector.broadcast %cst_15 : f32 to vector<56x512xf32>
    %26 = arith.addf %24, %25 : vector<56x512xf32>
    %27 = arith.truncf %26 : vector<56x512xf32> to vector<56x512xbf16>
    %c0_16 = arith.constant 0 : index
    %c0_17 = arith.constant 0 : index
    %28 = vector.load %arg6[%c0_16, %c0_17] : memref<512x256xbf16, #tpu.memory_space<vmem>>, vector<512x256xbf16>
    %cst_18 = arith.constant dense<0.000000e+00> : vector<56x256xf32>
    %29 = tpu.matmul %27, %28, %cst_18 {dimension_numbers = #tpu.dot_dimension_numbers<[1], [0], [0], [1], [0, 0, 1, 1], [], []>} : vector<56x512xbf16>, vector<512x256xbf16>, vector<56x256xf32> -> vector<56x256xf32>
    %c0_19 = arith.constant 0 : index
    %c0_20 = arith.constant 0 : index
    %30 = vector.load %arg7[%c0_19, %c0_20] : memref<1x256xf32, #tpu.memory_space<vmem>>, vector<1x256xf32>
    %31 = vector.broadcast %30 : vector<1x256xf32> to vector<56x256xf32>
    %32 = arith.addf %29, %31 : vector<56x256xf32>
    %cst_21 = arith.constant 5.000000e-01 : f32
    %33 = vector.broadcast %cst_21 : f32 to vector<56x256xf32>
    %34 = arith.mulf %33, %32 : vector<56x256xf32>
    %35 = math.tanh %34 : vector<56x256xf32>
    %cst_22 = arith.constant 5.000000e-01 : f32
    %36 = vector.broadcast %cst_22 : f32 to vector<56x256xf32>
    %37 = arith.mulf %36, %35 : vector<56x256xf32>
    %cst_23 = arith.constant 5.000000e-01 : f32
    %38 = vector.broadcast %cst_23 : f32 to vector<56x256xf32>
    %39 = arith.addf %37, %38 : vector<56x256xf32>
    %40 = arith.truncf %39 : vector<56x256xf32> to vector<56x256xbf16>
    %c0_24 = arith.constant 0 : index
    %c0_25 = arith.constant 0 : index
    %41 = vector.load %arg8[%c0_24, %c0_25] : memref<256x128xbf16, #tpu.memory_space<vmem>>, vector<256x128xbf16>
    %cst_26 = arith.constant dense<0.000000e+00> : vector<56x128xf32>
    %42 = tpu.matmul %40, %41, %cst_26 {dimension_numbers = #tpu.dot_dimension_numbers<[1], [0], [0], [1], [0, 0, 1, 1], [], []>} : vector<56x256xbf16>, vector<256x128xbf16>, vector<56x128xf32> -> vector<56x128xf32>
    %c0_27 = arith.constant 0 : index
    %c0_28 = arith.constant 0 : index
    %43 = vector.load %arg9[%c0_27, %c0_28] : memref<1x128xf32, #tpu.memory_space<vmem>>, vector<1x128xf32>
    %44 = vector.broadcast %43 : vector<1x128xf32> to vector<56x128xf32>
    %45 = arith.addf %42, %44 : vector<56x128xf32>
    %c0_29 = arith.constant 0 : index
    %c0_30 = arith.constant 0 : index
    %46 = vector.load %arg10[%c0_29, %c0_30] : memref<56x128xf32, #tpu.memory_space<vmem>>, vector<56x128xf32>
    tpu.vector_store %arg10[%c0_29, %c0_30], %45 {strides = array<i32>} : memref<56x128xf32, #tpu.memory_space<vmem>>, vector<56x128xf32>,
    return
  }
  func.func @transform_0(%arg0: i32) -> (i32, i32) {
    %c0_i32 = arith.constant 0 : i32
    %c0_i32_0 = arith.constant 0 : i32
    return %arg0, %c0_i32 : i32, i32
  }
  func.func @transform_1(%arg0: i32) -> (i32, i32) {
    %c0_i32 = arith.constant 0 : i32
    %c0_i32_0 = arith.constant 0 : i32
    %c0_i32_1 = arith.constant 0 : i32
    return %c0_i32, %c0_i32_0 : i32, i32
  }
  func.func @transform_2(%arg0: i32) -> (i32, i32) {
    %c0_i32 = arith.constant 0 : i32
    %c0_i32_0 = arith.constant 0 : i32
    %c0_i32_1 = arith.constant 0 : i32
    return %c0_i32, %c0_i32_0 : i32, i32
  }
  func.func @transform_3(%arg0: i32) -> (i32, i32) {
    %c0_i32 = arith.constant 0 : i32
    %c0_i32_0 = arith.constant 0 : i32
    %c0_i32_1 = arith.constant 0 : i32
    return %c0_i32, %c0_i32_0 : i32, i32
  }
  func.func @transform_4(%arg0: i32) -> (i32, i32) {
    %c0_i32 = arith.constant 0 : i32
    %c0_i32_0 = arith.constant 0 : i32
    %c0_i32_1 = arith.constant 0 : i32
    return %c0_i32, %c0_i32_0 : i32, i32
  }
  func.func @transform_5(%arg0: i32) -> (i32, i32) {
    %c0_i32 = arith.constant 0 : i32
    %c0_i32_0 = arith.constant 0 : i32
    %c0_i32_1 = arith.constant 0 : i32
    return %c0_i32, %c0_i32_0 : i32, i32
  }
  func.func @transform_6(%arg0: i32) -> (i32, i32) {
    %c0_i32 = arith.constant 0 : i32
    %c0_i32_0 = arith.constant 0 : i32
    %c0_i32_1 = arith.constant 0 : i32
    return %c0_i32, %c0_i32_0 : i32, i32
  }
  func.func @transform_7(%arg0: i32) -> (i32, i32) {
    %c0_i32 = arith.constant 0 : i32
    %c0_i32_0 = arith.constant 0 : i32
    %c0_i32_1 = arith.constant 0 : i32
    return %c0_i32, %c0_i32_0 : i32, i32
  }
  func.func @transform_8(%arg0: i32) -> (i32, i32) {
    %c0_i32 = arith.constant 0 : i32
    %c0_i32_0 = arith.constant 0 : i32
    %c0_i32_1 = arith.constant 0 : i32
    return %c0_i32, %c0_i32_0 : i32, i32
  }
  func.func @transform_9(%arg0: i32) -> (i32, i32) {
    %c0_i32 = arith.constant 0 : i32
    %c0_i32_0 = arith.constant 0 : i32
    return %arg0, %c0_i32 : i32, i32
  }
}

</mosaic_0001>

<llo_original>
// kernel: tpu_custom_call.1
$region0: #{tpu_custom_call.1}
  #allocation0 [shape = 'u32[]', space=smem, size = 0x4, offset = 0x4, fixed_abs, tag = 'smem constant byte address 0x4 - core index']
  #allocation1 [shape = 'u32[72,128]{1,0:T(1,128)}', space=vmem, size = 0x9000, scoped, tag = 'internal scratch']
  %s0 = inlined_call_operand.hbm [shape: f32[100,350], index: 0, kind: input, shape index: {}]
  %s1 = inlined_call_operand.hbm [shape: bf16[350,1024], index: 1, kind: input, shape index: {}]
  %s2 = inlined_call_operand.hbm [shape: f32[1,1024], index: 2, kind: input, shape index: {}]
  %s3 = inlined_call_operand.hbm [shape: bf16[1024,512], index: 3, kind: input, shape index: {}]
  %s4 = inlined_call_operand.hbm [shape: f32[1,512], index: 4, kind: input, shape index: {}]
  %s5 = inlined_call_operand.hbm [shape: bf16[512,256], index: 5, kind: input, shape index: {}]
  %s6 = inlined_call_operand.vmem [shape: f32[1,256], index: 6, kind: input, shape index: {}]
  %s7 = inlined_call_operand.hbm [shape: bf16[256,128], index: 7, kind: input, shape index: {}]
  %s8 = inlined_call_operand.vmem [shape: f32[1,128], index: 8, kind: input, shape index: {}]
  %s9 = inlined_call_operand.hbm [shape: f32[100,128], index: 9, kind: output, shape index: {}]
  %s10 = sld [smem:[#allocation0]]
  $region97: #{tpu_custom_call.1} parent=0
    _
  %s12 = ssub.s32 1, %s10
  %s13 = scalar_select 0, %s12, %s10
  $region1: #{tpu_custom_call.1} parent=0
    #allocation2 [shape = 'u8[172032]{0}', space=vmem, size = 0x2a000, scoped, tag = 'input window, operand 0']
    #allocation3 [shape = 's32[2]{0}', space=sflag, size = 0x8, scoped, tag = 'scoped memory for tpu_custom_call.1']
    #allocation4 [shape = 's32[2]{0}', space=sflag, size = 0x8, scoped, tag = 'scoped memory for tpu_custom_call.1']
    #allocation5 [shape = 'u8[720896]{0}', space=vmem, size = 0xb0000, scoped, tag = 'input window, operand 1, single buffered']
    #allocation6 [shape = 's32[1]{0}', space=sflag, size = 0x4, scoped, tag = 'scoped memory for tpu_custom_call.1']
    #allocation7 [shape = 'u8[4096]{0}', space=vmem, size = 0x1000, scoped, tag = 'input window, operand 2, single buffered']
    #allocation8 [shape = 'u8[1048576]{0}', space=vmem, size = 0x100000, scoped, tag = 'input window, operand 3, single buffered']
    #allocation9 [shape = 's32[1]{0}', space=sflag, size = 0x4, scoped, tag = 'scoped memory for tpu_custom_call.1']
    #allocation10 [shape = 'u8[2048]{0}', space=vmem, size = 0x800, scoped, tag = 'input window, operand 4, single buffered']
    #allocation11 [shape = 'u8[262144]{0}', space=vmem, size = 0x40000, scoped, tag = 'input window, operand 5, single buffered']
    #allocation12 [shape = 's32[1]{0}', space=sflag, size = 0x4, scoped, tag = 'scoped memory for tpu_custom_call.1']
    #allocation13 [shape = 'u8[65536]{0}', space=vmem, size = 0x10000, scoped, tag = 'input window, operand 7, single buffered']
    #allocation14 [shape = 'u8[57344]{0}', space=vmem, size = 0xe000, scoped, tag = 'output window, operand 0']
    %14 = vsyncpa [#allocation3], 0
    %s15 = scalar_lea.sflag [#allocation3], 1
    %16 = vsyncpa %s15, 0
    %17 = vsyncpa [#allocation6], 0
    %18 = vsyncpa [#allocation9], 0
    %19 = vsyncpa [#allocation12], 0
    %20 = vsyncpa [#allocation4], 0
    %s21 = scalar_lea.sflag [#allocation4], 1
    %22 = vsyncpa %s21, 0
    loop: start=0, step=1, limit=4
    $region2: #{tpu_custom_call.1} parent=1 // loop_pre_header
      _
    $region3: #{tpu_custom_call.1} parent=1 // loop_header
      %s24 = sphi 0, %s28
      %p25 = scmp.ge.s32.totalorder %s24, 4
      %s34 = sphi 0, %s36
      %s37 = sphi 0, %s34
      %s38 = sphi 0, %s37
      %s54 = sphi 0, %s38
      %s58 = sphi 0, %s58
      %s60 = sphi 0, %s58
      %s61 = sphi 0, %s60
      %s75 = sphi 0, %s61
      %s79 = sphi 0, %s79
      %s81 = sphi 0, %s79
      %s82 = sphi 0, %s81
      %s96 = sphi 0, %s82
      %s100 = sphi 0, %s100
      %s102 = sphi 0, %s100
      %s103 = sphi 0, %s102
      %s117 = sphi 0, %s103
      %s121 = sphi 0, %s121
      %s123 = sphi 0, %s121
      %s124 = sphi 0, %s123
      %s138 = sphi 0, %s124
      %s142 = sphi 0, %s142
      %s144 = sphi 0, %s142
      %s145 = sphi 0, %s144
      %s159 = sphi 0, %s145
      %s163 = sphi 0, %s163
      %s165 = sphi 0, %s163
      %s166 = sphi 0, %s165
      %s180 = sphi 0, %s166
      %s184 = sphi 0, %s184
      %s186 = sphi 0, %s184
      %s187 = sphi 0, %s186
      %s201 = sphi 0, %s187
      %s205 = sphi 0, %s205
      %s207 = sphi 0, %s205
      %s208 = sphi 0, %s207
      %s222 = sphi 0, %s208
      %s228 = sphi 0, %s230
      %s231 = sphi 0, %s228
      %s232 = sphi 0, %s231
      %s248 = sphi 0, %s232
    $region4: #{tpu_custom_call.1} parent=1 // loop_header_branch
      %27 = sbr.rel (%p25) target = $region8
    $region5: #{tpu_custom_call.1} parent=1 // loop_body
      %s29 = ssub.s32 %s24, 1
      %s30 = ssub.s32 %s24, 2
      %s31 = sadd.s32 %s24, 1
      %s32 = ssub.s32 %s24, %s31
      %p33 = scmp.eq.s32.totalorder %s32, 0
      %s35 = sadd.s32 %s34, 1
      %s36 = scalar_select %p33, %s34, %s35
      %p39 = pneg %p33
      %p40 = scmp.eq.s32.totalorder %s24, 1
      %p41 = por %p39, %p40
      %p42 = scmp.ne.s32.totalorder %s34, %s37
      %p43 = scmp.eq.s32.totalorder %s24, 0
      %p44 = por %p42, %p43
      %p45 = scmp.ne.s32.totalorder %s34, %s37
      %p46 = scmp.eq.s32.totalorder %s29, 1
      %p47 = por %p45, %p46
      %p48 = scmp.ne.s32.totalorder %s37, %s38
      %p49 = scmp.eq.s32.totalorder %s29, 0
      %p50 = por %p48, %p49
      %p51 = scmp.ne.s32.totalorder %s37, %s38
      %p52 = scmp.eq.s32.totalorder %s30, 1
      %p53 = por %p51, %p52
      %p55 = scmp.ne.s32.totalorder %s38, %s54
      %p56 = scmp.eq.s32.totalorder %s30, 0
      %p57 = por %p55, %p56
      %s59 = sadd.s32 %s58, 1
      %p62 = scmp.eq.s32.totalorder %s24, 1
      %p63 = scmp.ne.s32.totalorder %s58, %s60
      %p64 = scmp.eq.s32.totalorder %s24, 0
      %p65 = por %p63, %p64
      %p66 = scmp.ne.s32.totalorder %s58, %s60
      %p67 = scmp.eq.s32.totalorder %s29, 1
      %p68 = por %p66, %p67
      %p69 = scmp.ne.s32.totalorder %s60, %s61
      %p70 = scmp.eq.s32.totalorder %s29, 0
      %p71 = por %p69, %p70
      %p72 = scmp.ne.s32.totalorder %s60, %s61
      %p73 = scmp.eq.s32.totalorder %s30, 1
      %p74 = por %p72, %p73
      %p76 = scmp.ne.s32.totalorder %s61, %s75
      %p77 = scmp.eq.s32.totalorder %s30, 0
      %p78 = por %p76, %p77
      %s80 = sadd.s32 %s79, 1
      %p83 = scmp.eq.s32.totalorder %s24, 1
      %p84 = scmp.ne.s32.totalorder %s79, %s81
      %p85 = scmp.eq.s32.totalorder %s24, 0
      %p86 = por %p84, %p85
      %p87 = scmp.ne.s32.totalorder %s79, %s81
      %p88 = scmp.eq.s32.totalorder %s29, 1
      %p89 = por %p87, %p88
      %p90 = scmp.ne.s32.totalorder %s81, %s82
      %p91 = scmp.eq.s32.totalorder %s29, 0
      %p92 = por %p90, %p91
      %p93 = scmp.ne.s32.totalorder %s81, %s82
      %p94 = scmp.eq.s32.totalorder %s30, 1
      %p95 = por %p93, %p94
      %p97 = scmp.ne.s32.totalorder %s82, %s96
      %p98 = scmp.eq.s32.totalorder %s30, 0
      %p99 = por %p97, %p98
      %s101 = sadd.s32 %s100, 1
      %p104 = scmp.eq.s32.totalorder %s24, 1
      %p105 = scmp.ne.s32.totalorder %s100, %s102
      %p106 = scmp.eq.s32.totalorder %s24, 0
      %p107 = por %p105, %p106
      %p108 = scmp.ne.s32.totalorder %s100, %s102
      %p109 = scmp.eq.s32.totalorder %s29, 1
      %p110 = por %p108, %p109
      %p111 = scmp.ne.s32.totalorder %s102, %s103
      %p112 = scmp.eq.s32.totalorder %s29, 0
      %p113 = por %p111, %p112
      %p114 = scmp.ne.s32.totalorder %s102, %s103
      %p115 = scmp.eq.s32.totalorder %s30, 1
      %p116 = por %p114, %p115
      %p118 = scmp.ne.s32.totalorder %s103, %s117
      %p119 = scmp.eq.s32.totalorder %s30, 0
      %p120 = por %p118, %p119
      %s122 = sadd.s32 %s121, 1
      %p125 = scmp.eq.s32.totalorder %s24, 1
      %p126 = scmp.ne.s32.totalorder %s121, %s123
      %p127 = scmp.eq.s32.totalorder %s24, 0
      %p128 = por %p126, %p127
      %p129 = scmp.ne.s32.totalorder %s121, %s123
      %p130 = scmp.eq.s32.totalorder %s29, 1
      %p131 = por %p129, %p130
      %p132 = scmp.ne.s32.totalorder %s123, %s124
      %p133 = scmp.eq.s32.totalorder %s29, 0
      %p134 = por %p132, %p133
      %p135 = scmp.ne.s32.totalorder %s123, %s124
      %p136 = scmp.eq.s32.totalorder %s30, 1
      %p137 = por %p135, %p136
      %p139 = scmp.ne.s32.totalorder %s124, %s138
      %p140 = scmp.eq.s32.totalorder %s30, 0
      %p141 = por %p139, %p140
      %s143 = sadd.s32 %s142, 1
      %p146 = scmp.eq.s32.totalorder %s24, 1
      %p147 = scmp.ne.s32.totalorder %s142, %s144
      %p148 = scmp.eq.s32.totalorder %s24, 0
      %p149 = por %p147, %p148
      %p150 = scmp.ne.s32.totalorder %s142, %s144
      %p151 = scmp.eq.s32.totalorder %s29, 1
      %p152 = por %p150, %p151
      %p153 = scmp.ne.s32.totalorder %s144, %s145
      %p154 = scmp.eq.s32.totalorder %s29, 0
      %p155 = por %p153, %p154
      %p156 = scmp.ne.s32.totalorder %s144, %s145
      %p157 = scmp.eq.s32.totalorder %s30, 1
      %p158 = por %p156, %p157
      %p160 = scmp.ne.s32.totalorder %s145, %s159
      %p161 = scmp.eq.s32.totalorder %s30, 0
      %p162 = por %p160, %p161
      %s164 = sadd.s32 %s163, 1
      %p167 = scmp.eq.s32.totalorder %s24, 1
      %p168 = scmp.ne.s32.totalorder %s163, %s165
      %p169 = scmp.eq.s32.totalorder %s24, 0
      %p170 = por %p168, %p169
      %p171 = scmp.ne.s32.totalorder %s163, %s165
      %p172 = scmp.eq.s32.totalorder %s29, 1
      %p173 = por %p171, %p172
      %p174 = scmp.ne.s32.totalorder %s165, %s166
      %p175 = scmp.eq.s32.totalorder %s29, 0
      %p176 = por %p174, %p175
      %p177 = scmp.ne.s32.totalorder %s165, %s166
      %p178 = scmp.eq.s32.totalorder %s30, 1
      %p179 = por %p177, %p178
      %p181 = scmp.ne.s32.totalorder %s166, %s180
      %p182 = scmp.eq.s32.totalorder %s30, 0
      %p183 = por %p181, %p182
      %s185 = sadd.s32 %s184, 1
      %p188 = scmp.eq.s32.totalorder %s24, 1
      %p189 = scmp.ne.s32.totalorder %s184, %s186
      %p190 = scmp.eq.s32.totalorder %s24, 0
      %p191 = por %p189, %p190
      %p192 = scmp.ne.s32.totalorder %s184, %s186
      %p193 = scmp.eq.s32.totalorder %s29, 1
      %p194 = por %p192, %p193
      %p195 = scmp.ne.s32.totalorder %s186, %s187
      %p196 = scmp.eq.s32.totalorder %s29, 0
      %p197 = por %p195, %p196
      %p198 = scmp.ne.s32.totalorder %s186, %s187
      %p199 = scmp.eq.s32.totalorder %s30, 1
      %p200 = por %p198, %p199
      %p202 = scmp.ne.s32.totalorder %s187, %s201
      %p203 = scmp.eq.s32.totalorder %s30, 0
      %p204 = por %p202, %p203
      %s206 = sadd.s32 %s205, 1
      %p209 = scmp.eq.s32.totalorder %s24, 1
      %p210 = scmp.ne.s32.totalorder %s205, %s207
      %p211 = scmp.eq.s32.totalorder %s24, 0
      %p212 = por %p210, %p211
      %p213 = scmp.ne.s32.totalorder %s205, %s207
      %p214 = scmp.eq.s32.totalorder %s29, 1
      %p215 = por %p213, %p214
      %p216 = scmp.ne.s32.totalorder %s207, %s208
      %p217 = scmp.eq.s32.totalorder %s29, 0
      %p218 = por %p216, %p217
      %p219 = scmp.ne.s32.totalorder %s207, %s208
      %p220 = scmp.eq.s32.totalorder %s30, 1
      %p221 = por %p219, %p220
      %p223 = scmp.ne.s32.totalorder %s208, %s222
      %p224 = scmp.eq.s32.totalorder %s30, 0
      %p225 = por %p223, %p224
      %s226 = ssub.s32 %s24, %s31
      %p227 = scmp.eq.s32.totalorder %s226, 0
      %s229 = sadd.s32 %s228, 1
      %s230 = scalar_select %p227, %s228, %s229
      %p233 = pneg %p227
      %p234 = scmp.eq.s32.totalorder %s24, 1
      %p235 = por %p233, %p234
      %p236 = scmp.ne.s32.totalorder %s228, %s231
      %p237 = scmp.eq.s32.totalorder %s24, 0
      %p238 = por %p236, %p237
      %p239 = scmp.ne.s32.totalorder %s228, %s231
      %p240 = scmp.eq.s32.totalorder %s29, 1
      %p241 = por %p239, %p240
      %p242 = scmp.ne.s32.totalorder %s231, %s232
      %p243 = scmp.eq.s32.totalorder %s29, 0
      %p244 = por %p242, %p243
      %p245 = scmp.ne.s32.totalorder %s231, %s232
      %p246 = scmp.eq.s32.totalorder %s30, 1
      %p247 = por %p245, %p246
      %p249 = scmp.ne.s32.totalorder %s232, %s248
      %p250 = scmp.eq.s32.totalorder %s30, 0
      %p251 = por %p249, %p250
      %p252 = scmp.le.s32.totalorder 1, %s24
      %p253 = scmp.lt.s32.totalorder %s24, 3
      %p254 = pnand %p252, %p253
      %p255 = pneg %p254
      // Predicated region
      $region9: #{tpu_custom_call.1} parent=5 // pred_check
        _
      $region10: #{tpu_custom_call.1} parent=5 // pred_check_branch
        %257 = sbr.rel (%p254) target = $region12
      $region11: #{tpu_custom_call.1} parent=5 // pred_region
        %s258 = ssub.s32 %s24, 1
        // Predicated region
        $region13: #{tpu_custom_call.1} parent=11 // pred_check
          %p259 = pneg %p71
        $region14: #{tpu_custom_call.1} parent=11 // pred_check_branch
          %261 = sbr.rel (%p259) target = $region16
        $region15: #{tpu_custom_call.1} parent=11 // pred_region
          %263 = vsyncadd [#allocation6], 0
          %s264 = sshll.u32 %s1, 4
          %s265 = int_to_ptr.hbm [resolvable:$true] %s264
          %s266 = sshll.u32 [#allocation5], 4
          %s267 = int_to_ptr.vmem [resolvable:$true] %s266
          %272 = dma.hbm_to_vmem [thread:$0]  %s265, 22528, %s267, [#allocation6], 512, 512, 32
        $region16: #{tpu_custom_call.1} parent=11 // pred_fallthru
          _
        // Predicated region
        $region17: #{tpu_custom_call.1} parent=11 // pred_check
          %p273 = pneg %p92
        $region18: #{tpu_custom_call.1} parent=11 // pred_check_branch
          %275 = sbr.rel (%p273) target = $region20
        $region19: #{tpu_custom_call.1} parent=11 // pred_region
          %277 = vsyncadd [#allocation6], 0
          %s279 = sshll.u32 %s2, 4
          %s280 = int_to_ptr.hbm [resolvable:$true] %s279
          %s281 = sshll.u32 [#allocation7], 4
          %s282 = int_to_ptr.vmem [resolvable:$true] %s281
          %284 = dma.hbm_to_vmem [thread:$0]  %s280, 128, %s282, [#allocation6]
        $region20: #{tpu_custom_call.1} parent=11 // pred_fallthru
          _
        // Predicated region
        $region21: #{tpu_custom_call.1} parent=11 // pred_check
          %p285 = pneg %p113
        $region22: #{tpu_custom_call.1} parent=11 // pred_check_branch
          %287 = sbr.rel (%p285) target = $region24
        $region23: #{tpu_custom_call.1} parent=11 // pred_region
          %289 = vsyncadd [#allocation9], 0
          %s290 = sshll.u32 %s3, 4
          %s291 = int_to_ptr.hbm [resolvable:$true] %s290
          %s292 = sshll.u32 [#allocation8], 4
          %s293 = int_to_ptr.vmem [resolvable:$true] %s292
          %298 = dma.hbm_to_vmem [thread:$0]  %s291, 32768, %s293, [#allocation9], 256, 256, 16
        $region24: #{tpu_custom_call.1} parent=11 // pred_fallthru
          _
        // Predicated region
        $region25: #{tpu_custom_call.1} parent=11 // pred_check
          %p299 = pneg %p134
        $region26: #{tpu_custom_call.1} parent=11 // pred_check_branch
          %301 = sbr.rel (%p299) target = $region28
        $region27: #{tpu_custom_call.1} parent=11 // pred_region
          %303 = vsyncadd [#allocation9], 0
          %s305 = sshll.u32 %s4, 4
          %s306 = int_to_ptr.hbm [resolvable:$true] %s305
          %s307 = sshll.u32 [#allocation10], 4
          %s308 = int_to_ptr.vmem [resolvable:$true] %s307
          %310 = dma.hbm_to_vmem [thread:$0]  %s306, 64, %s308, [#allocation9]
        $region28: #{tpu_custom_call.1} parent=11 // pred_fallthru
          _
        // Predicated region
        $region29: #{tpu_custom_call.1} parent=11 // pred_check
          %p311 = pneg %p155
        $region30: #{tpu_custom_call.1} parent=11 // pred_check_branch
          %313 = sbr.rel (%p311) target = $region32
        $region31: #{tpu_custom_call.1} parent=11 // pred_region
          %315 = vsyncadd [#allocation12], 0
          %s316 = sshll.u32 %s5, 4
          %s317 = int_to_ptr.hbm [resolvable:$true] %s316
          %s318 = sshll.u32 [#allocation11], 4
          %s319 = int_to_ptr.vmem [resolvable:$true] %s318
          %324 = dma.hbm_to_vmem [thread:$0]  %s317, 8192, %s319, [#allocation12], 128, 128, 8
        $region32: #{tpu_custom_call.1} parent=11 // pred_fallthru
          _
        // Predicated region
        $region33: #{tpu_custom_call.1} parent=11 // pred_check
          %p325 = pneg %p176
        $region34: #{tpu_custom_call.1} parent=11 // pred_check_branch
          %327 = sbr.rel (%p325) target = $region36
        $region35: #{tpu_custom_call.1} parent=11 // pred_region
          _
        $region36: #{tpu_custom_call.1} parent=11 // pred_fallthru
          _
        // Predicated region
        $region37: #{tpu_custom_call.1} parent=11 // pred_check
          %p328 = pneg %p197
        $region38: #{tpu_custom_call.1} parent=11 // pred_check_branch
          %330 = sbr.rel (%p328) target = $region40
        $region39: #{tpu_custom_call.1} parent=11 // pred_region
          %332 = vsyncadd [#allocation12], 0
          %s333 = sshll.u32 %s7, 4
          %s334 = int_to_ptr.hbm [resolvable:$true] %s333
          %s335 = sshll.u32 [#allocation13], 4
          %s336 = int_to_ptr.vmem [resolvable:$true] %s335
          %341 = dma.hbm_to_vmem [thread:$0]  %s334, 2048, %s336, [#allocation12], 64, 64, 4
        $region40: #{tpu_custom_call.1} parent=11 // pred_fallthru
          _
        // Predicated region
        $region41: #{tpu_custom_call.1} parent=11 // pred_check
          %p342 = pneg %p218
        $region42: #{tpu_custom_call.1} parent=11 // pred_check_branch
          %344 = sbr.rel (%p342) target = $region44
        $region43: #{tpu_custom_call.1} parent=11 // pred_region
          _
        $region44: #{tpu_custom_call.1} parent=11 // pred_fallthru
          _
      $region12: #{tpu_custom_call.1} parent=5 // pred_fallthru
        _
      %p345 = scmp.lt.s32.totalorder %s24, 2
      // Predicated region
      $region45: #{tpu_custom_call.1} parent=5 // pred_check
        %p346 = pneg %p345
      $region46: #{tpu_custom_call.1} parent=5 // pred_check_branch
        %348 = sbr.rel (%p346) target = $region48
      $region47: #{tpu_custom_call.1} parent=5 // pred_region
        // Predicated region
        $region49: #{tpu_custom_call.1} parent=47 // pred_check
          %p349 = pneg %p44
        $region50: #{tpu_custom_call.1} parent=47 // pred_check_branch
          %351 = sbr.rel (%p349) target = $region52
        $region51: #{tpu_custom_call.1} parent=47 // pred_region
          %s352 = sand.u32 %s34, 1
          %s353 = scalar_lea.sflag [#allocation3], %s352
          %s354 = sand.u32 %s34, 1
          %s355 = smul.addr %s354, 168
          %s356 = scalar_lea.vmem [#allocation2], %s355
          %s357 = smul.u32 7, %s24
          %s358 = ssub.s32 13, %s357
          %p359 = scmp.lt.s32.totalorder %s358, 7
          %s360 = scalar_select %p359, %s358, 7
          %s361 = smul.u32 8, %s360
          %s362 = smul.u32 %s361, 3
          %s363 = ssub.s32 168, %s362
          %s364 = sshll.u32 %s363, 4
          %365 = vsyncadd %s353, %s364
          %p366 = scmp.ne.s32.totalorder 0, %s362
          %s367 = smul.addr %s357, 3
          %s368 = smul.addr %s367, 8
          %s369 = scalar_lea.hbm %s0, %s368
          %s370 = smul.u32 24, %s360
          %s371 = sshll.u32 %s369, 4
          %s372 = int_to_ptr.hbm [resolvable:$true] %s371
          %s373 = sshll.u32 %s356, 4
          %s374 = int_to_ptr.vmem [resolvable:$true] %s373
          %s375 = sshll.u32 %s370, 4
          %379 = dma.hbm_to_vmem [thread:$0]  (%p366), %s372, %s375, %s374, %s353, 384, 384, 24
        $region52: #{tpu_custom_call.1} parent=47 // pred_fallthru
          _
      $region48: #{tpu_custom_call.1} parent=5 // pred_fallthru
        _
      %p380 = scmp.le.s32.totalorder 1, %s24
      %p381 = scmp.lt.s32.totalorder %s24, 3
      %p382 = pnand %p380, %p381
      %p383 = pneg %p382
      // Predicated region
      $region53: #{tpu_custom_call.1} parent=5 // pred_check
        _
      $region54: #{tpu_custom_call.1} parent=5 // pred_check_branch
        %385 = sbr.rel (%p382) target = $region56
      $region55: #{tpu_custom_call.1} parent=5 // pred_region
        %s386 = ssub.s32 %s24, 1
        %s387 = sand.u32 %s37, 1
        %s388 = scalar_lea.sflag [#allocation3], %s387
        %s389 = sand.u32 %s37, 1
        %s390 = smul.addr %s389, 168
        %s391 = scalar_lea.vmem [#allocation2], %s390
        // Predicated region
        $region57: #{tpu_custom_call.1} parent=55 // pred_check
          %p392 = pneg %p50
        $region58: #{tpu_custom_call.1} parent=55 // pred_check_branch
          %394 = sbr.rel (%p392) target = $region60
        $region59: #{tpu_custom_call.1} parent=55 // pred_region
          %396 = dma.done %s388, 2688
        $region60: #{tpu_custom_call.1} parent=55 // pred_fallthru
          _
        // Predicated region
        $region61: #{tpu_custom_call.1} parent=55 // pred_check
          %p397 = pneg %p71
        $region62: #{tpu_custom_call.1} parent=55 // pred_check_branch
          %399 = sbr.rel (%p397) target = $region64
        $region63: #{tpu_custom_call.1} parent=55 // pred_region
          %401 = dma.done [#allocation6], 22528
        $region64: #{tpu_custom_call.1} parent=55 // pred_fallthru
          _
        // Predicated region
        $region65: #{tpu_custom_call.1} parent=55 // pred_check
          %p402 = pneg %p92
        $region66: #{tpu_custom_call.1} parent=55 // pred_check_branch
          %404 = sbr.rel (%p402) target = $region68
        $region67: #{tpu_custom_call.1} parent=55 // pred_region
          %406 = dma.done [#allocation6], 128
        $region68: #{tpu_custom_call.1} parent=55 // pred_fallthru
          _
        // Predicated region
        $region69: #{tpu_custom_call.1} parent=55 // pred_check
          %p407 = pneg %p113
        $region70: #{tpu_custom_call.1} parent=55 // pred_check_branch
          %409 = sbr.rel (%p407) target = $region72
        $region71: #{tpu_custom_call.1} parent=55 // pred_region
          %411 = dma.done [#allocation9], 32768
        $region72: #{tpu_custom_call.1} parent=55 // pred_fallthru
          _
        // Predicated region
        $region73: #{tpu_custom_call.1} parent=55 // pred_check
          %p412 = pneg %p134
        $region74: #{tpu_custom_call.1} parent=55 // pred_check_branch
          %414 = sbr.rel (%p412) target = $region76
        $region75: #{tpu_custom_call.1} parent=55 // pred_region
          %416 = dma.done [#allocation9], 64
        $region76: #{tpu_custom_call.1} parent=55 // pred_fallthru
          _
        // Predicated region
        $region77: #{tpu_custom_call.1} parent=55 // pred_check
          %p417 = pneg %p155
        $region78: #{tpu_custom_call.1} parent=55 // pred_check_branch
          %419 = sbr.rel (%p417) target = $region80
        $region79: #{tpu_custom_call.1} parent=55 // pred_region
          %421 = dma.done [#allocation12], 8192
        $region80: #{tpu_custom_call.1} parent=55 // pred_fallthru
          _
        // Predicated region
        $region81: #{tpu_custom_call.1} parent=55 // pred_check
          %p422 = pneg %p197
        $region82: #{tpu_custom_call.1} parent=55 // pred_check_branch
          %424 = sbr.rel (%p422) target = $region84
        $region83: #{tpu_custom_call.1} parent=55 // pred_region
          %426 = dma.done [#allocation12], 2048
        $region84: #{tpu_custom_call.1} parent=55 // pred_fallthru
          _
        %s427 = sand.u32 %s37, 1
        %s428 = scalar_lea.sflag [#allocation3], %s427
        %s429 = sand.u32 %s37, 1
        %s430 = smul.addr %s429, 168
        %s431 = scalar_lea.vmem [#allocation2], %s430
        %p432 = pneg %p50
        %p433 = pneg %p47
        %p434 = pneg %p71
        %p435 = pneg %p68
        %p436 = pneg %p92
        %p437 = pneg %p89
        %p438 = pneg %p113
        %p439 = pneg %p110
        %p440 = pneg %p134
        %p441 = pneg %p131
        %p442 = pneg %p155
        %p443 = pneg %p152
        %p444 = pneg %p176
        %p445 = pneg %p173
        %p446 = pneg %p197
        %p447 = pneg %p194
        %p448 = pneg %p218
        %p449 = pneg %p215
        %p450 = pneg %p244
        %p451 = pneg %p241
        %s452 = sand.u32 %s231, 1
        %s453 = scalar_lea.sflag [#allocation4], %s452
        %s454 = sand.u32 %s231, 1
        %s455 = smul.addr %s454, 56
        %s456 = scalar_lea.vmem [#allocation14], %s455
        %s457 = smul.u32 7, %s29
        %s458 = ssub.s32 13, %s457
        %p459 = scmp.lt.s32.totalorder %s458, 7
        %s460 = scalar_select %p459, %s458, 7
        %s461 = smul.u32 8, %s460
        %s462 = smul.u32 %s461, 3
        %s463 = smul.u32 7, %s29
        %s464 = ssub.s32 13, %s463
        %p465 = scmp.lt.s32.totalorder %s464, 7
        %s466 = scalar_select %p465, %s464, 7
        %s467 = smul.u32 8, %s466
        %v469 = vld [vmem:[%s391] sm:$0xff]
        %v470 = vld [vmem:[%s391 + $0x8] sm:$0xff]
        %v471 = vld [vmem:[%s391 + $0x10] sm:$0xff]
        %v472 = vld [vmem:[%s391 + $0x18] sm:$0xff]
        %v473 = vld [vmem:[%s391 + $0x20] sm:$0xff]
        %v474 = vld [vmem:[%s391 + $0x28] sm:$0xff]
        %v475 = vld [vmem:[%s391 + $0x30] sm:$0xff]
        %v476 = vld [vmem:[%s391 + $0x38] sm:$0xff]
        %v477 = vld [vmem:[%s391 + $0x40] sm:$0xff]
        %v478 = vld [vmem:[%s391 + $0x48] sm:$0xff]
        %v479 = vld [vmem:[%s391 + $0x50] sm:$0xff]
        %v480 = vld [vmem:[%s391 + $0x58] sm:$0xff]
        %v481 = vld [vmem:[%s391 + $0x60] sm:$0xff]
        %v482 = vld [vmem:[%s391 + $0x68] sm:$0xff]
        %v483 = vld [vmem:[%s391 + $0x70] sm:$0xff]
        %v484 = vld [vmem:[%s391 + $0x78] sm:$0xff]
        %v485 = vld [vmem:[%s391 + $0x80] sm:$0xff]
        %v486 = vld [vmem:[%s391 + $0x88] sm:$0xff]
        %v487 = vld [vmem:[%s391 + $0x90] sm:$0xff]
        %v488 = vld [vmem:[%s391 + $0x98] sm:$0xff]
        %v489 = vld [vmem:[%s391 + $0xa0] sm:$0xff]
        %v490 = vpack.c.bf16 %v472, %v469
        %v491 = vpack.c.bf16 %v473, %v470
        %v492 = vpack.c.bf16 %v474, %v471
        %v493 = vpack.c.bf16 %v478, %v475
        %v494 = vpack.c.bf16 %v479, %v476
        %v495 = vpack.c.bf16 %v480, %v477
        %v496 = vpack.c.bf16 %v484, %v481
        %v497 = vpack.c.bf16 %v485, %v482
        %v498 = vpack.c.bf16 %v486, %v483
        %v499 = vpack.c.bf16 %v487, %v487
        %v500 = vpack.c.bf16 %v488, %v488
        %v501 = vpack.c.bf16 %v489, %v489
        %v502 = vld [vmem:[#allocation5] sm:$0xff]
        %v503 = vld [vmem:[#allocation5 + $0x8] sm:$0xff]
        %v504 = vld [vmem:[#allocation5 + $0x10] sm:$0xff]
        %v505 = vld [vmem:[#allocation5 + $0x18] sm:$0xff]
        %v506 = vld [vmem:[#allocation5 + $0x20] sm:$0xff]
        %v507 = vld [vmem:[#allocation5 + $0x28] sm:$0xff]
        %v508 = vld [vmem:[#allocation5 + $0x30] sm:$0xff]
        %v509 = vld [vmem:[#allocation5 + $0x38] sm:$0xff]
        %v510 = vld [vmem:[#allocation5 + $0x40] sm:$0xff]
        %v511 = vld [vmem:[#allocation5 + $0x48] sm:$0xff]
        %v512 = vld [vmem:[#allocation5 + $0x50] sm:$0xff]
        %v513 = vld [vmem:[#allocation5 + $0x58] sm:$0xff]
        %v514 = vld [vmem:[#allocation5 + $0x60] sm:$0xff]
        %v515 = vld [vmem:[#allocation5 + $0x68] sm:$0xff]
        %v516 = vld [vmem:[#allocation5 + $0x70] sm:$0xff]
        %v517 = vld [vmem:[#allocation5 + $0x78] sm:$0xff]
        %v518 = vld [vmem:[#allocation5 + $0x80] sm:$0xff]
        %v519 = vld [vmem:[#allocation5 + $0x88] sm:$0xff]
        %v520 = vld [vmem:[#allocation5 + $0x90] sm:$0xff]
        %v521 = vld [vmem:[#allocation5 + $0x98] sm:$0xff]
        %v522 = vld [vmem:[#allocation5 + $0xa0] sm:$0xff]
        %v523 = vld [vmem:[#allocation5 + $0xa8] sm:$0xff]
        %v524 = vld [vmem:[#allocation5 + $0xb0] sm:$0xff]
        %v525 = vld [vmem:[#allocation5 + $0xb8] sm:$0xff]
        %v526 = vld [vmem:[#allocation5 + $0xc0] sm:$0xff]
        %v527 = vld [vmem:[#allocation5 + $0xc8] sm:$0xff]
        %v528 = vld [vmem:[#allocation5 + $0xd0] sm:$0xff]
        %v529 = vld [vmem:[#allocation5 + $0xd8] sm:$0xff]
        %v530 = vld [vmem:[#allocation5 + $0xe0] sm:$0xff]
        %v531 = vld [vmem:[#allocation5 + $0xe8] sm:$0xff]
        %v532 = vld [vmem:[#allocation5 + $0xf0] sm:$0xff]
        %v533 = vld [vmem:[#allocation5 + $0xf8] sm:$0xff]
        %v534 = vld [vmem:[#allocation5 + $0x100] sm:$0xff]
        %v535 = vld [vmem:[#allocation5 + $0x108] sm:$0xff]
        %v536 = vld [vmem:[#allocation5 + $0x110] sm:$0xff]
        %v537 = vld [vmem:[#allocation5 + $0x118] sm:$0xff]
        %v538 = vld [vmem:[#allocation5 + $0x120] sm:$0xff]
        %v539 = vld [vmem:[#allocation5 + $0x128] sm:$0xff]
        %v540 = vld [vmem:[#allocation5 + $0x130] sm:$0xff]
        %v541 = vld [vmem:[#allocation5 + $0x138] sm:$0xff]
        %v542 = vld [vmem:[#allocation5 + $0x140] sm:$0xff]
        %v543 = vld [vmem:[#allocation5 + $0x148] sm:$0xff]
        %v544 = vld [vmem:[#allocation5 + $0x150] sm:$0xff]
        %v545 = vld [vmem:[#allocation5 + $0x158] sm:$0xff]
        %v546 = vld [vmem:[#allocation5 + $0x160] sm:$0xff]
        %v547 = vld [vmem:[#allocation5 + $0x168] sm:$0xff]
        %v548 = vld [vmem:[#allocation5 + $0x170] sm:$0xff]
        %v549 = vld [vmem:[#allocation5 + $0x178] sm:$0xff]
        %v550 = vld [vmem:[#allocation5 + $0x180] sm:$0xff]
        %v551 = vld [vmem:[#allocation5 + $0x188] sm:$0xff]
        %v552 = vld [vmem:[#allocation5 + $0x190] sm:$0xff]
        %v553 = vld [vmem:[#allocation5 + $0x198] sm:$0xff]
        %v554 = vld [vmem:[#allocation5 + $0x1a0] sm:$0xff]
        %v555 = vld [vmem:[#allocation5 + $0x1a8] sm:$0xff]
        %v556 = vld [vmem:[#allocation5 + $0x1b0] sm:$0xff]
        %v557 = vld [vmem:[#allocation5 + $0x1b8] sm:$0xff]
        %v558 = vld [vmem:[#allocation5 + $0x1c0] sm:$0xff]
        %v559 = vld [vmem:[#allocation5 + $0x1c8] sm:$0xff]
        %v560 = vld [vmem:[#allocation5 + $0x1d0] sm:$0xff]
        %v561 = vld [vmem:[#allocation5 + $0x1d8] sm:$0xff]
        %v562 = vld [vmem:[#allocation5 + $0x1e0] sm:$0xff]
        %v563 = vld [vmem:[#allocation5 + $0x1e8] sm:$0xff]
        %v564 = vld [vmem:[#allocation5 + $0x1f0] sm:$0xff]
        %v565 = vld [vmem:[#allocation5 + $0x1f8] sm:$0xff]
        %v566 = vld [vmem:[#allocation5 + $0x200] sm:$0xff]
        %v567 = vld [vmem:[#allocation5 + $0x208] sm:$0xff]
        %v568 = vld [vmem:[#allocation5 + $0x210] sm:$0xff]
        %v569 = vld [vmem:[#allocation5 + $0x218] sm:$0xff]
        %v570 = vld [vmem:[#allocation5 + $0x220] sm:$0xff]
        %v571 = vld [vmem:[#allocation5 + $0x228] sm:$0xff]
        %v572 = vld [vmem:[#allocation5 + $0x230] sm:$0xff]
        %v573 = vld [vmem:[#allocation5 + $0x238] sm:$0xff]
        %v574 = vld [vmem:[#allocation5 + $0x240] sm:$0xff]
        %v575 = vld [vmem:[#allocation5 + $0x248] sm:$0xff]
        %v576 = vld [vmem:[#allocation5 + $0x250] sm:$0xff]
        %v577 = vld [vmem:[#allocation5 + $0x258] sm:$0xff]
        %v578 = vld [vmem:[#allocation5 + $0x260] sm:$0xff]
        %v579 = vld [vmem:[#allocation5 + $0x268] sm:$0xff]
        %v580 = vld [vmem:[#allocation5 + $0x270] sm:$0xff]
        %v581 = vld [vmem:[#allocation5 + $0x278] sm:$0xff]
        %v582 = vld [vmem:[#allocation5 + $0x280] sm:$0xff]
        %v583 = vld [vmem:[#allocation5 + $0x288] sm:$0xff]
        %v584 = vld [vmem:[#allocation5 + $0x290] sm:$0xff]
        %v585 = vld [vmem:[#allocation5 + $0x298] sm:$0xff]
        %v586 = vld [vmem:[#allocation5 + $0x2a0] sm:$0xff]
        %v587 = vld [vmem:[#allocation5 + $0x2a8] sm:$0xff]
        %v588 = vld [vmem:[#allocation5 + $0x2b0] sm:$0xff]
        %v589 = vld [vmem:[#allocation5 + $0x2b8] sm:$0xff]
        %v590 = vld [vmem:[#allocation5 + $0x2c0] sm:$0xff]
        %v591 = vld [vmem:[#allocation5 + $0x2c8] sm:$0xff]
        %v592 = vld [vmem:[#allocation5 + $0x2d0] sm:$0xff]
        %v593 = vld [vmem:[#allocation5 + $0x2d8] sm:$0xff]
        %v594 = vld [vmem:[#allocation5 + $0x2e0] sm:$0xff]
        %v595 = vld [vmem:[#allocation5 + $0x2e8] sm:$0xff]
        %v596 = vld [vmem:[#allocation5 + $0x2f0] sm:$0xff]
        %v597 = vld [vmem:[#allocation5 + $0x2f8] sm:$0xff]
        %v598 = vld [vmem:[#allocation5 + $0x300] sm:$0xff]
        %v599 = vld [vmem:[#allocation5 + $0x308] sm:$0xff]
        %v600 = vld [vmem:[#allocation5 + $0x310] sm:$0xff]
        %v601 = vld [vmem:[#allocation5 + $0x318] sm:$0xff]
        %v602 = vld [vmem:[#allocation5 + $0x320] sm:$0xff]
        %v603 = vld [vmem:[#allocation5 + $0x328] sm:$0xff]
        %v604 = vld [vmem:[#allocation5 + $0x330] sm:$0xff]
        %v605 = vld [vmem:[#allocation5 + $0x338] sm:$0xff]
        %v606 = vld [vmem:[#allocation5 + $0x340] sm:$0xff]
        %v607 = vld [vmem:[#allocation5 + $0x348] sm:$0xff]
        %v608 = vld [vmem:[#allocation5 + $0x350] sm:$0xff]
        %v609 = vld [vmem:[#allocation5 + $0x358] sm:$0xff]
        %v610 = vld [vmem:[#allocation5 + $0x360] sm:$0xff]
        %v611 = vld [vmem:[#allocation5 + $0x368] sm:$0xff]
        %v612 = vld [vmem:[#allocation5 + $0x370] sm:$0xff]
        %v613 = vld [vmem:[#allocation5 + $0x378] sm:$0xff]
        %v614 = vld [vmem:[#allocation5 + $0x380] sm:$0xff]
        %v615 = vld [vmem:[#allocation5 + $0x388] sm:$0xff]
        %v616 = vld [vmem:[#allocation5 + $0x390] sm:$0xff]
        %v617 = vld [vmem:[#allocation5 + $0x398] sm:$0xff]
        %v618 = vld [vmem:[#allocation5 + $0x3a0] sm:$0xff]
        %v619 = vld [vmem:[#allocation5 + $0x3a8] sm:$0xff]
        %v620 = vld [vmem:[#allocation5 + $0x3b0] sm:$0xff]
        %v621 = vld [vmem:[#allocation5 + $0x3b8] sm:$0xff]
        %v622 = vld [vmem:[#allocation5 + $0x3c0] sm:$0xff]
        %v623 = vld [vmem:[#allocation5 + $0x3c8] sm:$0xff]
        %v624 = vld [vmem:[#allocation5 + $0x3d0] sm:$0xff]
        %v625 = vld [vmem:[#allocation5 + $0x3d8] sm:$0xff]
        %v626 = vld [vmem:[#allocation5 + $0x3e0] sm:$0xff]
        %v627 = vld [vmem:[#allocation5 + $0x3e8] sm:$0xff]
        %v628 = vld [vmem:[#allocation5 + $0x3f0] sm:$0xff]
        %v629 = vld [vmem:[#allocation5 + $0x3f8] sm:$0xff]
        %v630 = vld [vmem:[#allocation5 + $0x400] sm:$0xff]
        %v631 = vld [vmem:[#allocation5 + $0x408] sm:$0xff]
        %v632 = vld [vmem:[#allocation5 + $0x410] sm:$0xff]
        %v633 = vld [vmem:[#allocation5 + $0x418] sm:$0xff]
        %v634 = vld [vmem:[#allocation5 + $0x420] sm:$0xff]
        %v635 = vld [vmem:[#allocation5 + $0x428] sm:$0xff]
        %v636 = vld [vmem:[#allocation5 + $0x430] sm:$0xff]
        %v637 = vld [vmem:[#allocation5 + $0x438] sm:$0xff]
        %v638 = vld [vmem:[#allocation5 + $0x440] sm:$0xff]
        %v639 = vld [vmem:[#allocation5 + $0x448] sm:$0xff]
        %v640 = vld [vmem:[#allocation5 + $0x450] sm:$0xff]
        %v641 = vld [vmem:[#allocation5 + $0x458] sm:$0xff]
        %v642 = vld [vmem:[#allocation5 + $0x460] sm:$0xff]
        %v643 = vld [vmem:[#allocation5 + $0x468] sm:$0xff]
        %v644 = vld [vmem:[#allocation5 + $0x470] sm:$0xff]
        %v645 = vld [vmem:[#allocation5 + $0x478] sm:$0xff]
        %v646 = vld [vmem:[#allocation5 + $0x480] sm:$0xff]
        %v647 = vld [vmem:[#allocation5 + $0x488] sm:$0xff]
        %v648 = vld [vmem:[#allocation5 + $0x490] sm:$0xff]
        %v649 = vld [vmem:[#allocation5 + $0x498] sm:$0xff]
        %v650 = vld [vmem:[#allocation5 + $0x4a0] sm:$0xff]
        %v651 = vld [vmem:[#allocation5 + $0x4a8] sm:$0xff]
        %v652 = vld [vmem:[#allocation5 + $0x4b0] sm:$0xff]
        %v653 = vld [vmem:[#allocation5 + $0x4b8] sm:$0xff]
        %v654 = vld [vmem:[#allocation5 + $0x4c0] sm:$0xff]
        %v655 = vld [vmem:[#allocation5 + $0x4c8] sm:$0xff]
        %v656 = vld [vmem:[#allocation5 + $0x4d0] sm:$0xff]
        %v657 = vld [vmem:[#allocation5 + $0x4d8] sm:$0xff]
        %v658 = vld [vmem:[#allocation5 + $0x4e0] sm:$0xff]
        %v659 = vld [vmem:[#allocation5 + $0x4e8] sm:$0xff]
        %v660 = vld [vmem:[#allocation5 + $0x4f0] sm:$0xff]
        %v661 = vld [vmem:[#allocation5 + $0x4f8] sm:$0xff]
        %v662 = vld [vmem:[#allocation5 + $0x500] sm:$0xff]
        %v663 = vld [vmem:[#allocation5 + $0x508] sm:$0xff]
        %v664 = vld [vmem:[#allocation5 + $0x510] sm:$0xff]
        %v665 = vld [vmem:[#allocation5 + $0x518] sm:$0xff]
        %v666 = vld [vmem:[#allocation5 + $0x520] sm:$0xff]
        %v667 = vld [vmem:[#allocation5 + $0x528] sm:$0xff]
        %v668 = vld [vmem:[#allocation5 + $0x530] sm:$0xff]
        %v669 = vld [vmem:[#allocation5 + $0x538] sm:$0xff]
        %v670 = vld [vmem:[#allocation5 + $0x540] sm:$0xff]
        %v671 = vld [vmem:[#allocation5 + $0x548] sm:$0xff]
        %v672 = vld [vmem:[#allocation5 + $0x550] sm:$0xff]
        %v673 = vld [vmem:[#allocation5 + $0x558] sm:$0xff]
        %v674 = vld [vmem:[#allocation5 + $0x560] sm:$0x77]
        %v675 = vld [vmem:[#allocation5 + $0x568] sm:$0x77]
        %v676 = vld [vmem:[#allocation5 + $0x570] sm:$0x77]
        %v677 = vld [vmem:[#allocation5 + $0x578] sm:$0x77]
        %v678 = vld [vmem:[#allocation7] sm:$0xff]
        %v680 = vperm.slane %v678, 0
        %v681 = vperm.slane %v678, 1
        %v682 = vperm.slane %v678, 2
        %v683 = vperm.slane %v678, 3
        %v684 = vperm.slane %v678, 4
        %v685 = vperm.slane %v678, 5
        %v686 = vperm.slane %v678, 6
        %v687 = vperm.slane %v678, 7
        %v872 = vunpack.c.l.b16 %v502
        %v873 = vunpack.c.h.b16 %v502
        %v874 = vunpack.c.l.b16 %v503
        %v875 = vunpack.c.h.b16 %v503
        %v876 = vunpack.c.l.b16 %v504
        %v877 = vunpack.c.h.b16 %v504
        %v878 = vunpack.c.l.b16 %v505
        %v879 = vunpack.c.h.b16 %v505
        %v880 = vunpack.c.l.b16 %v506
        %v881 = vunpack.c.h.b16 %v506
        %v882 = vunpack.c.l.b16 %v507
        %v883 = vunpack.c.h.b16 %v507
        %v884 = vunpack.c.l.b16 %v508
        %v885 = vunpack.c.h.b16 %v508
        %v886 = vunpack.c.l.b16 %v509
        %v887 = vunpack.c.h.b16 %v509
        %v888 = vunpack.c.l.b16 %v510
        %v889 = vunpack.c.h.b16 %v510
        %v890 = vunpack.c.l.b16 %v511
        %v891 = vunpack.c.h.b16 %v511
        %v892 = vunpack.c.l.b16 %v512
        %v893 = vunpack.c.h.b16 %v512
        %v894 = vunpack.c.l.b16 %v513
        %v895 = vunpack.c.h.b16 %v513
        %v896 = vunpack.c.l.b16 %v514
        %v897 = vunpack.c.h.b16 %v514
        %v898 = vunpack.c.l.b16 %v515
        %v899 = vunpack.c.h.b16 %v515
        %v900 = vunpack.c.l.b16 %v516
        %v901 = vunpack.c.h.b16 %v516
        %v902 = vunpack.c.l.b16 %v517
        %v903 = vunpack.c.h.b16 %v517
        %v904 = vunpack.c.l.b16 %v518
        %v905 = vunpack.c.h.b16 %v518
        %v906 = vunpack.c.l.b16 %v519
        %v907 = vunpack.c.h.b16 %v519
        %v908 = vunpack.c.l.b16 %v520
        %v909 = vunpack.c.h.b16 %v520
        %v910 = vunpack.c.l.b16 %v521
        %v911 = vunpack.c.h.b16 %v521
        %v912 = vunpack.c.l.b16 %v522
        %v913 = vunpack.c.h.b16 %v522
        %v914 = vunpack.c.l.b16 %v523
        %v915 = vunpack.c.h.b16 %v523
        %v916 = vunpack.c.l.b16 %v524
        %v917 = vunpack.c.h.b16 %v524
        %v918 = vunpack.c.l.b16 %v525
        %v919 = vunpack.c.h.b16 %v525
        %v920 = vunpack.c.l.b16 %v526
        %v921 = vunpack.c.h.b16 %v526
        %v922 = vunpack.c.l.b16 %v527
        %v923 = vunpack.c.h.b16 %v527
        %v924 = vunpack.c.l.b16 %v528
        %v925 = vunpack.c.h.b16 %v528
        %v926 = vunpack.c.l.b16 %v529
        %v927 = vunpack.c.h.b16 %v529
        %v928 = vunpack.c.l.b16 %v530
        %v929 = vunpack.c.h.b16 %v530
        %v930 = vunpack.c.l.b16 %v531
        %v931 = vunpack.c.h.b16 %v531
        %v932 = vunpack.c.l.b16 %v532
        %v933 = vunpack.c.h.b16 %v532
        %v934 = vunpack.c.l.b16 %v533
        %v935 = vunpack.c.h.b16 %v533
        %v936 = vunpack.c.l.b16 %v534
        %v937 = vunpack.c.h.b16 %v534
        %v938 = vunpack.c.l.b16 %v535
        %v939 = vunpack.c.h.b16 %v535
        %v940 = vunpack.c.l.b16 %v536
        %v941 = vunpack.c.h.b16 %v536
        %v942 = vunpack.c.l.b16 %v537
        %v943 = vunpack.c.h.b16 %v537
        %v944 = vunpack.c.l.b16 %v538
        %v945 = vunpack.c.h.b16 %v538
        %v946 = vunpack.c.l.b16 %v539
        %v947 = vunpack.c.h.b16 %v539
        %v948 = vunpack.c.l.b16 %v540
        %v949 = vunpack.c.h.b16 %v540
        %v950 = vunpack.c.l.b16 %v541
        %v951 = vunpack.c.h.b16 %v541
        %v952 = vunpack.c.l.b16 %v542
        %v953 = vunpack.c.h.b16 %v542
        %v954 = vunpack.c.l.b16 %v543
        %v955 = vunpack.c.h.b16 %v543
        %v956 = vunpack.c.l.b16 %v544
        %v957 = vunpack.c.h.b16 %v544
        %v958 = vunpack.c.l.b16 %v545
        %v959 = vunpack.c.h.b16 %v545
        %v960 = vunpack.c.l.b16 %v546
        %v961 = vunpack.c.h.b16 %v546
        %v962 = vunpack.c.l.b16 %v547
        %v963 = vunpack.c.h.b16 %v547
        %v964 = vunpack.c.l.b16 %v548
        %v965 = vunpack.c.h.b16 %v548
        %v966 = vunpack.c.l.b16 %v549
        %v967 = vunpack.c.h.b16 %v549
        %v968 = vunpack.c.l.b16 %v550
        %v969 = vunpack.c.h.b16 %v550
        %v970 = vunpack.c.l.b16 %v551
        %v971 = vunpack.c.h.b16 %v551
        %v972 = vunpack.c.l.b16 %v552
        %v973 = vunpack.c.h.b16 %v552
        %v974 = vunpack.c.l.b16 %v553
        %v975 = vunpack.c.h.b16 %v553
        %v976 = vunpack.c.l.b16 %v554
        %v977 = vunpack.c.h.b16 %v554
        %v978 = vunpack.c.l.b16 %v555
        %v979 = vunpack.c.h.b16 %v555
        %v980 = vunpack.c.l.b16 %v556
        %v981 = vunpack.c.h.b16 %v556
        %v982 = vunpack.c.l.b16 %v557
        %v983 = vunpack.c.h.b16 %v557
        %v984 = vunpack.c.l.b16 %v558
        %v985 = vunpack.c.h.b16 %v558
        %v986 = vunpack.c.l.b16 %v559
        %v987 = vunpack.c.h.b16 %v559
        %v988 = vunpack.c.l.b16 %v560
        %v989 = vunpack.c.h.b16 %v560
        %v990 = vunpack.c.l.b16 %v561
        %v991 = vunpack.c.h.b16 %v561
        %v992 = vunpack.c.l.b16 %v562
        %v993 = vunpack.c.h.b16 %v562
        %v994 = vunpack.c.l.b16 %v563
        %v995 = vunpack.c.h.b16 %v563
        %v996 = vunpack.c.l.b16 %v564
        %v997 = vunpack.c.h.b16 %v564
        %v998 = vunpack.c.l.b16 %v565
        %v999 = vunpack.c.h.b16 %v565
        %v1000 = vunpack.c.l.b16 %v566
        %v1001 = vunpack.c.h.b16 %v566
        %v1002 = vunpack.c.l.b16 %v567
        %v1003 = vunpack.c.h.b16 %v567
        %v1004 = vunpack.c.l.b16 %v568
        %v1005 = vunpack.c.h.b16 %v568
        %v1006 = vunpack.c.l.b16 %v569
        %v1007 = vunpack.c.h.b16 %v569
        %v1008 = vunpack.c.l.b16 %v570
        %v1009 = vunpack.c.h.b16 %v570
        %v1010 = vunpack.c.l.b16 %v571
        %v1011 = vunpack.c.h.b16 %v571
        %v1012 = vunpack.c.l.b16 %v572
        %v1013 = vunpack.c.h.b16 %v572
        %v1014 = vunpack.c.l.b16 %v573
        %v1015 = vunpack.c.h.b16 %v573
        %v1016 = vunpack.c.l.b16 %v574
        %v1017 = vunpack.c.h.b16 %v574
        %v1018 = vunpack.c.l.b16 %v575
        %v1019 = vunpack.c.h.b16 %v575
        %v1020 = vunpack.c.l.b16 %v576
        %v1021 = vunpack.c.h.b16 %v576
        %v1022 = vunpack.c.l.b16 %v577
        %v1023 = vunpack.c.h.b16 %v577
        %v1024 = vunpack.c.l.b16 %v578
        %v1025 = vunpack.c.h.b16 %v578
        %v1026 = vunpack.c.l.b16 %v579
        %v1027 = vunpack.c.h.b16 %v579
        %v1028 = vunpack.c.l.b16 %v580
        %v1029 = vunpack.c.h.b16 %v580
        %v1030 = vunpack.c.l.b16 %v581
        %v1031 = vunpack.c.h.b16 %v581
        %v1032 = vunpack.c.l.b16 %v582
        %v1033 = vunpack.c.h.b16 %v582
        %v1034 = vunpack.c.l.b16 %v583
        %v1035 = vunpack.c.h.b16 %v583
        %v1036 = vunpack.c.l.b16 %v584
        %v1037 = vunpack.c.h.b16 %v584
        %v1038 = vunpack.c.l.b16 %v585
        %v1039 = vunpack.c.h.b16 %v585
        %v1040 = vunpack.c.l.b16 %v586
        %v1041 = vunpack.c.h.b16 %v586
        %v1042 = vunpack.c.l.b16 %v587
        %v1043 = vunpack.c.h.b16 %v587
        %v1044 = vunpack.c.l.b16 %v588
        %v1045 = vunpack.c.h.b16 %v588
        %v1046 = vunpack.c.l.b16 %v589
        %v1047 = vunpack.c.h.b16 %v589
        %v1048 = vunpack.c.l.b16 %v590
        %v1049 = vunpack.c.h.b16 %v590
        %v1050 = vunpack.c.l.b16 %v591
        %v1051 = vunpack.c.h.b16 %v591
        %v1052 = vunpack.c.l.b16 %v592
        %v1053 = vunpack.c.h.b16 %v592
        %v1054 = vunpack.c.l.b16 %v593
        %v1055 = vunpack.c.h.b16 %v593
        %v1056 = vunpack.c.l.b16 %v594
        %v1057 = vunpack.c.h.b16 %v594
        %v1058 = vunpack.c.l.b16 %v595
        %v1059 = vunpack.c.h.b16 %v595
        %v1060 = vunpack.c.l.b16 %v596
        %v1061 = vunpack.c.h.b16 %v596
        %v1062 = vunpack.c.l.b16 %v597
        %v1063 = vunpack.c.h.b16 %v597
        %v1064 = vunpack.c.l.b16 %v598
        %v1065 = vunpack.c.h.b16 %v598
        %v1066 = vunpack.c.l.b16 %v599
        %v1067 = vunpack.c.h.b16 %v599
        %v1068 = vunpack.c.l.b16 %v600
        %v1069 = vunpack.c.h.b16 %v600
        %v1070 = vunpack.c.l.b16 %v601
        %v1071 = vunpack.c.h.b16 %v601
        %v1072 = vunpack.c.l.b16 %v602
        %v1073 = vunpack.c.h.b16 %v602
        %v1074 = vunpack.c.l.b16 %v603
        %v1075 = vunpack.c.h.b16 %v603
        %v1076 = vunpack.c.l.b16 %v604
        %v1077 = vunpack.c.h.b16 %v604
        %v1078 = vunpack.c.l.b16 %v605
        %v1079 = vunpack.c.h.b16 %v605
        %v1080 = vunpack.c.l.b16 %v606
        %v1081 = vunpack.c.h.b16 %v606
        %v1082 = vunpack.c.l.b16 %v607
        %v1083 = vunpack.c.h.b16 %v607
        %v1084 = vunpack.c.l.b16 %v608
        %v1085 = vunpack.c.h.b16 %v608
        %v1086 = vunpack.c.l.b16 %v609
        %v1087 = vunpack.c.h.b16 %v609
        %v1088 = vunpack.c.l.b16 %v610
        %v1089 = vunpack.c.h.b16 %v610
        %v1090 = vunpack.c.l.b16 %v611
        %v1091 = vunpack.c.h.b16 %v611
        %v1092 = vunpack.c.l.b16 %v612
        %v1093 = vunpack.c.h.b16 %v612
        %v1094 = vunpack.c.l.b16 %v613
        %v1095 = vunpack.c.h.b16 %v613
        %v1096 = vunpack.c.l.b16 %v614
        %v1097 = vunpack.c.h.b16 %v614
        %v1098 = vunpack.c.l.b16 %v615
        %v1099 = vunpack.c.h.b16 %v615
        %v1100 = vunpack.c.l.b16 %v616
        %v1101 = vunpack.c.h.b16 %v616
        %v1102 = vunpack.c.l.b16 %v617
        %v1103 = vunpack.c.h.b16 %v617
        %v1104 = vunpack.c.l.b16 %v618
        %v1105 = vunpack.c.h.b16 %v618
        %v1106 = vunpack.c.l.b16 %v619
        %v1107 = vunpack.c.h.b16 %v619
        %v1108 = vunpack.c.l.b16 %v620
        %v1109 = vunpack.c.h.b16 %v620
        %v1110 = vunpack.c.l.b16 %v621
        %v1111 = vunpack.c.h.b16 %v621
        %v1112 = vunpack.c.l.b16 %v622
        %v1113 = vunpack.c.h.b16 %v622
        %v1114 = vunpack.c.l.b16 %v623
        %v1115 = vunpack.c.h.b16 %v623
        %v1116 = vunpack.c.l.b16 %v624
        %v1117 = vunpack.c.h.b16 %v624
        %v1118 = vunpack.c.l.b16 %v625
        %v1119 = vunpack.c.h.b16 %v625
        %v1120 = vunpack.c.l.b16 %v626
        %v1121 = vunpack.c.h.b16 %v626
        %v1122 = vunpack.c.l.b16 %v627
        %v1123 = vunpack.c.h.b16 %v627
        %v1124 = vunpack.c.l.b16 %v628
        %v1125 = vunpack.c.h.b16 %v628
        %v1126 = vunpack.c.l.b16 %v629
        %v1127 = vunpack.c.h.b16 %v629
        %v1128 = vunpack.c.l.b16 %v630
        %v1129 = vunpack.c.h.b16 %v630
        %v1130 = vunpack.c.l.b16 %v631
        %v1131 = vunpack.c.h.b16 %v631
        %v1132 = vunpack.c.l.b16 %v632
        %v1133 = vunpack.c.h.b16 %v632
        %v1134 = vunpack.c.l.b16 %v633
        %v1135 = vunpack.c.h.b16 %v633
        %v1136 = vunpack.c.l.b16 %v634
        %v1137 = vunpack.c.h.b16 %v634
        %v1138 = vunpack.c.l.b16 %v635
        %v1139 = vunpack.c.h.b16 %v635
        %v1140 = vunpack.c.l.b16 %v636
        %v1141 = vunpack.c.h.b16 %v636
        %v1142 = vunpack.c.l.b16 %v637
        %v1143 = vunpack.c.h.b16 %v637
        %v1144 = vunpack.c.l.b16 %v638
        %v1145 = vunpack.c.h.b16 %v638
        %v1146 = vunpack.c.l.b16 %v639
        %v1147 = vunpack.c.h.b16 %v639
        %v1148 = vunpack.c.l.b16 %v640
        %v1149 = vunpack.c.h.b16 %v640
        %v1150 = vunpack.c.l.b16 %v641
        %v1151 = vunpack.c.h.b16 %v641
        %v1152 = vunpack.c.l.b16 %v642
        %v1153 = vunpack.c.h.b16 %v642
        %v1154 = vunpack.c.l.b16 %v643
        %v1155 = vunpack.c.h.b16 %v643
        %v1156 = vunpack.c.l.b16 %v644
        %v1157 = vunpack.c.h.b16 %v644
        %v1158 = vunpack.c.l.b16 %v645
        %v1159 = vunpack.c.h.b16 %v645
        %v1160 = vunpack.c.l.b16 %v646
        %v1161 = vunpack.c.h.b16 %v646
        %v1162 = vunpack.c.l.b16 %v647
        %v1163 = vunpack.c.h.b16 %v647
        %v1164 = vunpack.c.l.b16 %v648
        %v1165 = vunpack.c.h.b16 %v648
        %v1166 = vunpack.c.l.b16 %v649
        %v1167 = vunpack.c.h.b16 %v649
        %v1168 = vunpack.c.l.b16 %v650
        %v1169 = vunpack.c.h.b16 %v650
        %v1170 = vunpack.c.l.b16 %v651
        %v1171 = vunpack.c.h.b16 %v651
        %v1172 = vunpack.c.l.b16 %v652
        %v1173 = vunpack.c.h.b16 %v652
        %v1174 = vunpack.c.l.b16 %v653
        %v1175 = vunpack.c.h.b16 %v653
        %v1176 = vunpack.c.l.b16 %v654
        %v1177 = vunpack.c.h.b16 %v654
        %v1178 = vunpack.c.l.b16 %v655
        %v1179 = vunpack.c.h.b16 %v655
        %v1180 = vunpack.c.l.b16 %v656
        %v1181 = vunpack.c.h.b16 %v656
        %v1182 = vunpack.c.l.b16 %v657
        %v1183 = vunpack.c.h.b16 %v657
        %v1184 = vunpack.c.l.b16 %v658
        %v1185 = vunpack.c.h.b16 %v658
        %v1186 = vunpack.c.l.b16 %v659
        %v1187 = vunpack.c.h.b16 %v659
        %v1188 = vunpack.c.l.b16 %v660
        %v1189 = vunpack.c.h.b16 %v660
        %v1190 = vunpack.c.l.b16 %v661
        %v1191 = vunpack.c.h.b16 %v661
        %v1192 = vunpack.c.l.b16 %v662
        %v1193 = vunpack.c.h.b16 %v662
        %v1194 = vunpack.c.l.b16 %v663
        %v1195 = vunpack.c.h.b16 %v663
        %v1196 = vunpack.c.l.b16 %v664
        %v1197 = vunpack.c.h.b16 %v664
        %v1198 = vunpack.c.l.b16 %v665
        %v1199 = vunpack.c.h.b16 %v665
        %v1200 = vunpack.c.l.b16 %v666
        %v1201 = vunpack.c.h.b16 %v666
        %v1202 = vunpack.c.l.b16 %v667
        %v1203 = vunpack.c.h.b16 %v667
        %v1204 = vunpack.c.l.b16 %v668
        %v1205 = vunpack.c.h.b16 %v668
        %v1206 = vunpack.c.l.b16 %v669
        %v1207 = vunpack.c.h.b16 %v669
        %v1208 = vunpack.c.l.b16 %v670
        %v1209 = vunpack.c.h.b16 %v670
        %v1210 = vunpack.c.l.b16 %v671
        %v1211 = vunpack.c.h.b16 %v671
        %v1212 = vunpack.c.l.b16 %v672
        %v1213 = vunpack.c.h.b16 %v672
        %v1214 = vunpack.c.l.b16 %v673
        %v1215 = vunpack.c.h.b16 %v673
        %v1216 = vunpack.c.l.b16 %v674
        %v1217 = vunpack.c.h.b16 %v674
        %v1218 = vunpack.c.l.b16 %v675
        %v1219 = vunpack.c.h.b16 %v675
        %v1220 = vunpack.c.l.b16 %v676
        %v1221 = vunpack.c.h.b16 %v676
        %v1222 = vunpack.c.l.b16 %v677
        %v1223 = vunpack.c.h.b16 %v677
        %v1224 = vpack.c.b16 %v880, %v872
        %v1225 = vpack.c.b16 %v881, %v873
        %v1226 = vpack.c.b16 %v882, %v874
        %v1227 = vpack.c.b16 %v883, %v875
        %v1228 = vpack.c.b16 %v884, %v876
        %v1229 = vpack.c.b16 %v885, %v877
        %v1230 = vpack.c.b16 %v886, %v878
        %v1231 = vpack.c.b16 %v887, %v879
        %v1232 = vpack.c.b16 %v896, %v888
        %v1233 = vpack.c.b16 %v897, %v889
        %v1234 = vpack.c.b16 %v898, %v890
        %v1235 = vpack.c.b16 %v899, %v891
        %v1236 = vpack.c.b16 %v900, %v892
        %v1237 = vpack.c.b16 %v901, %v893
        %v1238 = vpack.c.b16 %v902, %v894
        %v1239 = vpack.c.b16 %v903, %v895
        %v1240 = vpack.c.b16 %v912, %v904
        %v1241 = vpack.c.b16 %v913, %v905
        %v1242 = vpack.c.b16 %v914, %v906
        %v1243 = vpack.c.b16 %v915, %v907
        %v1244 = vpack.c.b16 %v916, %v908
        %v1245 = vpack.c.b16 %v917, %v909
        %v1246 = vpack.c.b16 %v918, %v910
        %v1247 = vpack.c.b16 %v919, %v911
        %v1248 = vpack.c.b16 %v928, %v920
        %v1249 = vpack.c.b16 %v929, %v921
        %v1250 = vpack.c.b16 %v930, %v922
        %v1251 = vpack.c.b16 %v931, %v923
        %v1252 = vpack.c.b16 %v932, %v924
        %v1253 = vpack.c.b16 %v933, %v925
        %v1254 = vpack.c.b16 %v934, %v926
        %v1255 = vpack.c.b16 %v935, %v927
        %v1256 = vpack.c.b16 %v944, %v936
        %v1257 = vpack.c.b16 %v945, %v937
        %v1258 = vpack.c.b16 %v946, %v938
        %v1259 = vpack.c.b16 %v947, %v939
        %v1260 = vpack.c.b16 %v948, %v940
        %v1261 = vpack.c.b16 %v949, %v941
        %v1262 = vpack.c.b16 %v950, %v942
        %v1263 = vpack.c.b16 %v951, %v943
        %v1264 = vpack.c.b16 %v960, %v952
        %v1265 = vpack.c.b16 %v961, %v953
        %v1266 = vpack.c.b16 %v962, %v954
        %v1267 = vpack.c.b16 %v963, %v955
        %v1268 = vpack.c.b16 %v964, %v956
        %v1269 = vpack.c.b16 %v965, %v957
        %v1270 = vpack.c.b16 %v966, %v958
        %v1271 = vpack.c.b16 %v967, %v959
        %v1272 = vpack.c.b16 %v976, %v968
        %v1273 = vpack.c.b16 %v977, %v969
        %v1274 = vpack.c.b16 %v978, %v970
        %v1275 = vpack.c.b16 %v979, %v971
        %v1276 = vpack.c.b16 %v980, %v972
        %v1277 = vpack.c.b16 %v981, %v973
        %v1278 = vpack.c.b16 %v982, %v974
        %v1279 = vpack.c.b16 %v983, %v975
        %v1280 = vpack.c.b16 %v992, %v984
        %v1281 = vpack.c.b16 %v993, %v985
        %v1282 = vpack.c.b16 %v994, %v986
        %v1283 = vpack.c.b16 %v995, %v987
        %v1284 = vpack.c.b16 %v996, %v988
        %v1285 = vpack.c.b16 %v997, %v989
        %v1286 = vpack.c.b16 %v998, %v990
        %v1287 = vpack.c.b16 %v999, %v991
        %v1288 = vpack.c.b16 %v1008, %v1000
        %v1289 = vpack.c.b16 %v1009, %v1001
        %v1290 = vpack.c.b16 %v1010, %v1002
        %v1291 = vpack.c.b16 %v1011, %v1003
        %v1292 = vpack.c.b16 %v1012, %v1004
        %v1293 = vpack.c.b16 %v1013, %v1005
        %v1294 = vpack.c.b16 %v1014, %v1006
        %v1295 = vpack.c.b16 %v1015, %v1007
        %v1296 = vpack.c.b16 %v1024, %v1016
        %v1297 = vpack.c.b16 %v1025, %v1017
        %v1298 = vpack.c.b16 %v1026, %v1018
        %v1299 = vpack.c.b16 %v1027, %v1019
        %v1300 = vpack.c.b16 %v1028, %v1020
        %v1301 = vpack.c.b16 %v1029, %v1021
        %v1302 = vpack.c.b16 %v1030, %v1022
        %v1303 = vpack.c.b16 %v1031, %v1023
        %v1304 = vpack.c.b16 %v1040, %v1032
        %v1305 = vpack.c.b16 %v1041, %v1033
        %v1306 = vpack.c.b16 %v1042, %v1034
        %v1307 = vpack.c.b16 %v1043, %v1035
        %v1308 = vpack.c.b16 %v1044, %v1036
        %v1309 = vpack.c.b16 %v1045, %v1037
        %v1310 = vpack.c.b16 %v1046, %v1038
        %v1311 = vpack.c.b16 %v1047, %v1039
        %v1312 = vpack.c.b16 %v1056, %v1048
        %v1313 = vpack.c.b16 %v1057, %v1049
        %v1314 = vpack.c.b16 %v1058, %v1050
        %v1315 = vpack.c.b16 %v1059, %v1051
        %v1316 = vpack.c.b16 %v1060, %v1052
        %v1317 = vpack.c.b16 %v1061, %v1053
        %v1318 = vpack.c.b16 %v1062, %v1054
        %v1319 = vpack.c.b16 %v1063, %v1055
        %v1320 = vpack.c.b16 %v1072, %v1064
        %v1321 = vpack.c.b16 %v1073, %v1065
        %v1322 = vpack.c.b16 %v1074, %v1066
        %v1323 = vpack.c.b16 %v1075, %v1067
        %v1324 = vpack.c.b16 %v1076, %v1068
        %v1325 = vpack.c.b16 %v1077, %v1069
        %v1326 = vpack.c.b16 %v1078, %v1070
        %v1327 = vpack.c.b16 %v1079, %v1071
        %v1328 = vpack.c.b16 %v1088, %v1080
        %v1329 = vpack.c.b16 %v1089, %v1081
        %v1330 = vpack.c.b16 %v1090, %v1082
        %v1331 = vpack.c.b16 %v1091, %v1083
        %v1332 = vpack.c.b16 %v1092, %v1084
        %v1333 = vpack.c.b16 %v1093, %v1085
        %v1334 = vpack.c.b16 %v1094, %v1086
        %v1335 = vpack.c.b16 %v1095, %v1087
        %v1336 = vpack.c.b16 %v1104, %v1096
        %v1337 = vpack.c.b16 %v1105, %v1097
        %v1338 = vpack.c.b16 %v1106, %v1098
        %v1339 = vpack.c.b16 %v1107, %v1099
        %v1340 = vpack.c.b16 %v1108, %v1100
        %v1341 = vpack.c.b16 %v1109, %v1101
        %v1342 = vpack.c.b16 %v1110, %v1102
        %v1343 = vpack.c.b16 %v1111, %v1103
        %v1344 = vpack.c.b16 %v1120, %v1112
        %v1345 = vpack.c.b16 %v1121, %v1113
        %v1346 = vpack.c.b16 %v1122, %v1114
        %v1347 = vpack.c.b16 %v1123, %v1115
        %v1348 = vpack.c.b16 %v1124, %v1116
        %v1349 = vpack.c.b16 %v1125, %v1117
        %v1350 = vpack.c.b16 %v1126, %v1118
        %v1351 = vpack.c.b16 %v1127, %v1119
        %v1352 = vpack.c.b16 %v1136, %v1128
        %v1353 = vpack.c.b16 %v1137, %v1129
        %v1354 = vpack.c.b16 %v1138, %v1130
        %v1355 = vpack.c.b16 %v1139, %v1131
        %v1356 = vpack.c.b16 %v1140, %v1132
        %v1357 = vpack.c.b16 %v1141, %v1133
        %v1358 = vpack.c.b16 %v1142, %v1134
        %v1359 = vpack.c.b16 %v1143, %v1135
        %v1360 = vpack.c.b16 %v1152, %v1144
        %v1361 = vpack.c.b16 %v1153, %v1145
        %v1362 = vpack.c.b16 %v1154, %v1146
        %v1363 = vpack.c.b16 %v1155, %v1147
        %v1364 = vpack.c.b16 %v1156, %v1148
        %v1365 = vpack.c.b16 %v1157, %v1149
        %v1366 = vpack.c.b16 %v1158, %v1150
        %v1367 = vpack.c.b16 %v1159, %v1151
        %v1368 = vpack.c.b16 %v1168, %v1160
        %v1369 = vpack.c.b16 %v1169, %v1161
        %v1370 = vpack.c.b16 %v1170, %v1162
        %v1371 = vpack.c.b16 %v1171, %v1163
        %v1372 = vpack.c.b16 %v1172, %v1164
        %v1373 = vpack.c.b16 %v1173, %v1165
        %v1374 = vpack.c.b16 %v1174, %v1166
        %v1375 = vpack.c.b16 %v1175, %v1167
        %v1376 = vpack.c.b16 %v1184, %v1176
        %v1377 = vpack.c.b16 %v1185, %v1177
        %v1378 = vpack.c.b16 %v1186, %v1178
        %v1379 = vpack.c.b16 %v1187, %v1179
        %v1380 = vpack.c.b16 %v1188, %v1180
        %v1381 = vpack.c.b16 %v1189, %v1181
        %v1382 = vpack.c.b16 %v1190, %v1182
        %v1383 = vpack.c.b16 %v1191, %v1183
        %v1384 = vpack.c.b16 %v1200, %v1192
        %v1385 = vpack.c.b16 %v1201, %v1193
        %v1386 = vpack.c.b16 %v1202, %v1194
        %v1387 = vpack.c.b16 %v1203, %v1195
        %v1388 = vpack.c.b16 %v1204, %v1196
        %v1389 = vpack.c.b16 %v1205, %v1197
        %v1390 = vpack.c.b16 %v1206, %v1198
        %v1391 = vpack.c.b16 %v1207, %v1199
        %v1392 = vpack.c.b16 %v1216, %v1208
        %v1393 = vpack.c.b16 %v1217, %v1209
        %v1394 = vpack.c.b16 %v1218, %v1210
        %v1395 = vpack.c.b16 %v1219, %v1211
        %v1396 = vpack.c.b16 %v1220, %v1212
        %v1397 = vpack.c.b16 %v1221, %v1213
        %v1398 = vpack.c.b16 %v1222, %v1214
        %v1399 = vpack.c.b16 %v1223, %v1215
        %vm1568 = vcmask 769024
        %v1570 = vsel %vm1568, %v492, 0
        %v1573 = vsel %vm1568, %v495, 0
        %v1576 = vsel %vm1568, %v498, 0
        %v1579 = vsel %vm1568, %v501, 0
        %vm1581 = vcmask 1046528
        %v1583 = vsel %vm1581, %v1392, 0
        %v1586 = vsel %vm1581, %v1393, 0
        %v1589 = vsel %vm1581, %v1394, 0
        %v1592 = vsel %vm1581, %v1395, 0
        %v1595 = vsel %vm1581, %v1396, 0
        %v1598 = vsel %vm1581, %v1397, 0
        %v1601 = vsel %vm1581, %v1398, 0
        %v1604 = vsel %vm1581, %v1399, 0
        %1606 = vmatpush.bf16.msra.mxu0 %v1280
        %1607 = vmatpush.bf16.msra.mxu0 %v1272
        %1608 = vmatpush.bf16.msra.mxu0 %v1264
        %1609 = vmatpush.bf16.msra.mxu0 %v1256
        %1610 = vmatpush.bf16.msra.mxu0 %v1248
        %1611 = vmatpush.bf16.msra.mxu0 %v1240
        %1612 = vmatpush.bf16.msra.mxu0 %v1232
        %1613 = vmatpush.bf16.msra.mxu0 %v1224
        %1614 = vmatmul.bf16.gmra.mxu0 %v490
        %v1615 = vpop.f32.mrf.mxu0
        %v1616 = vadd.f32 %v680, %v1615
        %v1617 = vpop.f32.mrf.mxu0
        %v1618 = vadd.f32 %v680, %v1617
        %1619 = vmatmul.bf16.gmra.mxu0 %v493
        %v1620 = vpop.f32.mrf.mxu0
        %v1621 = vadd.f32 %v680, %v1620
        %v1622 = vpop.f32.mrf.mxu0
        %v1623 = vadd.f32 %v680, %v1622
        %1624 = vmatmul.bf16.gmra.mxu0 %v496
        %v1625 = vpop.f32.mrf.mxu0
        %v1626 = vadd.f32 %v680, %v1625
        %v1627 = vpop.f32.mrf.mxu0
        %v1628 = vadd.f32 %v680, %v1627
        %1629 = vmatmul.bf16.gmra.mxu0 %v499
        %v1630 = vpop.f32.mrf.mxu0
        %v1631 = vadd.f32 %v680, %v1630
        %v1632 = vpop.f32.mrf.mxu0
        %1633 = vdwg.mxu0
        %1634 = vmatpush.bf16.msra.mxu0 %v1344
        %1635 = vmatpush.bf16.msra.mxu0 %v1336
        %1636 = vmatpush.bf16.msra.mxu0 %v1328
        %1637 = vmatpush.bf16.msra.mxu0 %v1320
        %1638 = vmatpush.bf16.msra.mxu0 %v1312
        %1639 = vmatpush.bf16.msra.mxu0 %v1304
        %1640 = vmatpush.bf16.msra.mxu0 %v1296
        %1641 = vmatpush.bf16.msra.mxu0 %v1288
        %1642 = vmatmul.bf16.gmra.mxu0 %v491
        %v1643 = vpop.f32.mrf.mxu0
        %v1644 = vadd.f32 %v1616, %v1643
        %v1645 = vpop.f32.mrf.mxu0
        %v1646 = vadd.f32 %v1618, %v1645
        %1647 = vmatmul.bf16.gmra.mxu0 %v494
        %v1648 = vpop.f32.mrf.mxu0
        %v1649 = vadd.f32 %v1621, %v1648
        %v1650 = vpop.f32.mrf.mxu0
        %v1651 = vadd.f32 %v1623, %v1650
        %1652 = vmatmul.bf16.gmra.mxu0 %v497
        %v1653 = vpop.f32.mrf.mxu0
        %v1654 = vadd.f32 %v1626, %v1653
        %v1655 = vpop.f32.mrf.mxu0
        %v1656 = vadd.f32 %v1628, %v1655
        %1657 = vmatmul.bf16.gmra.mxu0 %v500
        %v1658 = vpop.f32.mrf.mxu0
        %v1659 = vadd.f32 %v1631, %v1658
        %v1660 = vpop.f32.mrf.mxu0
        %1661 = vdwg.mxu0
        %1662 = vmatpush.bf16.msra.mxu0 0
        %1663 = vmatpush.bf16.msra.mxu0 0
        %1664 = vmatpush.bf16.msra.mxu0 %v1583
        %1665 = vmatpush.bf16.msra.mxu0 %v1384
        %1666 = vmatpush.bf16.msra.mxu0 %v1376
        %1667 = vmatpush.bf16.msra.mxu0 %v1368
        %1668 = vmatpush.bf16.msra.mxu0 %v1360
        %1669 = vmatpush.bf16.msra.mxu0 %v1352
        %1670 = vmatmul.bf16.gmra.mxu0 %v1570
        %v1671 = vpop.f32.mrf.mxu0
        %v1672 = vadd.f32 %v1644, %v1671
        %v1673 = vpop.f32.mrf.mxu0
        %v1674 = vadd.f32 %v1646, %v1673
        %1675 = vmatmul.bf16.gmra.mxu0 %v1573
        %v1676 = vpop.f32.mrf.mxu0
        %v1677 = vadd.f32 %v1649, %v1676
        %v1678 = vpop.f32.mrf.mxu0
        %v1679 = vadd.f32 %v1651, %v1678
        %1680 = vmatmul.bf16.gmra.mxu0 %v1576
        %v1681 = vpop.f32.mrf.mxu0
        %v1682 = vadd.f32 %v1654, %v1681
        %v1683 = vpop.f32.mrf.mxu0
        %v1684 = vadd.f32 %v1656, %v1683
        %1685 = vmatmul.bf16.gmra.mxu0 %v1579
        %v1686 = vpop.f32.mrf.mxu0
        %v1687 = vadd.f32 %v1659, %v1686
        %v1688 = vpop.f32.mrf.mxu0
        %1689 = vdwg.mxu0
        %1690 = vmatpush.bf16.msra.mxu0 %v1281
        %1691 = vmatpush.bf16.msra.mxu0 %v1273
        %1692 = vmatpush.bf16.msra.mxu0 %v1265
        %1693 = vmatpush.bf16.msra.mxu0 %v1257
        %1694 = vmatpush.bf16.msra.mxu0 %v1249
        %1695 = vmatpush.bf16.msra.mxu0 %v1241
        %1696 = vmatpush.bf16.msra.mxu0 %v1233
        %1697 = vmatpush.bf16.msra.mxu0 %v1225
        %1698 = vmatmul.bf16.gmra.mxu0 %v490
        %v1699 = vpop.f32.mrf.mxu0
        %v1700 = vadd.f32 %v681, %v1699
        %v1701 = vpop.f32.mrf.mxu0
        %v1702 = vadd.f32 %v681, %v1701
        %1703 = vmatmul.bf16.gmra.mxu0 %v493
        %v1704 = vpop.f32.mrf.mxu0
        %v1705 = vadd.f32 %v681, %v1704
        %v1706 = vpop.f32.mrf.mxu0
        %v1707 = vadd.f32 %v681, %v1706
        %1708 = vmatmul.bf16.gmra.mxu0 %v496
        %v1709 = vpop.f32.mrf.mxu0
        %v1710 = vadd.f32 %v681, %v1709
        %v1711 = vpop.f32.mrf.mxu0
        %v1712 = vadd.f32 %v681, %v1711
        %1713 = vmatmul.bf16.gmra.mxu0 %v499
        %v1714 = vpop.f32.mrf.mxu0
        %v1715 = vadd.f32 %v681, %v1714
        %v1716 = vpop.f32.mrf.mxu0
        %1717 = vdwg.mxu0
        %1718 = vmatpush.bf16.msra.mxu0 %v1345
        %1719 = vmatpush.bf16.msra.mxu0 %v1337
        %1720 = vmatpush.bf16.msra.mxu0 %v1329
        %1721 = vmatpush.bf16.msra.mxu0 %v1321
        %1722 = vmatpush.bf16.msra.mxu0 %v1313
        %1723 = vmatpush.bf16.msra.mxu0 %v1305
        %1724 = vmatpush.bf16.msra.mxu0 %v1297
        %1725 = vmatpush.bf16.msra.mxu0 %v1289
        %1726 = vmatmul.bf16.gmra.mxu0 %v491
        %v1727 = vpop.f32.mrf.mxu0
        %v1728 = vadd.f32 %v1700, %v1727
        %v1729 = vpop.f32.mrf.mxu0
        %v1730 = vadd.f32 %v1702, %v1729
        %1731 = vmatmul.bf16.gmra.mxu0 %v494
        %v1732 = vpop.f32.mrf.mxu0
        %v1733 = vadd.f32 %v1705, %v1732
        %v1734 = vpop.f32.mrf.mxu0
        %v1735 = vadd.f32 %v1707, %v1734
        %1736 = vmatmul.bf16.gmra.mxu0 %v497
        %v1737 = vpop.f32.mrf.mxu0
        %v1738 = vadd.f32 %v1710, %v1737
        %v1739 = vpop.f32.mrf.mxu0
        %v1740 = vadd.f32 %v1712, %v1739
        %1741 = vmatmul.bf16.gmra.mxu0 %v500
        %v1742 = vpop.f32.mrf.mxu0
        %v1743 = vadd.f32 %v1715, %v1742
        %v1744 = vpop.f32.mrf.mxu0
        %1745 = vdwg.mxu0
        %1746 = vmatpush.bf16.msra.mxu0 0
        %1747 = vmatpush.bf16.msra.mxu0 0
        %1748 = vmatpush.bf16.msra.mxu0 %v1586
        %1749 = vmatpush.bf16.msra.mxu0 %v1385
        %1750 = vmatpush.bf16.msra.mxu0 %v1377
        %1751 = vmatpush.bf16.msra.mxu0 %v1369
        %1752 = vmatpush.bf16.msra.mxu0 %v1361
        %1753 = vmatpush.bf16.msra.mxu0 %v1353
        %1754 = vmatmul.bf16.gmra.mxu0 %v1570
        %v1755 = vpop.f32.mrf.mxu0
        %v1756 = vadd.f32 %v1728, %v1755
        %v1757 = vpop.f32.mrf.mxu0
        %v1758 = vadd.f32 %v1730, %v1757
        %1759 = vmatmul.bf16.gmra.mxu0 %v1573
        %v1760 = vpop.f32.mrf.mxu0
        %v1761 = vadd.f32 %v1733, %v1760
        %v1762 = vpop.f32.mrf.mxu0
        %v1763 = vadd.f32 %v1735, %v1762
        %1764 = vmatmul.bf16.gmra.mxu0 %v1576
        %v1765 = vpop.f32.mrf.mxu0
        %v1766 = vadd.f32 %v1738, %v1765
        %v1767 = vpop.f32.mrf.mxu0
        %v1768 = vadd.f32 %v1740, %v1767
        %1769 = vmatmul.bf16.gmra.mxu0 %v1579
        %v1770 = vpop.f32.mrf.mxu0
        %v1771 = vadd.f32 %v1743, %v1770
        %v1772 = vpop.f32.mrf.mxu0
        %1773 = vdwg.mxu0
        %1774 = vmatpush.bf16.msra.mxu0 %v1282
        %1775 = vmatpush.bf16.msra.mxu0 %v1274
        %1776 = vmatpush.bf16.msra.mxu0 %v1266
        %1777 = vmatpush.bf16.msra.mxu0 %v1258
        %1778 = vmatpush.bf16.msra.mxu0 %v1250
        %1779 = vmatpush.bf16.msra.mxu0 %v1242
        %1780 = vmatpush.bf16.msra.mxu0 %v1234
        %1781 = vmatpush.bf16.msra.mxu0 %v1226
        %1782 = vmatmul.bf16.gmra.mxu0 %v490
        %v1783 = vpop.f32.mrf.mxu0
        %v1784 = vadd.f32 %v682, %v1783
        %v1785 = vpop.f32.mrf.mxu0
        %v1786 = vadd.f32 %v682, %v1785
        %1787 = vmatmul.bf16.gmra.mxu0 %v493
        %v1788 = vpop.f32.mrf.mxu0
        %v1789 = vadd.f32 %v682, %v1788
        %v1790 = vpop.f32.mrf.mxu0
        %v1791 = vadd.f32 %v682, %v1790
        %1792 = vmatmul.bf16.gmra.mxu0 %v496
        %v1793 = vpop.f32.mrf.mxu0
        %v1794 = vadd.f32 %v682, %v1793
        %v1795 = vpop.f32.mrf.mxu0
        %v1796 = vadd.f32 %v682, %v1795
        %1797 = vmatmul.bf16.gmra.mxu0 %v499
        %v1798 = vpop.f32.mrf.mxu0
        %v1799 = vadd.f32 %v682, %v1798
        %v1800 = vpop.f32.mrf.mxu0
        %1801 = vdwg.mxu0
        %1802 = vmatpush.bf16.msra.mxu0 %v1346
        %1803 = vmatpush.bf16.msra.mxu0 %v1338
        %1804 = vmatpush.bf16.msra.mxu0 %v1330
        %1805 = vmatpush.bf16.msra.mxu0 %v1322
        %1806 = vmatpush.bf16.msra.mxu0 %v1314
        %1807 = vmatpush.bf16.msra.mxu0 %v1306
        %1808 = vmatpush.bf16.msra.mxu0 %v1298
        %1809 = vmatpush.bf16.msra.mxu0 %v1290
        %1810 = vmatmul.bf16.gmra.mxu0 %v491
        %v1811 = vpop.f32.mrf.mxu0
        %v1812 = vadd.f32 %v1784, %v1811
        %v1813 = vpop.f32.mrf.mxu0
        %v1814 = vadd.f32 %v1786, %v1813
        %1815 = vmatmul.bf16.gmra.mxu0 %v494
        %v1816 = vpop.f32.mrf.mxu0
        %v1817 = vadd.f32 %v1789, %v1816
        %v1818 = vpop.f32.mrf.mxu0
        %v1819 = vadd.f32 %v1791, %v1818
        %1820 = vmatmul.bf16.gmra.mxu0 %v497
        %v1821 = vpop.f32.mrf.mxu0
        %v1822 = vadd.f32 %v1794, %v1821
        %v1823 = vpop.f32.mrf.mxu0
        %v1824 = vadd.f32 %v1796, %v1823
        %1825 = vmatmul.bf16.gmra.mxu0 %v500
        %v1826 = vpop.f32.mrf.mxu0
        %v1827 = vadd.f32 %v1799, %v1826
        %v1828 = vpop.f32.mrf.mxu0
        %1829 = vdwg.mxu0
        %1830 = vmatpush.bf16.msra.mxu0 0
        %1831 = vmatpush.bf16.msra.mxu0 0
        %1832 = vmatpush.bf16.msra.mxu0 %v1589
        %1833 = vmatpush.bf16.msra.mxu0 %v1386
        %1834 = vmatpush.bf16.msra.mxu0 %v1378
        %1835 = vmatpush.bf16.msra.mxu0 %v1370
        %1836 = vmatpush.bf16.msra.mxu0 %v1362
        %1837 = vmatpush.bf16.msra.mxu0 %v1354
        %1838 = vmatmul.bf16.gmra.mxu0 %v1570
        %v1839 = vpop.f32.mrf.mxu0
        %v1840 = vadd.f32 %v1812, %v1839
        %v1841 = vpop.f32.mrf.mxu0
        %v1842 = vadd.f32 %v1814, %v1841
        %1843 = vmatmul.bf16.gmra.mxu0 %v1573
        %v1844 = vpop.f32.mrf.mxu0
        %v1845 = vadd.f32 %v1817, %v1844
        %v1846 = vpop.f32.mrf.mxu0
        %v1847 = vadd.f32 %v1819, %v1846
        %1848 = vmatmul.bf16.gmra.mxu0 %v1576
        %v1849 = vpop.f32.mrf.mxu0
        %v1850 = vadd.f32 %v1822, %v1849
        %v1851 = vpop.f32.mrf.mxu0
        %v1852 = vadd.f32 %v1824, %v1851
        %1853 = vmatmul.bf16.gmra.mxu0 %v1579
        %v1854 = vpop.f32.mrf.mxu0
        %v1855 = vadd.f32 %v1827, %v1854
        %v1856 = vpop.f32.mrf.mxu0
        %1857 = vdwg.mxu0
        %1858 = vmatpush.bf16.msra.mxu0 %v1283
        %1859 = vmatpush.bf16.msra.mxu0 %v1275
        %1860 = vmatpush.bf16.msra.mxu0 %v1267
        %1861 = vmatpush.bf16.msra.mxu0 %v1259
        %1862 = vmatpush.bf16.msra.mxu0 %v1251
        %1863 = vmatpush.bf16.msra.mxu0 %v1243
        %1864 = vmatpush.bf16.msra.mxu0 %v1235
        %1865 = vmatpush.bf16.msra.mxu0 %v1227
        %1866 = vmatmul.bf16.gmra.mxu0 %v490
        %v1867 = vpop.f32.mrf.mxu0
        %v1868 = vadd.f32 %v683, %v1867
        %v1869 = vpop.f32.mrf.mxu0
        %v1870 = vadd.f32 %v683, %v1869
        %1871 = vmatmul.bf16.gmra.mxu0 %v493
        %v1872 = vpop.f32.mrf.mxu0
        %v1873 = vadd.f32 %v683, %v1872
        %v1874 = vpop.f32.mrf.mxu0
        %v1875 = vadd.f32 %v683, %v1874
        %1876 = vmatmul.bf16.gmra.mxu0 %v496
        %v1877 = vpop.f32.mrf.mxu0
        %v1878 = vadd.f32 %v683, %v1877
        %v1879 = vpop.f32.mrf.mxu0
        %v1880 = vadd.f32 %v683, %v1879
        %1881 = vmatmul.bf16.gmra.mxu0 %v499
        %v1882 = vpop.f32.mrf.mxu0
        %v1883 = vadd.f32 %v683, %v1882
        %v1884 = vpop.f32.mrf.mxu0
        %1885 = vdwg.mxu0
        %1886 = vmatpush.bf16.msra.mxu0 %v1347
        %1887 = vmatpush.bf16.msra.mxu0 %v1339
        %1888 = vmatpush.bf16.msra.mxu0 %v1331
        %1889 = vmatpush.bf16.msra.mxu0 %v1323
        %1890 = vmatpush.bf16.msra.mxu0 %v1315
        %1891 = vmatpush.bf16.msra.mxu0 %v1307
        %1892 = vmatpush.bf16.msra.mxu0 %v1299
        %1893 = vmatpush.bf16.msra.mxu0 %v1291
        %1894 = vmatmul.bf16.gmra.mxu0 %v491
        %v1895 = vpop.f32.mrf.mxu0
        %v1896 = vadd.f32 %v1868, %v1895
        %v1897 = vpop.f32.mrf.mxu0
        %v1898 = vadd.f32 %v1870, %v1897
        %1899 = vmatmul.bf16.gmra.mxu0 %v494
        %v1900 = vpop.f32.mrf.mxu0
        %v1901 = vadd.f32 %v1873, %v1900
        %v1902 = vpop.f32.mrf.mxu0
        %v1903 = vadd.f32 %v1875, %v1902
        %1904 = vmatmul.bf16.gmra.mxu0 %v497
        %v1905 = vpop.f32.mrf.mxu0
        %v1906 = vadd.f32 %v1878, %v1905
        %v1907 = vpop.f32.mrf.mxu0
        %v1908 = vadd.f32 %v1880, %v1907
        %1909 = vmatmul.bf16.gmra.mxu0 %v500
        %v1910 = vpop.f32.mrf.mxu0
        %v1911 = vadd.f32 %v1883, %v1910
        %v1912 = vpop.f32.mrf.mxu0
        %1913 = vdwg.mxu0
        %1914 = vmatpush.bf16.msra.mxu0 0
        %1915 = vmatpush.bf16.msra.mxu0 0
        %1916 = vmatpush.bf16.msra.mxu0 %v1592
        %1917 = vmatpush.bf16.msra.mxu0 %v1387
        %1918 = vmatpush.bf16.msra.mxu0 %v1379
        %1919 = vmatpush.bf16.msra.mxu0 %v1371
        %1920 = vmatpush.bf16.msra.mxu0 %v1363
        %1921 = vmatpush.bf16.msra.mxu0 %v1355
        %1922 = vmatmul.bf16.gmra.mxu0 %v1570
        %v1923 = vpop.f32.mrf.mxu0
        %v1924 = vadd.f32 %v1896, %v1923
        %v1925 = vpop.f32.mrf.mxu0
        %v1926 = vadd.f32 %v1898, %v1925
        %1927 = vmatmul.bf16.gmra.mxu0 %v1573
        %v1928 = vpop.f32.mrf.mxu0
        %v1929 = vadd.f32 %v1901, %v1928
        %v1930 = vpop.f32.mrf.mxu0
        %v1931 = vadd.f32 %v1903, %v1930
        %1932 = vmatmul.bf16.gmra.mxu0 %v1576
        %v1933 = vpop.f32.mrf.mxu0
        %v1934 = vadd.f32 %v1906, %v1933
        %v1935 = vpop.f32.mrf.mxu0
        %v1936 = vadd.f32 %v1908, %v1935
        %1937 = vmatmul.bf16.gmra.mxu0 %v1579
        %v1938 = vpop.f32.mrf.mxu0
        %v1939 = vadd.f32 %v1911, %v1938
        %v1940 = vpop.f32.mrf.mxu0
        %1941 = vdwg.mxu0
        %1942 = vmatpush.bf16.msra.mxu0 %v1284
        %1943 = vmatpush.bf16.msra.mxu0 %v1276
        %1944 = vmatpush.bf16.msra.mxu0 %v1268
        %1945 = vmatpush.bf16.msra.mxu0 %v1260
        %1946 = vmatpush.bf16.msra.mxu0 %v1252
        %1947 = vmatpush.bf16.msra.mxu0 %v1244
        %1948 = vmatpush.bf16.msra.mxu0 %v1236
        %1949 = vmatpush.bf16.msra.mxu0 %v1228
        %1950 = vmatmul.bf16.gmra.mxu0 %v490
        %v1951 = vpop.f32.mrf.mxu0
        %v1952 = vadd.f32 %v684, %v1951
        %v1953 = vpop.f32.mrf.mxu0
        %v1954 = vadd.f32 %v684, %v1953
        %1955 = vmatmul.bf16.gmra.mxu0 %v493
        %v1956 = vpop.f32.mrf.mxu0
        %v1957 = vadd.f32 %v684, %v1956
        %v1958 = vpop.f32.mrf.mxu0
        %v1959 = vadd.f32 %v684, %v1958
        %1960 = vmatmul.bf16.gmra.mxu0 %v496
        %v1961 = vpop.f32.mrf.mxu0
        %v1962 = vadd.f32 %v684, %v1961
        %v1963 = vpop.f32.mrf.mxu0
        %v1964 = vadd.f32 %v684, %v1963
        %1965 = vmatmul.bf16.gmra.mxu0 %v499
        %v1966 = vpop.f32.mrf.mxu0
        %v1967 = vadd.f32 %v684, %v1966
        %v1968 = vpop.f32.mrf.mxu0
        %1969 = vdwg.mxu0
        %1970 = vmatpush.bf16.msra.mxu0 %v1348
        %1971 = vmatpush.bf16.msra.mxu0 %v1340
        %1972 = vmatpush.bf16.msra.mxu0 %v1332
        %1973 = vmatpush.bf16.msra.mxu0 %v1324
        %1974 = vmatpush.bf16.msra.mxu0 %v1316
        %1975 = vmatpush.bf16.msra.mxu0 %v1308
        %1976 = vmatpush.bf16.msra.mxu0 %v1300
        %1977 = vmatpush.bf16.msra.mxu0 %v1292
        %1978 = vmatmul.bf16.gmra.mxu0 %v491
        %v1979 = vpop.f32.mrf.mxu0
        %v1980 = vadd.f32 %v1952, %v1979
        %v1981 = vpop.f32.mrf.mxu0
        %v1982 = vadd.f32 %v1954, %v1981
        %1983 = vmatmul.bf16.gmra.mxu0 %v494
        %v1984 = vpop.f32.mrf.mxu0
        %v1985 = vadd.f32 %v1957, %v1984
        %v1986 = vpop.f32.mrf.mxu0
        %v1987 = vadd.f32 %v1959, %v1986
        %1988 = vmatmul.bf16.gmra.mxu0 %v497
        %v1989 = vpop.f32.mrf.mxu0
        %v1990 = vadd.f32 %v1962, %v1989
        %v1991 = vpop.f32.mrf.mxu0
        %v1992 = vadd.f32 %v1964, %v1991
        %1993 = vmatmul.bf16.gmra.mxu0 %v500
        %v1994 = vpop.f32.mrf.mxu0
        %v1995 = vadd.f32 %v1967, %v1994
        %v1996 = vpop.f32.mrf.mxu0
        %1997 = vdwg.mxu0
        %1998 = vmatpush.bf16.msra.mxu0 0
        %1999 = vmatpush.bf16.msra.mxu0 0
        %2000 = vmatpush.bf16.msra.mxu0 %v1595
        %2001 = vmatpush.bf16.msra.mxu0 %v1388
        %2002 = vmatpush.bf16.msra.mxu0 %v1380
        %2003 = vmatpush.bf16.msra.mxu0 %v1372
        %2004 = vmatpush.bf16.msra.mxu0 %v1364
        %2005 = vmatpush.bf16.msra.mxu0 %v1356
        %2006 = vmatmul.bf16.gmra.mxu0 %v1570
        %v2007 = vpop.f32.mrf.mxu0
        %v2008 = vadd.f32 %v1980, %v2007
        %v2009 = vpop.f32.mrf.mxu0
        %v2010 = vadd.f32 %v1982, %v2009
        %2011 = vmatmul.bf16.gmra.mxu0 %v1573
        %v2012 = vpop.f32.mrf.mxu0
        %v2013 = vadd.f32 %v1985, %v2012
        %v2014 = vpop.f32.mrf.mxu0
        %v2015 = vadd.f32 %v1987, %v2014
        %2016 = vmatmul.bf16.gmra.mxu0 %v1576
        %v2017 = vpop.f32.mrf.mxu0
        %v2018 = vadd.f32 %v1990, %v2017
        %v2019 = vpop.f32.mrf.mxu0
        %v2020 = vadd.f32 %v1992, %v2019
        %2021 = vmatmul.bf16.gmra.mxu0 %v1579
        %v2022 = vpop.f32.mrf.mxu0
        %v2023 = vadd.f32 %v1995, %v2022
        %v2024 = vpop.f32.mrf.mxu0
        %2025 = vdwg.mxu0
        %2026 = vmatpush.bf16.msra.mxu0 %v1285
        %2027 = vmatpush.bf16.msra.mxu0 %v1277
        %2028 = vmatpush.bf16.msra.mxu0 %v1269
        %2029 = vmatpush.bf16.msra.mxu0 %v1261
        %2030 = vmatpush.bf16.msra.mxu0 %v1253
        %2031 = vmatpush.bf16.msra.mxu0 %v1245
        %2032 = vmatpush.bf16.msra.mxu0 %v1237
        %2033 = vmatpush.bf16.msra.mxu0 %v1229
        %2034 = vmatmul.bf16.gmra.mxu0 %v490
        %v2035 = vpop.f32.mrf.mxu0
        %v2036 = vadd.f32 %v685, %v2035
        %v2037 = vpop.f32.mrf.mxu0
        %v2038 = vadd.f32 %v685, %v2037
        %2039 = vmatmul.bf16.gmra.mxu0 %v493
        %v2040 = vpop.f32.mrf.mxu0
        %v2041 = vadd.f32 %v685, %v2040
        %v2042 = vpop.f32.mrf.mxu0
        %v2043 = vadd.f32 %v685, %v2042
        %2044 = vmatmul.bf16.gmra.mxu0 %v496
        %v2045 = vpop.f32.mrf.mxu0
        %v2046 = vadd.f32 %v685, %v2045
        %v2047 = vpop.f32.mrf.mxu0
        %v2048 = vadd.f32 %v685, %v2047
        %2049 = vmatmul.bf16.gmra.mxu0 %v499
        %v2050 = vpop.f32.mrf.mxu0
        %v2051 = vadd.f32 %v685, %v2050
        %v2052 = vpop.f32.mrf.mxu0
        %2053 = vdwg.mxu0
        %2054 = vmatpush.bf16.msra.mxu0 %v1349
        %2055 = vmatpush.bf16.msra.mxu0 %v1341
        %2056 = vmatpush.bf16.msra.mxu0 %v1333
        %2057 = vmatpush.bf16.msra.mxu0 %v1325
        %2058 = vmatpush.bf16.msra.mxu0 %v1317
        %2059 = vmatpush.bf16.msra.mxu0 %v1309
        %2060 = vmatpush.bf16.msra.mxu0 %v1301
        %2061 = vmatpush.bf16.msra.mxu0 %v1293
        %2062 = vmatmul.bf16.gmra.mxu0 %v491
        %v2063 = vpop.f32.mrf.mxu0
        %v2064 = vadd.f32 %v2036, %v2063
        %v2065 = vpop.f32.mrf.mxu0
        %v2066 = vadd.f32 %v2038, %v2065
        %2067 = vmatmul.bf16.gmra.mxu0 %v494
        %v2068 = vpop.f32.mrf.mxu0
        %v2069 = vadd.f32 %v2041, %v2068
        %v2070 = vpop.f32.mrf.mxu0
        %v2071 = vadd.f32 %v2043, %v2070
        %2072 = vmatmul.bf16.gmra.mxu0 %v497
        %v2073 = vpop.f32.mrf.mxu0
        %v2074 = vadd.f32 %v2046, %v2073
        %v2075 = vpop.f32.mrf.mxu0
        %v2076 = vadd.f32 %v2048, %v2075
        %2077 = vmatmul.bf16.gmra.mxu0 %v500
        %v2078 = vpop.f32.mrf.mxu0
        %v2079 = vadd.f32 %v2051, %v2078
        %v2080 = vpop.f32.mrf.mxu0
        %2081 = vdwg.mxu0
        %2082 = vmatpush.bf16.msra.mxu0 0
        %2083 = vmatpush.bf16.msra.mxu0 0
        %2084 = vmatpush.bf16.msra.mxu0 %v1598
        %2085 = vmatpush.bf16.msra.mxu0 %v1389
        %2086 = vmatpush.bf16.msra.mxu0 %v1381
        %2087 = vmatpush.bf16.msra.mxu0 %v1373
        %2088 = vmatpush.bf16.msra.mxu0 %v1365
        %2089 = vmatpush.bf16.msra.mxu0 %v1357
        %2090 = vmatmul.bf16.gmra.mxu0 %v1570
        %v2091 = vpop.f32.mrf.mxu0
        %v2092 = vadd.f32 %v2064, %v2091
        %v2093 = vpop.f32.mrf.mxu0
        %v2094 = vadd.f32 %v2066, %v2093
        %2095 = vmatmul.bf16.gmra.mxu0 %v1573
        %v2096 = vpop.f32.mrf.mxu0
        %v2097 = vadd.f32 %v2069, %v2096
        %v2098 = vpop.f32.mrf.mxu0
        %v2099 = vadd.f32 %v2071, %v2098
        %2100 = vmatmul.bf16.gmra.mxu0 %v1576
        %v2101 = vpop.f32.mrf.mxu0
        %v2102 = vadd.f32 %v2074, %v2101
        %v2103 = vpop.f32.mrf.mxu0
        %v2104 = vadd.f32 %v2076, %v2103
        %2105 = vmatmul.bf16.gmra.mxu0 %v1579
        %v2106 = vpop.f32.mrf.mxu0
        %v2107 = vadd.f32 %v2079, %v2106
        %v2108 = vpop.f32.mrf.mxu0
        %2109 = vdwg.mxu0
        %2110 = vmatpush.bf16.msra.mxu0 %v1286
        %2111 = vmatpush.bf16.msra.mxu0 %v1278
        %2112 = vmatpush.bf16.msra.mxu0 %v1270
        %2113 = vmatpush.bf16.msra.mxu0 %v1262
        %2114 = vmatpush.bf16.msra.mxu0 %v1254
        %2115 = vmatpush.bf16.msra.mxu0 %v1246
        %2116 = vmatpush.bf16.msra.mxu0 %v1238
        %2117 = vmatpush.bf16.msra.mxu0 %v1230
        %2118 = vmatmul.bf16.gmra.mxu0 %v490
        %v2119 = vpop.f32.mrf.mxu0
        %v2120 = vadd.f32 %v686, %v2119
        %v2121 = vpop.f32.mrf.mxu0
        %v2122 = vadd.f32 %v686, %v2121
        %2123 = vmatmul.bf16.gmra.mxu0 %v493
        %v2124 = vpop.f32.mrf.mxu0
        %v2125 = vadd.f32 %v686, %v2124
        %v2126 = vpop.f32.mrf.mxu0
        %v2127 = vadd.f32 %v686, %v2126
        %2128 = vmatmul.bf16.gmra.mxu0 %v496
        %v2129 = vpop.f32.mrf.mxu0
        %v2130 = vadd.f32 %v686, %v2129
        %v2131 = vpop.f32.mrf.mxu0
        %v2132 = vadd.f32 %v686, %v2131
        %2133 = vmatmul.bf16.gmra.mxu0 %v499
        %v2134 = vpop.f32.mrf.mxu0
        %v2135 = vadd.f32 %v686, %v2134
        %v2136 = vpop.f32.mrf.mxu0
        %2137 = vdwg.mxu0
        %2138 = vmatpush.bf16.msra.mxu0 %v1350
        %2139 = vmatpush.bf16.msra.mxu0 %v1342
        %2140 = vmatpush.bf16.msra.mxu0 %v1334
        %2141 = vmatpush.bf16.msra.mxu0 %v1326
        %2142 = vmatpush.bf16.msra.mxu0 %v1318
        %2143 = vmatpush.bf16.msra.mxu0 %v1310
        %2144 = vmatpush.bf16.msra.mxu0 %v1302
        %2145 = vmatpush.bf16.msra.mxu0 %v1294
        %2146 = vmatmul.bf16.gmra.mxu0 %v491
        %v2147 = vpop.f32.mrf.mxu0
        %v2148 = vadd.f32 %v2120, %v2147
        %v2149 = vpop.f32.mrf.mxu0
        %v2150 = vadd.f32 %v2122, %v2149
        %2151 = vmatmul.bf16.gmra.mxu0 %v494
        %v2152 = vpop.f32.mrf.mxu0
        %v2153 = vadd.f32 %v2125, %v2152
        %v2154 = vpop.f32.mrf.mxu0
        %v2155 = vadd.f32 %v2127, %v2154
        %2156 = vmatmul.bf16.gmra.mxu0 %v497
        %v2157 = vpop.f32.mrf.mxu0
        %v2158 = vadd.f32 %v2130, %v2157
        %v2159 = vpop.f32.mrf.mxu0
        %v2160 = vadd.f32 %v2132, %v2159
        %2161 = vmatmul.bf16.gmra.mxu0 %v500
        %v2162 = vpop.f32.mrf.mxu0
        %v2163 = vadd.f32 %v2135, %v2162
        %v2164 = vpop.f32.mrf.mxu0
        %2165 = vdwg.mxu0
        %2166 = vmatpush.bf16.msra.mxu0 0
        %2167 = vmatpush.bf16.msra.mxu0 0
        %2168 = vmatpush.bf16.msra.mxu0 %v1601
        %2169 = vmatpush.bf16.msra.mxu0 %v1390
        %2170 = vmatpush.bf16.msra.mxu0 %v1382
        %2171 = vmatpush.bf16.msra.mxu0 %v1374
        %2172 = vmatpush.bf16.msra.mxu0 %v1366
        %2173 = vmatpush.bf16.msra.mxu0 %v1358
        %2174 = vmatmul.bf16.gmra.mxu0 %v1570
        %v2175 = vpop.f32.mrf.mxu0
        %v2176 = vadd.f32 %v2148, %v2175
        %v2177 = vpop.f32.mrf.mxu0
        %v2178 = vadd.f32 %v2150, %v2177
        %2179 = vmatmul.bf16.gmra.mxu0 %v1573
        %v2180 = vpop.f32.mrf.mxu0
        %v2181 = vadd.f32 %v2153, %v2180
        %v2182 = vpop.f32.mrf.mxu0
        %v2183 = vadd.f32 %v2155, %v2182
        %2184 = vmatmul.bf16.gmra.mxu0 %v1576
        %v2185 = vpop.f32.mrf.mxu0
        %v2186 = vadd.f32 %v2158, %v2185
        %v2187 = vpop.f32.mrf.mxu0
        %v2188 = vadd.f32 %v2160, %v2187
        %2189 = vmatmul.bf16.gmra.mxu0 %v1579
        %v2190 = vpop.f32.mrf.mxu0
        %v2191 = vadd.f32 %v2163, %v2190
        %v2192 = vpop.f32.mrf.mxu0
        %2193 = vdwg.mxu0
        %2194 = vmatpush.bf16.msra.mxu0 %v1287
        %2195 = vmatpush.bf16.msra.mxu0 %v1279
        %2196 = vmatpush.bf16.msra.mxu0 %v1271
        %2197 = vmatpush.bf16.msra.mxu0 %v1263
        %2198 = vmatpush.bf16.msra.mxu0 %v1255
        %2199 = vmatpush.bf16.msra.mxu0 %v1247
        %2200 = vmatpush.bf16.msra.mxu0 %v1239
        %2201 = vmatpush.bf16.msra.mxu0 %v1231
        %2202 = vmatmul.bf16.gmra.mxu0 %v490
        %v2203 = vpop.f32.mrf.mxu0
        %v2204 = vadd.f32 %v687, %v2203
        %v2205 = vpop.f32.mrf.mxu0
        %v2206 = vadd.f32 %v687, %v2205
        %2207 = vmatmul.bf16.gmra.mxu0 %v493
        %v2208 = vpop.f32.mrf.mxu0
        %v2209 = vadd.f32 %v687, %v2208
        %v2210 = vpop.f32.mrf.mxu0
        %v2211 = vadd.f32 %v687, %v2210
        %2212 = vmatmul.bf16.gmra.mxu0 %v496
        %v2213 = vpop.f32.mrf.mxu0
        %v2214 = vadd.f32 %v687, %v2213
        %v2215 = vpop.f32.mrf.mxu0
        %v2216 = vadd.f32 %v687, %v2215
        %2217 = vmatmul.bf16.gmra.mxu0 %v499
        %v2218 = vpop.f32.mrf.mxu0
        %v2219 = vadd.f32 %v687, %v2218
        %v2220 = vpop.f32.mrf.mxu0
        %2221 = vdwg.mxu0
        %2222 = vmatpush.bf16.msra.mxu0 %v1351
        %2223 = vmatpush.bf16.msra.mxu0 %v1343
        %2224 = vmatpush.bf16.msra.mxu0 %v1335
        %2225 = vmatpush.bf16.msra.mxu0 %v1327
        %2226 = vmatpush.bf16.msra.mxu0 %v1319
        %2227 = vmatpush.bf16.msra.mxu0 %v1311
        %2228 = vmatpush.bf16.msra.mxu0 %v1303
        %2229 = vmatpush.bf16.msra.mxu0 %v1295
        %2230 = vmatmul.bf16.gmra.mxu0 %v491
        %v2231 = vpop.f32.mrf.mxu0
        %v2232 = vadd.f32 %v2204, %v2231
        %v2233 = vpop.f32.mrf.mxu0
        %v2234 = vadd.f32 %v2206, %v2233
        %2235 = vmatmul.bf16.gmra.mxu0 %v494
        %v2236 = vpop.f32.mrf.mxu0
        %v2237 = vadd.f32 %v2209, %v2236
        %v2238 = vpop.f32.mrf.mxu0
        %v2239 = vadd.f32 %v2211, %v2238
        %2240 = vmatmul.bf16.gmra.mxu0 %v497
        %v2241 = vpop.f32.mrf.mxu0
        %v2242 = vadd.f32 %v2214, %v2241
        %v2243 = vpop.f32.mrf.mxu0
        %v2244 = vadd.f32 %v2216, %v2243
        %2245 = vmatmul.bf16.gmra.mxu0 %v500
        %v2246 = vpop.f32.mrf.mxu0
        %v2247 = vadd.f32 %v2219, %v2246
        %v2248 = vpop.f32.mrf.mxu0
        %2249 = vdwg.mxu0
        %2250 = vmatpush.bf16.msra.mxu0 0
        %2251 = vmatpush.bf16.msra.mxu0 0
        %2252 = vmatpush.bf16.msra.mxu0 %v1604
        %2253 = vmatpush.bf16.msra.mxu0 %v1391
        %2254 = vmatpush.bf16.msra.mxu0 %v1383
        %2255 = vmatpush.bf16.msra.mxu0 %v1375
        %2256 = vmatpush.bf16.msra.mxu0 %v1367
        %2257 = vmatpush.bf16.msra.mxu0 %v1359
        %2258 = vmatmul.bf16.gmra.mxu0 %v1570
        %v2259 = vpop.f32.mrf.mxu0
        %v2260 = vadd.f32 %v2232, %v2259
        %v2261 = vpop.f32.mrf.mxu0
        %v2262 = vadd.f32 %v2234, %v2261
        %2263 = vmatmul.bf16.gmra.mxu0 %v1573
        %v2264 = vpop.f32.mrf.mxu0
        %v2265 = vadd.f32 %v2237, %v2264
        %v2266 = vpop.f32.mrf.mxu0
        %v2267 = vadd.f32 %v2239, %v2266
        %2268 = vmatmul.bf16.gmra.mxu0 %v1576
        %v2269 = vpop.f32.mrf.mxu0
        %v2270 = vadd.f32 %v2242, %v2269
        %v2271 = vpop.f32.mrf.mxu0
        %v2272 = vadd.f32 %v2244, %v2271
        %2273 = vmatmul.bf16.gmra.mxu0 %v1579
        %v2274 = vpop.f32.mrf.mxu0
        %v2275 = vadd.f32 %v2247, %v2274
        %v2276 = vpop.f32.mrf.mxu0
        %2277 = vdwg.mxu0
        %v2278 = vmul.f32 %v1672, 0.5
        %v2279 = vmul.f32 %v1756, 0.5
        %v2280 = vmul.f32 %v1840, 0.5
        %v2281 = vmul.f32 %v1924, 0.5
        %v2282 = vmul.f32 %v2008, 0.5
        %v2283 = vmul.f32 %v2092, 0.5
        %v2284 = vmul.f32 %v2176, 0.5
        %v2285 = vmul.f32 %v2260, 0.5
        %v2286 = vmul.f32 %v1674, 0.5
        %v2287 = vmul.f32 %v1758, 0.5
        %v2288 = vmul.f32 %v1842, 0.5
        %v2289 = vmul.f32 %v1926, 0.5
        %v2290 = vmul.f32 %v2010, 0.5
        %v2291 = vmul.f32 %v2094, 0.5
        %v2292 = vmul.f32 %v2178, 0.5
        %v2293 = vmul.f32 %v2262, 0.5
        %v2294 = vmul.f32 %v1677, 0.5
        %v2295 = vmul.f32 %v1761, 0.5
        %v2296 = vmul.f32 %v1845, 0.5
        %v2297 = vmul.f32 %v1929, 0.5
        %v2298 = vmul.f32 %v2013, 0.5
        %v2299 = vmul.f32 %v2097, 0.5
        %v2300 = vmul.f32 %v2181, 0.5
        %v2301 = vmul.f32 %v2265, 0.5
        %v2302 = vmul.f32 %v1679, 0.5
        %v2303 = vmul.f32 %v1763, 0.5
        %v2304 = vmul.f32 %v1847, 0.5
        %v2305 = vmul.f32 %v1931, 0.5
        %v2306 = vmul.f32 %v2015, 0.5
        %v2307 = vmul.f32 %v2099, 0.5
        %v2308 = vmul.f32 %v2183, 0.5
        %v2309 = vmul.f32 %v2267, 0.5
        %v2310 = vmul.f32 %v1682, 0.5
        %v2311 = vmul.f32 %v1766, 0.5
        %v2312 = vmul.f32 %v1850, 0.5
        %v2313 = vmul.f32 %v1934, 0.5
        %v2314 = vmul.f32 %v2018, 0.5
        %v2315 = vmul.f32 %v2102, 0.5
        %v2316 = vmul.f32 %v2186, 0.5
        %v2317 = vmul.f32 %v2270, 0.5
        %v2318 = vmul.f32 %v1684, 0.5
        %v2319 = vmul.f32 %v1768, 0.5
        %v2320 = vmul.f32 %v1852, 0.5
        %v2321 = vmul.f32 %v1936, 0.5
        %v2322 = vmul.f32 %v2020, 0.5
        %v2323 = vmul.f32 %v2104, 0.5
        %v2324 = vmul.f32 %v2188, 0.5
        %v2325 = vmul.f32 %v2272, 0.5
        %v2326 = vmul.f32 %v1687, 0.5
        %v2327 = vmul.f32 %v1771, 0.5
        %v2328 = vmul.f32 %v1855, 0.5
        %v2329 = vmul.f32 %v1939, 0.5
        %v2330 = vmul.f32 %v2023, 0.5
        %v2331 = vmul.f32 %v2107, 0.5
        %v2332 = vmul.f32 %v2191, 0.5
        %v2333 = vmul.f32 %v2275, 0.5
        %v2334 = vtanh.pop %v2278
        %v2335 = vtanh.pop %v2279
        %v2336 = vtanh.pop %v2280
        %v2337 = vtanh.pop %v2281
        %v2338 = vtanh.pop %v2282
        %v2339 = vtanh.pop %v2283
        %v2340 = vtanh.pop %v2284
        %v2341 = vtanh.pop %v2285
        %v2342 = vtanh.pop %v2286
        %v2343 = vtanh.pop %v2287
        %v2344 = vtanh.pop %v2288
        %v2345 = vtanh.pop %v2289
        %v2346 = vtanh.pop %v2290
        %v2347 = vtanh.pop %v2291
        %v2348 = vtanh.pop %v2292
        %v2349 = vtanh.pop %v2293
        %v2350 = vtanh.pop %v2294
        %v2351 = vtanh.pop %v2295
        %v2352 = vtanh.pop %v2296
        %v2353 = vtanh.pop %v2297
        %v2354 = vtanh.pop %v2298
        %v2355 = vtanh.pop %v2299
        %v2356 = vtanh.pop %v2300
        %v2357 = vtanh.pop %v2301
        %v2358 = vtanh.pop %v2302
        %v2359 = vtanh.pop %v2303
        %v2360 = vtanh.pop %v2304
        %v2361 = vtanh.pop %v2305
        %v2362 = vtanh.pop %v2306
        %v2363 = vtanh.pop %v2307
        %v2364 = vtanh.pop %v2308
        %v2365 = vtanh.pop %v2309
        %v2366 = vtanh.pop %v2310
        %v2367 = vtanh.pop %v2311
        %v2368 = vtanh.pop %v2312
        %v2369 = vtanh.pop %v2313
        %v2370 = vtanh.pop %v2314
        %v2371 = vtanh.pop %v2315
        %v2372 = vtanh.pop %v2316
        %v2373 = vtanh.pop %v2317
        %v2374 = vtanh.pop %v2318
        %v2375 = vtanh.pop %v2319
        %v2376 = vtanh.pop %v2320
        %v2377 = vtanh.pop %v2321
        %v2378 = vtanh.pop %v2322
        %v2379 = vtanh.pop %v2323
        %v2380 = vtanh.pop %v2324
        %v2381 = vtanh.pop %v2325
        %v2382 = vtanh.pop %v2326
        %v2383 = vtanh.pop %v2327
        %v2384 = vtanh.pop %v2328
        %v2385 = vtanh.pop %v2329
        %v2386 = vtanh.pop %v2330
        %v2387 = vtanh.pop %v2331
        %v2388 = vtanh.pop %v2332
        %v2389 = vtanh.pop %v2333
        %v2390 = vmul.f32 %v2334, 0.5
        %v2391 = vmul.f32 %v2335, 0.5
        %v2392 = vmul.f32 %v2336, 0.5
        %v2393 = vmul.f32 %v2337, 0.5
        %v2394 = vmul.f32 %v2338, 0.5
        %v2395 = vmul.f32 %v2339, 0.5
        %v2396 = vmul.f32 %v2340, 0.5
        %v2397 = vmul.f32 %v2341, 0.5
        %v2398 = vmul.f32 %v2342, 0.5
        %v2399 = vmul.f32 %v2343, 0.5
        %v2400 = vmul.f32 %v2344, 0.5
        %v2401 = vmul.f32 %v2345, 0.5
        %v2402 = vmul.f32 %v2346, 0.5
        %v2403 = vmul.f32 %v2347, 0.5
        %v2404 = vmul.f32 %v2348, 0.5
        %v2405 = vmul.f32 %v2349, 0.5
        %v2406 = vmul.f32 %v2350, 0.5
        %v2407 = vmul.f32 %v2351, 0.5
        %v2408 = vmul.f32 %v2352, 0.5
        %v2409 = vmul.f32 %v2353, 0.5
        %v2410 = vmul.f32 %v2354, 0.5
        %v2411 = vmul.f32 %v2355, 0.5
        %v2412 = vmul.f32 %v2356, 0.5
        %v2413 = vmul.f32 %v2357, 0.5
        %v2414 = vmul.f32 %v2358, 0.5
        %v2415 = vmul.f32 %v2359, 0.5
        %v2416 = vmul.f32 %v2360, 0.5
        %v2417 = vmul.f32 %v2361, 0.5
        %v2418 = vmul.f32 %v2362, 0.5
        %v2419 = vmul.f32 %v2363, 0.5
        %v2420 = vmul.f32 %v2364, 0.5
        %v2421 = vmul.f32 %v2365, 0.5
        %v2422 = vmul.f32 %v2366, 0.5
        %v2423 = vmul.f32 %v2367, 0.5
        %v2424 = vmul.f32 %v2368, 0.5
        %v2425 = vmul.f32 %v2369, 0.5
        %v2426 = vmul.f32 %v2370, 0.5
        %v2427 = vmul.f32 %v2371, 0.5
        %v2428 = vmul.f32 %v2372, 0.5
        %v2429 = vmul.f32 %v2373, 0.5
        %v2430 = vmul.f32 %v2374, 0.5
        %v2431 = vmul.f32 %v2375, 0.5
        %v2432 = vmul.f32 %v2376, 0.5
        %v2433 = vmul.f32 %v2377, 0.5
        %v2434 = vmul.f32 %v2378, 0.5
        %v2435 = vmul.f32 %v2379, 0.5
        %v2436 = vmul.f32 %v2380, 0.5
        %v2437 = vmul.f32 %v2381, 0.5
        %v2438 = vmul.f32 %v2382, 0.5
        %v2439 = vmul.f32 %v2383, 0.5
        %v2440 = vmul.f32 %v2384, 0.5
        %v2441 = vmul.f32 %v2385, 0.5
        %v2442 = vmul.f32 %v2386, 0.5
        %v2443 = vmul.f32 %v2387, 0.5
        %v2444 = vmul.f32 %v2388, 0.5
        %v2445 = vmul.f32 %v2389, 0.5
        %v2446 = vadd.f32 %v2390, 0.5
        %v2447 = vadd.f32 %v2391, 0.5
        %v2448 = vadd.f32 %v2392, 0.5
        %v2449 = vadd.f32 %v2393, 0.5
        %v2450 = vadd.f32 %v2394, 0.5
        %v2451 = vadd.f32 %v2395, 0.5
        %v2452 = vadd.f32 %v2396, 0.5
        %v2453 = vadd.f32 %v2397, 0.5
        %v2454 = vadd.f32 %v2398, 0.5
        %v2455 = vadd.f32 %v2399, 0.5
        %v2456 = vadd.f32 %v2400, 0.5
        %v2457 = vadd.f32 %v2401, 0.5
        %v2458 = vadd.f32 %v2402, 0.5
        %v2459 = vadd.f32 %v2403, 0.5
        %v2460 = vadd.f32 %v2404, 0.5
        %v2461 = vadd.f32 %v2405, 0.5
        %v2462 = vadd.f32 %v2406, 0.5
        %v2463 = vadd.f32 %v2407, 0.5
        %v2464 = vadd.f32 %v2408, 0.5
        %v2465 = vadd.f32 %v2409, 0.5
        %v2466 = vadd.f32 %v2410, 0.5
        %v2467 = vadd.f32 %v2411, 0.5
        %v2468 = vadd.f32 %v2412, 0.5
        %v2469 = vadd.f32 %v2413, 0.5
        %v2470 = vadd.f32 %v2414, 0.5
        %v2471 = vadd.f32 %v2415, 0.5
        %v2472 = vadd.f32 %v2416, 0.5
        %v2473 = vadd.f32 %v2417, 0.5
        %v2474 = vadd.f32 %v2418, 0.5
        %v2475 = vadd.f32 %v2419, 0.5
        %v2476 = vadd.f32 %v2420, 0.5
        %v2477 = vadd.f32 %v2421, 0.5
        %v2478 = vadd.f32 %v2422, 0.5
        %v2479 = vadd.f32 %v2423, 0.5
        %v2480 = vadd.f32 %v2424, 0.5
        %v2481 = vadd.f32 %v2425, 0.5
        %v2482 = vadd.f32 %v2426, 0.5
        %v2483 = vadd.f32 %v2427, 0.5
        %v2484 = vadd.f32 %v2428, 0.5
        %v2485 = vadd.f32 %v2429, 0.5
        %v2486 = vadd.f32 %v2430, 0.5
        %v2487 = vadd.f32 %v2431, 0.5
        %v2488 = vadd.f32 %v2432, 0.5
        %v2489 = vadd.f32 %v2433, 0.5
        %v2490 = vadd.f32 %v2434, 0.5
        %v2491 = vadd.f32 %v2435, 0.5
        %v2492 = vadd.f32 %v2436, 0.5
        %v2493 = vadd.f32 %v2437, 0.5
        %v2494 = vadd.f32 %v2438, 0.5
        %v2495 = vadd.f32 %v2439, 0.5
        %v2496 = vadd.f32 %v2440, 0.5
        %v2497 = vadd.f32 %v2441, 0.5
        %v2498 = vadd.f32 %v2442, 0.5
        %v2499 = vadd.f32 %v2443, 0.5
        %v2500 = vadd.f32 %v2444, 0.5
        %v2501 = vadd.f32 %v2445, 0.5
        %v2502 = vpack.c.bf16 %v2454, %v2446
        %v2503 = vpack.c.bf16 %v2455, %v2447
        %v2504 = vpack.c.bf16 %v2456, %v2448
        %v2505 = vpack.c.bf16 %v2457, %v2449
        %v2506 = vpack.c.bf16 %v2458, %v2450
        %v2507 = vpack.c.bf16 %v2459, %v2451
        %v2508 = vpack.c.bf16 %v2460, %v2452
        %v2509 = vpack.c.bf16 %v2461, %v2453
        %v2510 = vpack.c.bf16 %v2470, %v2462
        %v2511 = vpack.c.bf16 %v2471, %v2463
        %v2512 = vpack.c.bf16 %v2472, %v2464
        %v2513 = vpack.c.bf16 %v2473, %v2465
        %v2514 = vpack.c.bf16 %v2474, %v2466
        %v2515 = vpack.c.bf16 %v2475, %v2467
        %v2516 = vpack.c.bf16 %v2476, %v2468
        %v2517 = vpack.c.bf16 %v2477, %v2469
        %v2518 = vpack.c.bf16 %v2486, %v2478
        %v2519 = vpack.c.bf16 %v2487, %v2479
        %v2520 = vpack.c.bf16 %v2488, %v2480
        %v2521 = vpack.c.bf16 %v2489, %v2481
        %v2522 = vpack.c.bf16 %v2490, %v2482
        %v2523 = vpack.c.bf16 %v2491, %v2483
        %v2524 = vpack.c.bf16 %v2492, %v2484
        %v2525 = vpack.c.bf16 %v2493, %v2485
        %v2526 = vpack.c.bf16 %v2494, %v2494
        %v2527 = vpack.c.bf16 %v2495, %v2495
        %v2528 = vpack.c.bf16 %v2496, %v2496
        %v2529 = vpack.c.bf16 %v2497, %v2497
        %v2530 = vpack.c.bf16 %v2498, %v2498
        %v2531 = vpack.c.bf16 %v2499, %v2499
        %v2532 = vpack.c.bf16 %v2500, %v2500
        %v2533 = vpack.c.bf16 %v2501, %v2501
        %v2534 = vld [vmem:[#allocation8] sm:$0xff]
        %v2535 = vld [vmem:[#allocation8 + $0x8] sm:$0xff]
        %v2536 = vld [vmem:[#allocation8 + $0x10] sm:$0xff]
        %v2537 = vld [vmem:[#allocation8 + $0x18] sm:$0xff]
        %v2538 = vld [vmem:[#allocation8 + $0x20] sm:$0xff]
        %v2539 = vld [vmem:[#allocation8 + $0x28] sm:$0xff]
        %v2540 = vld [vmem:[#allocation8 + $0x30] sm:$0xff]
        %v2541 = vld [vmem:[#allocation8 + $0x38] sm:$0xff]
        %v2542 = vld [vmem:[#allocation8 + $0x40] sm:$0xff]
        %v2543 = vld [vmem:[#allocation8 + $0x48] sm:$0xff]
        %v2544 = vld [vmem:[#allocation8 + $0x50] sm:$0xff]
        %v2545 = vld [vmem:[#allocation8 + $0x58] sm:$0xff]
        %v2546 = vld [vmem:[#allocation8 + $0x60] sm:$0xff]
        %v2547 = vld [vmem:[#allocation8 + $0x68] sm:$0xff]
        %v2548 = vld [vmem:[#allocation8 + $0x70] sm:$0xff]
        %v2549 = vld [vmem:[#allocation8 + $0x78] sm:$0xff]
        %v2550 = vld [vmem:[#allocation8 + $0x80] sm:$0xff]
        %v2551 = vld [vmem:[#allocation8 + $0x88] sm:$0xff]
        %v2552 = vld [vmem:[#allocation8 + $0x90] sm:$0xff]
        %v2553 = vld [vmem:[#allocation8 + $0x98] sm:$0xff]
        %v2554 = vld [vmem:[#allocation8 + $0xa0] sm:$0xff]
        %v2555 = vld [vmem:[#allocation8 + $0xa8] sm:$0xff]
        %v2556 = vld [vmem:[#allocation8 + $0xb0] sm:$0xff]
        %v2557 = vld [vmem:[#allocation8 + $0xb8] sm:$0xff]
        %v2558 = vld [vmem:[#allocation8 + $0xc0] sm:$0xff]
        %v2559 = vld [vmem:[#allocation8 + $0xc8] sm:$0xff]
        %v2560 = vld [vmem:[#allocation8 + $0xd0] sm:$0xff]
        %v2561 = vld [vmem:[#allocation8 + $0xd8] sm:$0xff]
        %v2562 = vld [vmem:[#allocation8 + $0xe0] sm:$0xff]
        %v2563 = vld [vmem:[#allocation8 + $0xe8] sm:$0xff]
        %v2564 = vld [vmem:[#allocation8 + $0xf0] sm:$0xff]
        %v2565 = vld [vmem:[#allocation8 + $0xf8] sm:$0xff]
        %v2566 = vld [vmem:[#allocation8 + $0x100] sm:$0xff]
        %v2567 = vld [vmem:[#allocation8 + $0x108] sm:$0xff]
        %v2568 = vld [vmem:[#allocation8 + $0x110] sm:$0xff]
        %v2569 = vld [vmem:[#allocation8 + $0x118] sm:$0xff]
        %v2570 = vld [vmem:[#allocation8 + $0x120] sm:$0xff]
        %v2571 = vld [vmem:[#allocation8 + $0x128] sm:$0xff]
        %v2572 = vld [vmem:[#allocation8 + $0x130] sm:$0xff]
        %v2573 = vld [vmem:[#allocation8 + $0x138] sm:$0xff]
        %v2574 = vld [vmem:[#allocation8 + $0x140] sm:$0xff]
        %v2575 = vld [vmem:[#allocation8 + $0x148] sm:$0xff]
        %v2576 = vld [vmem:[#allocation8 + $0x150] sm:$0xff]
        %v2577 = vld [vmem:[#allocation8 + $0x158] sm:$0xff]
        %v2578 = vld [vmem:[#allocation8 + $0x160] sm:$0xff]
        %v2579 = vld [vmem:[#allocation8 + $0x168] sm:$0xff]
        %v2580 = vld [vmem:[#allocation8 + $0x170] sm:$0xff]
        %v2581 = vld [vmem:[#allocation8 + $0x178] sm:$0xff]
        %v2582 = vld [vmem:[#allocation8 + $0x180] sm:$0xff]
        %v2583 = vld [vmem:[#allocation8 + $0x188] sm:$0xff]
        %v2584 = vld [vmem:[#allocation8 + $0x190] sm:$0xff]
        %v2585 = vld [vmem:[#allocation8 + $0x198] sm:$0xff]
        %v2586 = vld [vmem:[#allocation8 + $0x1a0] sm:$0xff]
        %v2587 = vld [vmem:[#allocation8 + $0x1a8] sm:$0xff]
        %v2588 = vld [vmem:[#allocation8 + $0x1b0] sm:$0xff]
        %v2589 = vld [vmem:[#allocation8 + $0x1b8] sm:$0xff]
        %v2590 = vld [vmem:[#allocation8 + $0x1c0] sm:$0xff]
        %v2591 = vld [vmem:[#allocation8 + $0x1c8] sm:$0xff]
        %v2592 = vld [vmem:[#allocation8 + $0x1d0] sm:$0xff]
        %v2593 = vld [vmem:[#allocation8 + $0x1d8] sm:$0xff]
        %v2594 = vld [vmem:[#allocation8 + $0x1e0] sm:$0xff]
        %v2595 = vld [vmem:[#allocation8 + $0x1e8] sm:$0xff]
        %v2596 = vld [vmem:[#allocation8 + $0x1f0] sm:$0xff]
        %v2597 = vld [vmem:[#allocation8 + $0x1f8] sm:$0xff]
        %v2598 = vld [vmem:[#allocation8 + $0x200] sm:$0xff]
        %v2599 = vld [vmem:[#allocation8 + $0x208] sm:$0xff]
        %v2600 = vld [vmem:[#allocation8 + $0x210] sm:$0xff]
        %v2601 = vld [vmem:[#allocation8 + $0x218] sm:$0xff]
        %v2602 = vld [vmem:[#allocation8 + $0x220] sm:$0xff]
        %v2603 = vld [vmem:[#allocation8 + $0x228] sm:$0xff]
        %v2604 = vld [vmem:[#allocation8 + $0x230] sm:$0xff]
        %v2605 = vld [vmem:[#allocation8 + $0x238] sm:$0xff]
        %v2606 = vld [vmem:[#allocation8 + $0x240] sm:$0xff]
        %v2607 = vld [vmem:[#allocation8 + $0x248] sm:$0xff]
        %v2608 = vld [vmem:[#allocation8 + $0x250] sm:$0xff]
        %v2609 = vld [vmem:[#allocation8 + $0x258] sm:$0xff]
        %v2610 = vld [vmem:[#allocation8 + $0x260] sm:$0xff]
        %v2611 = vld [vmem:[#allocation8 + $0x268] sm:$0xff]
        %v2612 = vld [vmem:[#allocation8 + $0x270] sm:$0xff]
        %v2613 = vld [vmem:[#allocation8 + $0x278] sm:$0xff]
        %v2614 = vld [vmem:[#allocation8 + $0x280] sm:$0xff]
        %v2615 = vld [vmem:[#allocation8 + $0x288] sm:$0xff]
        %v2616 = vld [vmem:[#allocation8 + $0x290] sm:$0xff]
        %v2617 = vld [vmem:[#allocation8 + $0x298] sm:$0xff]
        %v2618 = vld [vmem:[#allocation8 + $0x2a0] sm:$0xff]
        %v2619 = vld [vmem:[#allocation8 + $0x2a8] sm:$0xff]
        %v2620 = vld [vmem:[#allocation8 + $0x2b0] sm:$0xff]
        %v2621 = vld [vmem:[#allocation8 + $0x2b8] sm:$0xff]
        %v2622 = vld [vmem:[#allocation8 + $0x2c0] sm:$0xff]
        %v2623 = vld [vmem:[#allocation8 + $0x2c8] sm:$0xff]
        %v2624 = vld [vmem:[#allocation8 + $0x2d0] sm:$0xff]
        %v2625 = vld [vmem:[#allocation8 + $0x2d8] sm:$0xff]
        %v2626 = vld [vmem:[#allocation8 + $0x2e0] sm:$0xff]
        %v2627 = vld [vmem:[#allocation8 + $0x2e8] sm:$0xff]
        %v2628 = vld [vmem:[#allocation8 + $0x2f0] sm:$0xff]
        %v2629 = vld [vmem:[#allocation8 + $0x2f8] sm:$0xff]
        %v2630 = vld [vmem:[#allocation8 + $0x300] sm:$0xff]
        %v2631 = vld [vmem:[#allocation8 + $0x308] sm:$0xff]
        %v2632 = vld [vmem:[#allocation8 + $0x310] sm:$0xff]
        %v2633 = vld [vmem:[#allocation8 + $0x318] sm:$0xff]
        %v2634 = vld [vmem:[#allocation8 + $0x320] sm:$0xff]
        %v2635 = vld [vmem:[#allocation8 + $0x328] sm:$0xff]
        %v2636 = vld [vmem:[#allocation8 + $0x330] sm:$0xff]
        %v2637 = vld [vmem:[#allocation8 + $0x338] sm:$0xff]
        %v2638 = vld [vmem:[#allocation8 + $0x340] sm:$0xff]
        %v2639 = vld [vmem:[#allocation8 + $0x348] sm:$0xff]
        %v2640 = vld [vmem:[#allocation8 + $0x350] sm:$0xff]
        %v2641 = vld [vmem:[#allocation8 + $0x358] sm:$0xff]
        %v2642 = vld [vmem:[#allocation8 + $0x360] sm:$0xff]
        %v2643 = vld [vmem:[#allocation8 + $0x368] sm:$0xff]
        %v2644 = vld [vmem:[#allocation8 + $0x370] sm:$0xff]
        %v2645 = vld [vmem:[#allocation8 + $0x378] sm:$0xff]
        %v2646 = vld [vmem:[#allocation8 + $0x380] sm:$0xff]
        %v2647 = vld [vmem:[#allocation8 + $0x388] sm:$0xff]
        %v2648 = vld [vmem:[#allocation8 + $0x390] sm:$0xff]
        %v2649 = vld [vmem:[#allocation8 + $0x398] sm:$0xff]
        %v2650 = vld [vmem:[#allocation8 + $0x3a0] sm:$0xff]
        %v2651 = vld [vmem:[#allocation8 + $0x3a8] sm:$0xff]
        %v2652 = vld [vmem:[#allocation8 + $0x3b0] sm:$0xff]
        %v2653 = vld [vmem:[#allocation8 + $0x3b8] sm:$0xff]
        %v2654 = vld [vmem:[#allocation8 + $0x3c0] sm:$0xff]
        %v2655 = vld [vmem:[#allocation8 + $0x3c8] sm:$0xff]
        %v2656 = vld [vmem:[#allocation8 + $0x3d0] sm:$0xff]
        %v2657 = vld [vmem:[#allocation8 + $0x3d8] sm:$0xff]
        %v2658 = vld [vmem:[#allocation8 + $0x3e0] sm:$0xff]
        %v2659 = vld [vmem:[#allocation8 + $0x3e8] sm:$0xff]
        %v2660 = vld [vmem:[#allocation8 + $0x3f0] sm:$0xff]
        %v2661 = vld [vmem:[#allocation8 + $0x3f8] sm:$0xff]
        %v2662 = vld [vmem:[#allocation8 + $0x400] sm:$0xff]
        %v2663 = vld [vmem:[#allocation8 + $0x408] sm:$0xff]
        %v2664 = vld [vmem:[#allocation8 + $0x410] sm:$0xff]
        %v2665 = vld [vmem:[#allocation8 + $0x418] sm:$0xff]
        %v2666 = vld [vmem:[#allocation8 + $0x420] sm:$0xff]
        %v2667 = vld [vmem:[#allocation8 + $0x428] sm:$0xff]
        %v2668 = vld [vmem:[#allocation8 + $0x430] sm:$0xff]
        %v2669 = vld [vmem:[#allocation8 + $0x438] sm:$0xff]
        %v2670 = vld [vmem:[#allocation8 + $0x440] sm:$0xff]
        %v2671 = vld [vmem:[#allocation8 + $0x448] sm:$0xff]
        %v2672 = vld [vmem:[#allocation8 + $0x450] sm:$0xff]
        %v2673 = vld [vmem:[#allocation8 + $0x458] sm:$0xff]
        %v2674 = vld [vmem:[#allocation8 + $0x460] sm:$0xff]
        %v2675 = vld [vmem:[#allocation8 + $0x468] sm:$0xff]
        %v2676 = vld [vmem:[#allocation8 + $0x470] sm:$0xff]
        %v2677 = vld [vmem:[#allocation8 + $0x478] sm:$0xff]
        %v2678 = vld [vmem:[#allocation8 + $0x480] sm:$0xff]
        %v2679 = vld [vmem:[#allocation8 + $0x488] sm:$0xff]
        %v2680 = vld [vmem:[#allocation8 + $0x490] sm:$0xff]
        %v2681 = vld [vmem:[#allocation8 + $0x498] sm:$0xff]
        %v2682 = vld [vmem:[#allocation8 + $0x4a0] sm:$0xff]
        %v2683 = vld [vmem:[#allocation8 + $0x4a8] sm:$0xff]
        %v2684 = vld [vmem:[#allocation8 + $0x4b0] sm:$0xff]
        %v2685 = vld [vmem:[#allocation8 + $0x4b8] sm:$0xff]
        %v2686 = vld [vmem:[#allocation8 + $0x4c0] sm:$0xff]
        %v2687 = vld [vmem:[#allocation8 + $0x4c8] sm:$0xff]
        %v2688 = vld [vmem:[#allocation8 + $0x4d0] sm:$0xff]
        %v2689 = vld [vmem:[#allocation8 + $0x4d8] sm:$0xff]
        %v2690 = vld [vmem:[#allocation8 + $0x4e0] sm:$0xff]
        %v2691 = vld [vmem:[#allocation8 + $0x4e8] sm:$0xff]
        %v2692 = vld [vmem:[#allocation8 + $0x4f0] sm:$0xff]
        %v2693 = vld [vmem:[#allocation8 + $0x4f8] sm:$0xff]
        %v2694 = vld [vmem:[#allocation8 + $0x500] sm:$0xff]
        %v2695 = vld [vmem:[#allocation8 + $0x508] sm:$0xff]
        %v2696 = vld [vmem:[#allocation8 + $0x510] sm:$0xff]
        %v2697 = vld [vmem:[#allocation8 + $0x518] sm:$0xff]
        %v2698 = vld [vmem:[#allocation8 + $0x520] sm:$0xff]
        %v2699 = vld [vmem:[#allocation8 + $0x528] sm:$0xff]
        %v2700 = vld [vmem:[#allocation8 + $0x530] sm:$0xff]
        %v2701 = vld [vmem:[#allocation8 + $0x538] sm:$0xff]
        %v2702 = vld [vmem:[#allocation8 + $0x540] sm:$0xff]
        %v2703 = vld [vmem:[#allocation8 + $0x548] sm:$0xff]
        %v2704 = vld [vmem:[#allocation8 + $0x550] sm:$0xff]
        %v2705 = vld [vmem:[#allocation8 + $0x558] sm:$0xff]
        %v2706 = vld [vmem:[#allocation8 + $0x560] sm:$0xff]
        %v2707 = vld [vmem:[#allocation8 + $0x568] sm:$0xff]
        %v2708 = vld [vmem:[#allocation8 + $0x570] sm:$0xff]
        %v2709 = vld [vmem:[#allocation8 + $0x578] sm:$0xff]
        %v2710 = vld [vmem:[#allocation8 + $0x580] sm:$0xff]
        %v2711 = vld [vmem:[#allocation8 + $0x588] sm:$0xff]
        %v2712 = vld [vmem:[#allocation8 + $0x590] sm:$0xff]
        %v2713 = vld [vmem:[#allocation8 + $0x598] sm:$0xff]
        %v2714 = vld [vmem:[#allocation8 + $0x5a0] sm:$0xff]
        %v2715 = vld [vmem:[#allocation8 + $0x5a8] sm:$0xff]
        %v2716 = vld [vmem:[#allocation8 + $0x5b0] sm:$0xff]
        %v2717 = vld [vmem:[#allocation8 + $0x5b8] sm:$0xff]
        %v2718 = vld [vmem:[#allocation8 + $0x5c0] sm:$0xff]
        %v2719 = vld [vmem:[#allocation8 + $0x5c8] sm:$0xff]
        %v2720 = vld [vmem:[#allocation8 + $0x5d0] sm:$0xff]
        %v2721 = vld [vmem:[#allocation8 + $0x5d8] sm:$0xff]
        %v2722 = vld [vmem:[#allocation8 + $0x5e0] sm:$0xff]
        %v2723 = vld [vmem:[#allocation8 + $0x5e8] sm:$0xff]
        %v2724 = vld [vmem:[#allocation8 + $0x5f0] sm:$0xff]
        %v2725 = vld [vmem:[#allocation8 + $0x5f8] sm:$0xff]
        %v2726 = vld [vmem:[#allocation8 + $0x600] sm:$0xff]
        %v2727 = vld [vmem:[#allocation8 + $0x608] sm:$0xff]
        %v2728 = vld [vmem:[#allocation8 + $0x610] sm:$0xff]
        %v2729 = vld [vmem:[#allocation8 + $0x618] sm:$0xff]
        %v2730 = vld [vmem:[#allocation8 + $0x620] sm:$0xff]
        %v2731 = vld [vmem:[#allocation8 + $0x628] sm:$0xff]
        %v2732 = vld [vmem:[#allocation8 + $0x630] sm:$0xff]
        %v2733 = vld [vmem:[#allocation8 + $0x638] sm:$0xff]
        %v2734 = vld [vmem:[#allocation8 + $0x640] sm:$0xff]
        %v2735 = vld [vmem:[#allocation8 + $0x648] sm:$0xff]
        %v2736 = vld [vmem:[#allocation8 + $0x650] sm:$0xff]
        %v2737 = vld [vmem:[#allocation8 + $0x658] sm:$0xff]
        %v2738 = vld [vmem:[#allocation8 + $0x660] sm:$0xff]
        %v2739 = vld [vmem:[#allocation8 + $0x668] sm:$0xff]
        %v2740 = vld [vmem:[#allocation8 + $0x670] sm:$0xff]
        %v2741 = vld [vmem:[#allocation8 + $0x678] sm:$0xff]
        %v2742 = vld [vmem:[#allocation8 + $0x680] sm:$0xff]
        %v2743 = vld [vmem:[#allocation8 + $0x688] sm:$0xff]
        %v2744 = vld [vmem:[#allocation8 + $0x690] sm:$0xff]
        %v2745 = vld [vmem:[#allocation8 + $0x698] sm:$0xff]
        %v2746 = vld [vmem:[#allocation8 + $0x6a0] sm:$0xff]
        %v2747 = vld [vmem:[#allocation8 + $0x6a8] sm:$0xff]
        %v2748 = vld [vmem:[#allocation8 + $0x6b0] sm:$0xff]
        %v2749 = vld [vmem:[#allocation8 + $0x6b8] sm:$0xff]
        %v2750 = vld [vmem:[#allocation8 + $0x6c0] sm:$0xff]
        %v2751 = vld [vmem:[#allocation8 + $0x6c8] sm:$0xff]
        %v2752 = vld [vmem:[#allocation8 + $0x6d0] sm:$0xff]
        %v2753 = vld [vmem:[#allocation8 + $0x6d8] sm:$0xff]
        %v2754 = vld [vmem:[#allocation8 + $0x6e0] sm:$0xff]
        %v2755 = vld [vmem:[#allocation8 + $0x6e8] sm:$0xff]
        %v2756 = vld [vmem:[#allocation8 + $0x6f0] sm:$0xff]
        %v2757 = vld [vmem:[#allocation8 + $0x6f8] sm:$0xff]
        %v2758 = vld [vmem:[#allocation8 + $0x700] sm:$0xff]
        %v2759 = vld [vmem:[#allocation8 + $0x708] sm:$0xff]
        %v2760 = vld [vmem:[#allocation8 + $0x710] sm:$0xff]
        %v2761 = vld [vmem:[#allocation8 + $0x718] sm:$0xff]
        %v2762 = vld [vmem:[#allocation8 + $0x720] sm:$0xff]
        %v2763 = vld [vmem:[#allocation8 + $0x728] sm:$0xff]
        %v2764 = vld [vmem:[#allocation8 + $0x730] sm:$0xff]
        %v2765 = vld [vmem:[#allocation8 + $0x738] sm:$0xff]
        %v2766 = vld [vmem:[#allocation8 + $0x740] sm:$0xff]
        %v2767 = vld [vmem:[#allocation8 + $0x748] sm:$0xff]
        %v2768 = vld [vmem:[#allocation8 + $0x750] sm:$0xff]
        %v2769 = vld [vmem:[#allocation8 + $0x758] sm:$0xff]
        %v2770 = vld [vmem:[#allocation8 + $0x760] sm:$0xff]
        %v2771 = vld [vmem:[#allocation8 + $0x768] sm:$0xff]
        %v2772 = vld [vmem:[#allocation8 + $0x770] sm:$0xff]
        %v2773 = vld [vmem:[#allocation8 + $0x778] sm:$0xff]
        %v2774 = vld [vmem:[#allocation8 + $0x780] sm:$0xff]
        %v2775 = vld [vmem:[#allocation8 + $0x788] sm:$0xff]
        %v2776 = vld [vmem:[#allocation8 + $0x790] sm:$0xff]
        %v2777 = vld [vmem:[#allocation8 + $0x798] sm:$0xff]
        %v2778 = vld [vmem:[#allocation8 + $0x7a0] sm:$0xff]
        %v2779 = vld [vmem:[#allocation8 + $0x7a8] sm:$0xff]
        %v2780 = vld [vmem:[#allocation8 + $0x7b0] sm:$0xff]
        %v2781 = vld [vmem:[#allocation8 + $0x7b8] sm:$0xff]
        %v2782 = vld [vmem:[#allocation8 + $0x7c0] sm:$0xff]
        %v2783 = vld [vmem:[#allocation8 + $0x7c8] sm:$0xff]
        %v2784 = vld [vmem:[#allocation8 + $0x7d0] sm:$0xff]
        %v2785 = vld [vmem:[#allocation8 + $0x7d8] sm:$0xff]
        %v2786 = vld [vmem:[#allocation8 + $0x7e0] sm:$0xff]
        %v2787 = vld [vmem:[#allocation8 + $0x7e8] sm:$0xff]
        %v2788 = vld [vmem:[#allocation8 + $0x7f0] sm:$0xff]
        %v2789 = vld [vmem:[#allocation8 + $0x7f8] sm:$0xff]
        %v2790 = vld [vmem:[#allocation10] sm:$0xf]
        %v2792 = vperm.slane %v2790, 0
        %v2793 = vperm.slane %v2790, 1
        %v2794 = vperm.slane %v2790, 2
        %v2795 = vperm.slane %v2790, 3
        %v3056 = vunpack.c.l.b16 %v2534
        %v3057 = vunpack.c.h.b16 %v2534
        %v3058 = vunpack.c.l.b16 %v2535
        %v3059 = vunpack.c.h.b16 %v2535
        %v3060 = vunpack.c.l.b16 %v2536
        %v3061 = vunpack.c.h.b16 %v2536
        %v3062 = vunpack.c.l.b16 %v2537
        %v3063 = vunpack.c.h.b16 %v2537
        %v3064 = vunpack.c.l.b16 %v2538
        %v3065 = vunpack.c.h.b16 %v2538
        %v3066 = vunpack.c.l.b16 %v2539
        %v3067 = vunpack.c.h.b16 %v2539
        %v3068 = vunpack.c.l.b16 %v2540
        %v3069 = vunpack.c.h.b16 %v2540
        %v3070 = vunpack.c.l.b16 %v2541
        %v3071 = vunpack.c.h.b16 %v2541
        %v3072 = vunpack.c.l.b16 %v2542
        %v3073 = vunpack.c.h.b16 %v2542
        %v3074 = vunpack.c.l.b16 %v2543
        %v3075 = vunpack.c.h.b16 %v2543
        %v3076 = vunpack.c.l.b16 %v2544
        %v3077 = vunpack.c.h.b16 %v2544
        %v3078 = vunpack.c.l.b16 %v2545
        %v3079 = vunpack.c.h.b16 %v2545
        %v3080 = vunpack.c.l.b16 %v2546
        %v3081 = vunpack.c.h.b16 %v2546
        %v3082 = vunpack.c.l.b16 %v2547
        %v3083 = vunpack.c.h.b16 %v2547
        %v3084 = vunpack.c.l.b16 %v2548
        %v3085 = vunpack.c.h.b16 %v2548
        %v3086 = vunpack.c.l.b16 %v2549
        %v3087 = vunpack.c.h.b16 %v2549
        %v3088 = vunpack.c.l.b16 %v2550
        %v3089 = vunpack.c.h.b16 %v2550
        %v3090 = vunpack.c.l.b16 %v2551
        %v3091 = vunpack.c.h.b16 %v2551
        %v3092 = vunpack.c.l.b16 %v2552
        %v3093 = vunpack.c.h.b16 %v2552
        %v3094 = vunpack.c.l.b16 %v2553
        %v3095 = vunpack.c.h.b16 %v2553
        %v3096 = vunpack.c.l.b16 %v2554
        %v3097 = vunpack.c.h.b16 %v2554
        %v3098 = vunpack.c.l.b16 %v2555
        %v3099 = vunpack.c.h.b16 %v2555
        %v3100 = vunpack.c.l.b16 %v2556
        %v3101 = vunpack.c.h.b16 %v2556
        %v3102 = vunpack.c.l.b16 %v2557
        %v3103 = vunpack.c.h.b16 %v2557
        %v3104 = vunpack.c.l.b16 %v2558
        %v3105 = vunpack.c.h.b16 %v2558
        %v3106 = vunpack.c.l.b16 %v2559
        %v3107 = vunpack.c.h.b16 %v2559
        %v3108 = vunpack.c.l.b16 %v2560
        %v3109 = vunpack.c.h.b16 %v2560
        %v3110 = vunpack.c.l.b16 %v2561
        %v3111 = vunpack.c.h.b16 %v2561
        %v3112 = vunpack.c.l.b16 %v2562
        %v3113 = vunpack.c.h.b16 %v2562
        %v3114 = vunpack.c.l.b16 %v2563
        %v3115 = vunpack.c.h.b16 %v2563
        %v3116 = vunpack.c.l.b16 %v2564
        %v3117 = vunpack.c.h.b16 %v2564
        %v3118 = vunpack.c.l.b16 %v2565
        %v3119 = vunpack.c.h.b16 %v2565
        %v3120 = vunpack.c.l.b16 %v2566
        %v3121 = vunpack.c.h.b16 %v2566
        %v3122 = vunpack.c.l.b16 %v2567
        %v3123 = vunpack.c.h.b16 %v2567
        %v3124 = vunpack.c.l.b16 %v2568
        %v3125 = vunpack.c.h.b16 %v2568
        %v3126 = vunpack.c.l.b16 %v2569
        %v3127 = vunpack.c.h.b16 %v2569
        %v3128 = vunpack.c.l.b16 %v2570
        %v3129 = vunpack.c.h.b16 %v2570
        %v3130 = vunpack.c.l.b16 %v2571
        %v3131 = vunpack.c.h.b16 %v2571
        %v3132 = vunpack.c.l.b16 %v2572
        %v3133 = vunpack.c.h.b16 %v2572
        %v3134 = vunpack.c.l.b16 %v2573
        %v3135 = vunpack.c.h.b16 %v2573
        %v3136 = vunpack.c.l.b16 %v2574
        %v3137 = vunpack.c.h.b16 %v2574
        %v3138 = vunpack.c.l.b16 %v2575
        %v3139 = vunpack.c.h.b16 %v2575
        %v3140 = vunpack.c.l.b16 %v2576
        %v3141 = vunpack.c.h.b16 %v2576
        %v3142 = vunpack.c.l.b16 %v2577
        %v3143 = vunpack.c.h.b16 %v2577
        %v3144 = vunpack.c.l.b16 %v2578
        %v3145 = vunpack.c.h.b16 %v2578
        %v3146 = vunpack.c.l.b16 %v2579
        %v3147 = vunpack.c.h.b16 %v2579
        %v3148 = vunpack.c.l.b16 %v2580
        %v3149 = vunpack.c.h.b16 %v2580
        %v3150 = vunpack.c.l.b16 %v2581
        %v3151 = vunpack.c.h.b16 %v2581
        %v3152 = vunpack.c.l.b16 %v2582
        %v3153 = vunpack.c.h.b16 %v2582
        %v3154 = vunpack.c.l.b16 %v2583
        %v3155 = vunpack.c.h.b16 %v2583
        %v3156 = vunpack.c.l.b16 %v2584
        %v3157 = vunpack.c.h.b16 %v2584
        %v3158 = vunpack.c.l.b16 %v2585
        %v3159 = vunpack.c.h.b16 %v2585
        %v3160 = vunpack.c.l.b16 %v2586
        %v3161 = vunpack.c.h.b16 %v2586
        %v3162 = vunpack.c.l.b16 %v2587
        %v3163 = vunpack.c.h.b16 %v2587
        %v3164 = vunpack.c.l.b16 %v2588
        %v3165 = vunpack.c.h.b16 %v2588
        %v3166 = vunpack.c.l.b16 %v2589
        %v3167 = vunpack.c.h.b16 %v2589
        %v3168 = vunpack.c.l.b16 %v2590
        %v3169 = vunpack.c.h.b16 %v2590
        %v3170 = vunpack.c.l.b16 %v2591
        %v3171 = vunpack.c.h.b16 %v2591
        %v3172 = vunpack.c.l.b16 %v2592
        %v3173 = vunpack.c.h.b16 %v2592
        %v3174 = vunpack.c.l.b16 %v2593
        %v3175 = vunpack.c.h.b16 %v2593
        %v3176 = vunpack.c.l.b16 %v2594
        %v3177 = vunpack.c.h.b16 %v2594
        %v3178 = vunpack.c.l.b16 %v2595
        %v3179 = vunpack.c.h.b16 %v2595
        %v3180 = vunpack.c.l.b16 %v2596
        %v3181 = vunpack.c.h.b16 %v2596
        %v3182 = vunpack.c.l.b16 %v2597
        %v3183 = vunpack.c.h.b16 %v2597
        %v3184 = vunpack.c.l.b16 %v2598
        %v3185 = vunpack.c.h.b16 %v2598
        %v3186 = vunpack.c.l.b16 %v2599
        %v3187 = vunpack.c.h.b16 %v2599
        %v3188 = vunpack.c.l.b16 %v2600
        %v3189 = vunpack.c.h.b16 %v2600
        %v3190 = vunpack.c.l.b16 %v2601
        %v3191 = vunpack.c.h.b16 %v2601
        %v3192 = vunpack.c.l.b16 %v2602
        %v3193 = vunpack.c.h.b16 %v2602
        %v3194 = vunpack.c.l.b16 %v2603
        %v3195 = vunpack.c.h.b16 %v2603
        %v3196 = vunpack.c.l.b16 %v2604
        %v3197 = vunpack.c.h.b16 %v2604
        %v3198 = vunpack.c.l.b16 %v2605
        %v3199 = vunpack.c.h.b16 %v2605
        %v3200 = vunpack.c.l.b16 %v2606
        %v3201 = vunpack.c.h.b16 %v2606
        %v3202 = vunpack.c.l.b16 %v2607
        %v3203 = vunpack.c.h.b16 %v2607
        %v3204 = vunpack.c.l.b16 %v2608
        %v3205 = vunpack.c.h.b16 %v2608
        %v3206 = vunpack.c.l.b16 %v2609
        %v3207 = vunpack.c.h.b16 %v2609
        %v3208 = vunpack.c.l.b16 %v2610
        %v3209 = vunpack.c.h.b16 %v2610
        %v3210 = vunpack.c.l.b16 %v2611
        %v3211 = vunpack.c.h.b16 %v2611
        %v3212 = vunpack.c.l.b16 %v2612
        %v3213 = vunpack.c.h.b16 %v2612
        %v3214 = vunpack.c.l.b16 %v2613
        %v3215 = vunpack.c.h.b16 %v2613
        %v3216 = vunpack.c.l.b16 %v2614
        %v3217 = vunpack.c.h.b16 %v2614
        %v3218 = vunpack.c.l.b16 %v2615
        %v3219 = vunpack.c.h.b16 %v2615
        %v3220 = vunpack.c.l.b16 %v2616
        %v3221 = vunpack.c.h.b16 %v2616
        %v3222 = vunpack.c.l.b16 %v2617
        %v3223 = vunpack.c.h.b16 %v2617
        %v3224 = vunpack.c.l.b16 %v2618
        %v3225 = vunpack.c.h.b16 %v2618
        %v3226 = vunpack.c.l.b16 %v2619
        %v3227 = vunpack.c.h.b16 %v2619
        %v3228 = vunpack.c.l.b16 %v2620
        %v3229 = vunpack.c.h.b16 %v2620
        %v3230 = vunpack.c.l.b16 %v2621
        %v3231 = vunpack.c.h.b16 %v2621
        %v3232 = vunpack.c.l.b16 %v2622
        %v3233 = vunpack.c.h.b16 %v2622
        %v3234 = vunpack.c.l.b16 %v2623
        %v3235 = vunpack.c.h.b16 %v2623
        %v3236 = vunpack.c.l.b16 %v2624
        %v3237 = vunpack.c.h.b16 %v2624
        %v3238 = vunpack.c.l.b16 %v2625
        %v3239 = vunpack.c.h.b16 %v2625
        %v3240 = vunpack.c.l.b16 %v2626
        %v3241 = vunpack.c.h.b16 %v2626
        %v3242 = vunpack.c.l.b16 %v2627
        %v3243 = vunpack.c.h.b16 %v2627
        %v3244 = vunpack.c.l.b16 %v2628
        %v3245 = vunpack.c.h.b16 %v2628
        %v3246 = vunpack.c.l.b16 %v2629
        %v3247 = vunpack.c.h.b16 %v2629
        %v3248 = vunpack.c.l.b16 %v2630
        %v3249 = vunpack.c.h.b16 %v2630
        %v3250 = vunpack.c.l.b16 %v2631
        %v3251 = vunpack.c.h.b16 %v2631
        %v3252 = vunpack.c.l.b16 %v2632
        %v3253 = vunpack.c.h.b16 %v2632
        %v3254 = vunpack.c.l.b16 %v2633
        %v3255 = vunpack.c.h.b16 %v2633
        %v3256 = vunpack.c.l.b16 %v2634
        %v3257 = vunpack.c.h.b16 %v2634
        %v3258 = vunpack.c.l.b16 %v2635
        %v3259 = vunpack.c.h.b16 %v2635
        %v3260 = vunpack.c.l.b16 %v2636
        %v3261 = vunpack.c.h.b16 %v2636
        %v3262 = vunpack.c.l.b16 %v2637
        %v3263 = vunpack.c.h.b16 %v2637
        %v3264 = vunpack.c.l.b16 %v2638
        %v3265 = vunpack.c.h.b16 %v2638
        %v3266 = vunpack.c.l.b16 %v2639
        %v3267 = vunpack.c.h.b16 %v2639
        %v3268 = vunpack.c.l.b16 %v2640
        %v3269 = vunpack.c.h.b16 %v2640
        %v3270 = vunpack.c.l.b16 %v2641
        %v3271 = vunpack.c.h.b16 %v2641
        %v3272 = vunpack.c.l.b16 %v2642
        %v3273 = vunpack.c.h.b16 %v2642
        %v3274 = vunpack.c.l.b16 %v2643
        %v3275 = vunpack.c.h.b16 %v2643
        %v3276 = vunpack.c.l.b16 %v2644
        %v3277 = vunpack.c.h.b16 %v2644
        %v3278 = vunpack.c.l.b16 %v2645
        %v3279 = vunpack.c.h.b16 %v2645
        %v3280 = vunpack.c.l.b16 %v2646
        %v3281 = vunpack.c.h.b16 %v2646
        %v3282 = vunpack.c.l.b16 %v2647
        %v3283 = vunpack.c.h.b16 %v2647
        %v3284 = vunpack.c.l.b16 %v2648
        %v3285 = vunpack.c.h.b16 %v2648
        %v3286 = vunpack.c.l.b16 %v2649
        %v3287 = vunpack.c.h.b16 %v2649
        %v3288 = vunpack.c.l.b16 %v2650
        %v3289 = vunpack.c.h.b16 %v2650
        %v3290 = vunpack.c.l.b16 %v2651
        %v3291 = vunpack.c.h.b16 %v2651
        %v3292 = vunpack.c.l.b16 %v2652
        %v3293 = vunpack.c.h.b16 %v2652
        %v3294 = vunpack.c.l.b16 %v2653
        %v3295 = vunpack.c.h.b16 %v2653
        %v3296 = vunpack.c.l.b16 %v2654
        %v3297 = vunpack.c.h.b16 %v2654
        %v3298 = vunpack.c.l.b16 %v2655
        %v3299 = vunpack.c.h.b16 %v2655
        %v3300 = vunpack.c.l.b16 %v2656
        %v3301 = vunpack.c.h.b16 %v2656
        %v3302 = vunpack.c.l.b16 %v2657
        %v3303 = vunpack.c.h.b16 %v2657
        %v3304 = vunpack.c.l.b16 %v2658
        %v3305 = vunpack.c.h.b16 %v2658
        %v3306 = vunpack.c.l.b16 %v2659
        %v3307 = vunpack.c.h.b16 %v2659
        %v3308 = vunpack.c.l.b16 %v2660
        %v3309 = vunpack.c.h.b16 %v2660
        %v3310 = vunpack.c.l.b16 %v2661
        %v3311 = vunpack.c.h.b16 %v2661
        %v3312 = vunpack.c.l.b16 %v2662
        %v3313 = vunpack.c.h.b16 %v2662
        %v3314 = vunpack.c.l.b16 %v2663
        %v3315 = vunpack.c.h.b16 %v2663
        %v3316 = vunpack.c.l.b16 %v2664
        %v3317 = vunpack.c.h.b16 %v2664
        %v3318 = vunpack.c.l.b16 %v2665
        %v3319 = vunpack.c.h.b16 %v2665
        %v3320 = vunpack.c.l.b16 %v2666
        %v3321 = vunpack.c.h.b16 %v2666
        %v3322 = vunpack.c.l.b16 %v2667
        %v3323 = vunpack.c.h.b16 %v2667
        %v3324 = vunpack.c.l.b16 %v2668
        %v3325 = vunpack.c.h.b16 %v2668
        %v3326 = vunpack.c.l.b16 %v2669
        %v3327 = vunpack.c.h.b16 %v2669
        %v3328 = vunpack.c.l.b16 %v2670
        %v3329 = vunpack.c.h.b16 %v2670
        %v3330 = vunpack.c.l.b16 %v2671
        %v3331 = vunpack.c.h.b16 %v2671
        %v3332 = vunpack.c.l.b16 %v2672
        %v3333 = vunpack.c.h.b16 %v2672
        %v3334 = vunpack.c.l.b16 %v2673
        %v3335 = vunpack.c.h.b16 %v2673
        %v3336 = vunpack.c.l.b16 %v2674
        %v3337 = vunpack.c.h.b16 %v2674
        %v3338 = vunpack.c.l.b16 %v2675
        %v3339 = vunpack.c.h.b16 %v2675
        %v3340 = vunpack.c.l.b16 %v2676
        %v3341 = vunpack.c.h.b16 %v2676
        %v3342 = vunpack.c.l.b16 %v2677
        %v3343 = vunpack.c.h.b16 %v2677
        %v3344 = vunpack.c.l.b16 %v2678
        %v3345 = vunpack.c.h.b16 %v2678
        %v3346 = vunpack.c.l.b16 %v2679
        %v3347 = vunpack.c.h.b16 %v2679
        %v3348 = vunpack.c.l.b16 %v2680
        %v3349 = vunpack.c.h.b16 %v2680
        %v3350 = vunpack.c.l.b16 %v2681
        %v3351 = vunpack.c.h.b16 %v2681
        %v3352 = vunpack.c.l.b16 %v2682
        %v3353 = vunpack.c.h.b16 %v2682
        %v3354 = vunpack.c.l.b16 %v2683
        %v3355 = vunpack.c.h.b16 %v2683
        %v3356 = vunpack.c.l.b16 %v2684
        %v3357 = vunpack.c.h.b16 %v2684
        %v3358 = vunpack.c.l.b16 %v2685
        %v3359 = vunpack.c.h.b16 %v2685
        %v3360 = vunpack.c.l.b16 %v2686
        %v3361 = vunpack.c.h.b16 %v2686
        %v3362 = vunpack.c.l.b16 %v2687
        %v3363 = vunpack.c.h.b16 %v2687
        %v3364 = vunpack.c.l.b16 %v2688
        %v3365 = vunpack.c.h.b16 %v2688
        %v3366 = vunpack.c.l.b16 %v2689
        %v3367 = vunpack.c.h.b16 %v2689
        %v3368 = vunpack.c.l.b16 %v2690
        %v3369 = vunpack.c.h.b16 %v2690
        %v3370 = vunpack.c.l.b16 %v2691
        %v3371 = vunpack.c.h.b16 %v2691
        %v3372 = vunpack.c.l.b16 %v2692
        %v3373 = vunpack.c.h.b16 %v2692
        %v3374 = vunpack.c.l.b16 %v2693
        %v3375 = vunpack.c.h.b16 %v2693
        %v3376 = vunpack.c.l.b16 %v2694
        %v3377 = vunpack.c.h.b16 %v2694
        %v3378 = vunpack.c.l.b16 %v2695
        %v3379 = vunpack.c.h.b16 %v2695
        %v3380 = vunpack.c.l.b16 %v2696
        %v3381 = vunpack.c.h.b16 %v2696
        %v3382 = vunpack.c.l.b16 %v2697
        %v3383 = vunpack.c.h.b16 %v2697
        %v3384 = vunpack.c.l.b16 %v2698
        %v3385 = vunpack.c.h.b16 %v2698
        %v3386 = vunpack.c.l.b16 %v2699
        %v3387 = vunpack.c.h.b16 %v2699
        %v3388 = vunpack.c.l.b16 %v2700
        %v3389 = vunpack.c.h.b16 %v2700
        %v3390 = vunpack.c.l.b16 %v2701
        %v3391 = vunpack.c.h.b16 %v2701
        %v3392 = vunpack.c.l.b16 %v2702
        %v3393 = vunpack.c.h.b16 %v2702
        %v3394 = vunpack.c.l.b16 %v2703
        %v3395 = vunpack.c.h.b16 %v2703
        %v3396 = vunpack.c.l.b16 %v2704
        %v3397 = vunpack.c.h.b16 %v2704
        %v3398 = vunpack.c.l.b16 %v2705
        %v3399 = vunpack.c.h.b16 %v2705
        %v3400 = vunpack.c.l.b16 %v2706
        %v3401 = vunpack.c.h.b16 %v2706
        %v3402 = vunpack.c.l.b16 %v2707
        %v3403 = vunpack.c.h.b16 %v2707
        %v3404 = vunpack.c.l.b16 %v2708
        %v3405 = vunpack.c.h.b16 %v2708
        %v3406 = vunpack.c.l.b16 %v2709
        %v3407 = vunpack.c.h.b16 %v2709
        %v3408 = vunpack.c.l.b16 %v2710
        %v3409 = vunpack.c.h.b16 %v2710
        %v3410 = vunpack.c.l.b16 %v2711
        %v3411 = vunpack.c.h.b16 %v2711
        %v3412 = vunpack.c.l.b16 %v2712
        %v3413 = vunpack.c.h.b16 %v2712
        %v3414 = vunpack.c.l.b16 %v2713
        %v3415 = vunpack.c.h.b16 %v2713
        %v3416 = vunpack.c.l.b16 %v2714
        %v3417 = vunpack.c.h.b16 %v2714
        %v3418 = vunpack.c.l.b16 %v2715
        %v3419 = vunpack.c.h.b16 %v2715
        %v3420 = vunpack.c.l.b16 %v2716
        %v3421 = vunpack.c.h.b16 %v2716
        %v3422 = vunpack.c.l.b16 %v2717
        %v3423 = vunpack.c.h.b16 %v2717
        %v3424 = vunpack.c.l.b16 %v2718
        %v3425 = vunpack.c.h.b16 %v2718
        %v3426 = vunpack.c.l.b16 %v2719
        %v3427 = vunpack.c.h.b16 %v2719
        %v3428 = vunpack.c.l.b16 %v2720
        %v3429 = vunpack.c.h.b16 %v2720
        %v3430 = vunpack.c.l.b16 %v2721
        %v3431 = vunpack.c.h.b16 %v2721
        %v3432 = vunpack.c.l.b16 %v2722
        %v3433 = vunpack.c.h.b16 %v2722
        %v3434 = vunpack.c.l.b16 %v2723
        %v3435 = vunpack.c.h.b16 %v2723
        %v3436 = vunpack.c.l.b16 %v2724
        %v3437 = vunpack.c.h.b16 %v2724
        %v3438 = vunpack.c.l.b16 %v2725
        %v3439 = vunpack.c.h.b16 %v2725
        %v3440 = vunpack.c.l.b16 %v2726
        %v3441 = vunpack.c.h.b16 %v2726
        %v3442 = vunpack.c.l.b16 %v2727
        %v3443 = vunpack.c.h.b16 %v2727
        %v3444 = vunpack.c.l.b16 %v2728
        %v3445 = vunpack.c.h.b16 %v2728
        %v3446 = vunpack.c.l.b16 %v2729
        %v3447 = vunpack.c.h.b16 %v2729
        %v3448 = vunpack.c.l.b16 %v2730
        %v3449 = vunpack.c.h.b16 %v2730
        %v3450 = vunpack.c.l.b16 %v2731
        %v3451 = vunpack.c.h.b16 %v2731
        %v3452 = vunpack.c.l.b16 %v2732
        %v3453 = vunpack.c.h.b16 %v2732
        %v3454 = vunpack.c.l.b16 %v2733
        %v3455 = vunpack.c.h.b16 %v2733
        %v3456 = vunpack.c.l.b16 %v2734
        %v3457 = vunpack.c.h.b16 %v2734
        %v3458 = vunpack.c.l.b16 %v2735
        %v3459 = vunpack.c.h.b16 %v2735
        %v3460 = vunpack.c.l.b16 %v2736
        %v3461 = vunpack.c.h.b16 %v2736
        %v3462 = vunpack.c.l.b16 %v2737
        %v3463 = vunpack.c.h.b16 %v2737
        %v3464 = vunpack.c.l.b16 %v2738
        %v3465 = vunpack.c.h.b16 %v2738
        %v3466 = vunpack.c.l.b16 %v2739
        %v3467 = vunpack.c.h.b16 %v2739
        %v3468 = vunpack.c.l.b16 %v2740
        %v3469 = vunpack.c.h.b16 %v2740
        %v3470 = vunpack.c.l.b16 %v2741
        %v3471 = vunpack.c.h.b16 %v2741
        %v3472 = vunpack.c.l.b16 %v2742
        %v3473 = vunpack.c.h.b16 %v2742
        %v3474 = vunpack.c.l.b16 %v2743
        %v3475 = vunpack.c.h.b16 %v2743
        %v3476 = vunpack.c.l.b16 %v2744
        %v3477 = vunpack.c.h.b16 %v2744
        %v3478 = vunpack.c.l.b16 %v2745
        %v3479 = vunpack.c.h.b16 %v2745
        %v3480 = vunpack.c.l.b16 %v2746
        %v3481 = vunpack.c.h.b16 %v2746
        %v3482 = vunpack.c.l.b16 %v2747
        %v3483 = vunpack.c.h.b16 %v2747
        %v3484 = vunpack.c.l.b16 %v2748
        %v3485 = vunpack.c.h.b16 %v2748
        %v3486 = vunpack.c.l.b16 %v2749
        %v3487 = vunpack.c.h.b16 %v2749
        %v3488 = vunpack.c.l.b16 %v2750
        %v3489 = vunpack.c.h.b16 %v2750
        %v3490 = vunpack.c.l.b16 %v2751
        %v3491 = vunpack.c.h.b16 %v2751
        %v3492 = vunpack.c.l.b16 %v2752
        %v3493 = vunpack.c.h.b16 %v2752
        %v3494 = vunpack.c.l.b16 %v2753
        %v3495 = vunpack.c.h.b16 %v2753
        %v3496 = vunpack.c.l.b16 %v2754
        %v3497 = vunpack.c.h.b16 %v2754
        %v3498 = vunpack.c.l.b16 %v2755
        %v3499 = vunpack.c.h.b16 %v2755
        %v3500 = vunpack.c.l.b16 %v2756
        %v3501 = vunpack.c.h.b16 %v2756
        %v3502 = vunpack.c.l.b16 %v2757
        %v3503 = vunpack.c.h.b16 %v2757
        %v3504 = vunpack.c.l.b16 %v2758
        %v3505 = vunpack.c.h.b16 %v2758
        %v3506 = vunpack.c.l.b16 %v2759
        %v3507 = vunpack.c.h.b16 %v2759
        %v3508 = vunpack.c.l.b16 %v2760
        %v3509 = vunpack.c.h.b16 %v2760
        %v3510 = vunpack.c.l.b16 %v2761
        %v3511 = vunpack.c.h.b16 %v2761
        %v3512 = vunpack.c.l.b16 %v2762
        %v3513 = vunpack.c.h.b16 %v2762
        %v3514 = vunpack.c.l.b16 %v2763
        %v3515 = vunpack.c.h.b16 %v2763
        %v3516 = vunpack.c.l.b16 %v2764
        %v3517 = vunpack.c.h.b16 %v2764
        %v3518 = vunpack.c.l.b16 %v2765
        %v3519 = vunpack.c.h.b16 %v2765
        %v3520 = vunpack.c.l.b16 %v2766
        %v3521 = vunpack.c.h.b16 %v2766
        %v3522 = vunpack.c.l.b16 %v2767
        %v3523 = vunpack.c.h.b16 %v2767
        %v3524 = vunpack.c.l.b16 %v2768
        %v3525 = vunpack.c.h.b16 %v2768
        %v3526 = vunpack.c.l.b16 %v2769
        %v3527 = vunpack.c.h.b16 %v2769
        %v3528 = vunpack.c.l.b16 %v2770
        %v3529 = vunpack.c.h.b16 %v2770
        %v3530 = vunpack.c.l.b16 %v2771
        %v3531 = vunpack.c.h.b16 %v2771
        %v3532 = vunpack.c.l.b16 %v2772
        %v3533 = vunpack.c.h.b16 %v2772
        %v3534 = vunpack.c.l.b16 %v2773
        %v3535 = vunpack.c.h.b16 %v2773
        %v3536 = vunpack.c.l.b16 %v2774
        %v3537 = vunpack.c.h.b16 %v2774
        %v3538 = vunpack.c.l.b16 %v2775
        %v3539 = vunpack.c.h.b16 %v2775
        %v3540 = vunpack.c.l.b16 %v2776
        %v3541 = vunpack.c.h.b16 %v2776
        %v3542 = vunpack.c.l.b16 %v2777
        %v3543 = vunpack.c.h.b16 %v2777
        %v3544 = vunpack.c.l.b16 %v2778
        %v3545 = vunpack.c.h.b16 %v2778
        %v3546 = vunpack.c.l.b16 %v2779
        %v3547 = vunpack.c.h.b16 %v2779
        %v3548 = vunpack.c.l.b16 %v2780
        %v3549 = vunpack.c.h.b16 %v2780
        %v3550 = vunpack.c.l.b16 %v2781
        %v3551 = vunpack.c.h.b16 %v2781
        %v3552 = vunpack.c.l.b16 %v2782
        %v3553 = vunpack.c.h.b16 %v2782
        %v3554 = vunpack.c.l.b16 %v2783
        %v3555 = vunpack.c.h.b16 %v2783
        %v3556 = vunpack.c.l.b16 %v2784
        %v3557 = vunpack.c.h.b16 %v2784
        %v3558 = vunpack.c.l.b16 %v2785
        %v3559 = vunpack.c.h.b16 %v2785
        %v3560 = vunpack.c.l.b16 %v2786
        %v3561 = vunpack.c.h.b16 %v2786
        %v3562 = vunpack.c.l.b16 %v2787
        %v3563 = vunpack.c.h.b16 %v2787
        %v3564 = vunpack.c.l.b16 %v2788
        %v3565 = vunpack.c.h.b16 %v2788
        %v3566 = vunpack.c.l.b16 %v2789
        %v3567 = vunpack.c.h.b16 %v2789
        %v3568 = vpack.c.b16 %v3060, %v3056
        %v3569 = vpack.c.b16 %v3061, %v3057
        %v3570 = vpack.c.b16 %v3062, %v3058
        %v3571 = vpack.c.b16 %v3063, %v3059
        %v3572 = vpack.c.b16 %v3068, %v3064
        %v3573 = vpack.c.b16 %v3069, %v3065
        %v3574 = vpack.c.b16 %v3070, %v3066
        %v3575 = vpack.c.b16 %v3071, %v3067
        %v3576 = vpack.c.b16 %v3076, %v3072
        %v3577 = vpack.c.b16 %v3077, %v3073
        %v3578 = vpack.c.b16 %v3078, %v3074
        %v3579 = vpack.c.b16 %v3079, %v3075
        %v3580 = vpack.c.b16 %v3084, %v3080
        %v3581 = vpack.c.b16 %v3085, %v3081
        %v3582 = vpack.c.b16 %v3086, %v3082
        %v3583 = vpack.c.b16 %v3087, %v3083
        %v3584 = vpack.c.b16 %v3092, %v3088
        %v3585 = vpack.c.b16 %v3093, %v3089
        %v3586 = vpack.c.b16 %v3094, %v3090
        %v3587 = vpack.c.b16 %v3095, %v3091
        %v3588 = vpack.c.b16 %v3100, %v3096
        %v3589 = vpack.c.b16 %v3101, %v3097
        %v3590 = vpack.c.b16 %v3102, %v3098
        %v3591 = vpack.c.b16 %v3103, %v3099
        %v3592 = vpack.c.b16 %v3108, %v3104
        %v3593 = vpack.c.b16 %v3109, %v3105
        %v3594 = vpack.c.b16 %v3110, %v3106
        %v3595 = vpack.c.b16 %v3111, %v3107
        %v3596 = vpack.c.b16 %v3116, %v3112
        %v3597 = vpack.c.b16 %v3117, %v3113
        %v3598 = vpack.c.b16 %v3118, %v3114
        %v3599 = vpack.c.b16 %v3119, %v3115
        %v3600 = vpack.c.b16 %v3124, %v3120
        %v3601 = vpack.c.b16 %v3125, %v3121
        %v3602 = vpack.c.b16 %v3126, %v3122
        %v3603 = vpack.c.b16 %v3127, %v3123
        %v3604 = vpack.c.b16 %v3132, %v3128
        %v3605 = vpack.c.b16 %v3133, %v3129
        %v3606 = vpack.c.b16 %v3134, %v3130
        %v3607 = vpack.c.b16 %v3135, %v3131
        %v3608 = vpack.c.b16 %v3140, %v3136
        %v3609 = vpack.c.b16 %v3141, %v3137
        %v3610 = vpack.c.b16 %v3142, %v3138
        %v3611 = vpack.c.b16 %v3143, %v3139
        %v3612 = vpack.c.b16 %v3148, %v3144
        %v3613 = vpack.c.b16 %v3149, %v3145
        %v3614 = vpack.c.b16 %v3150, %v3146
        %v3615 = vpack.c.b16 %v3151, %v3147
        %v3616 = vpack.c.b16 %v3156, %v3152
        %v3617 = vpack.c.b16 %v3157, %v3153
        %v3618 = vpack.c.b16 %v3158, %v3154
        %v3619 = vpack.c.b16 %v3159, %v3155
        %v3620 = vpack.c.b16 %v3164, %v3160
        %v3621 = vpack.c.b16 %v3165, %v3161
        %v3622 = vpack.c.b16 %v3166, %v3162
        %v3623 = vpack.c.b16 %v3167, %v3163
        %v3624 = vpack.c.b16 %v3172, %v3168
        %v3625 = vpack.c.b16 %v3173, %v3169
        %v3626 = vpack.c.b16 %v3174, %v3170
        %v3627 = vpack.c.b16 %v3175, %v3171
        %v3628 = vpack.c.b16 %v3180, %v3176
        %v3629 = vpack.c.b16 %v3181, %v3177
        %v3630 = vpack.c.b16 %v3182, %v3178
        %v3631 = vpack.c.b16 %v3183, %v3179
        %v3632 = vpack.c.b16 %v3188, %v3184
        %v3633 = vpack.c.b16 %v3189, %v3185
        %v3634 = vpack.c.b16 %v3190, %v3186
        %v3635 = vpack.c.b16 %v3191, %v3187
        %v3636 = vpack.c.b16 %v3196, %v3192
        %v3637 = vpack.c.b16 %v3197, %v3193
        %v3638 = vpack.c.b16 %v3198, %v3194
        %v3639 = vpack.c.b16 %v3199, %v3195
        %v3640 = vpack.c.b16 %v3204, %v3200
        %v3641 = vpack.c.b16 %v3205, %v3201
        %v3642 = vpack.c.b16 %v3206, %v3202
        %v3643 = vpack.c.b16 %v3207, %v3203
        %v3644 = vpack.c.b16 %v3212, %v3208
        %v3645 = vpack.c.b16 %v3213, %v3209
        %v3646 = vpack.c.b16 %v3214, %v3210
        %v3647 = vpack.c.b16 %v3215, %v3211
        %v3648 = vpack.c.b16 %v3220, %v3216
        %v3649 = vpack.c.b16 %v3221, %v3217
        %v3650 = vpack.c.b16 %v3222, %v3218
        %v3651 = vpack.c.b16 %v3223, %v3219
        %v3652 = vpack.c.b16 %v3228, %v3224
        %v3653 = vpack.c.b16 %v3229, %v3225
        %v3654 = vpack.c.b16 %v3230, %v3226
        %v3655 = vpack.c.b16 %v3231, %v3227
        %v3656 = vpack.c.b16 %v3236, %v3232
        %v3657 = vpack.c.b16 %v3237, %v3233
        %v3658 = vpack.c.b16 %v3238, %v3234
        %v3659 = vpack.c.b16 %v3239, %v3235
        %v3660 = vpack.c.b16 %v3244, %v3240
        %v3661 = vpack.c.b16 %v3245, %v3241
        %v3662 = vpack.c.b16 %v3246, %v3242
        %v3663 = vpack.c.b16 %v3247, %v3243
        %v3664 = vpack.c.b16 %v3252, %v3248
        %v3665 = vpack.c.b16 %v3253, %v3249
        %v3666 = vpack.c.b16 %v3254, %v3250
        %v3667 = vpack.c.b16 %v3255, %v3251
        %v3668 = vpack.c.b16 %v3260, %v3256
        %v3669 = vpack.c.b16 %v3261, %v3257
        %v3670 = vpack.c.b16 %v3262, %v3258
        %v3671 = vpack.c.b16 %v3263, %v3259
        %v3672 = vpack.c.b16 %v3268, %v3264
        %v3673 = vpack.c.b16 %v3269, %v3265
        %v3674 = vpack.c.b16 %v3270, %v3266
        %v3675 = vpack.c.b16 %v3271, %v3267
        %v3676 = vpack.c.b16 %v3276, %v3272
        %v3677 = vpack.c.b16 %v3277, %v3273
        %v3678 = vpack.c.b16 %v3278, %v3274
        %v3679 = vpack.c.b16 %v3279, %v3275
        %v3680 = vpack.c.b16 %v3284, %v3280
        %v3681 = vpack.c.b16 %v3285, %v3281
        %v3682 = vpack.c.b16 %v3286, %v3282
        %v3683 = vpack.c.b16 %v3287, %v3283
        %v3684 = vpack.c.b16 %v3292, %v3288
        %v3685 = vpack.c.b16 %v3293, %v3289
        %v3686 = vpack.c.b16 %v3294, %v3290
        %v3687 = vpack.c.b16 %v3295, %v3291
        %v3688 = vpack.c.b16 %v3300, %v3296
        %v3689 = vpack.c.b16 %v3301, %v3297
        %v3690 = vpack.c.b16 %v3302, %v3298
        %v3691 = vpack.c.b16 %v3303, %v3299
        %v3692 = vpack.c.b16 %v3308, %v3304
        %v3693 = vpack.c.b16 %v3309, %v3305
        %v3694 = vpack.c.b16 %v3310, %v3306
        %v3695 = vpack.c.b16 %v3311, %v3307
        %v3696 = vpack.c.b16 %v3316, %v3312
        %v3697 = vpack.c.b16 %v3317, %v3313
        %v3698 = vpack.c.b16 %v3318, %v3314
        %v3699 = vpack.c.b16 %v3319, %v3315
        %v3700 = vpack.c.b16 %v3324, %v3320
        %v3701 = vpack.c.b16 %v3325, %v3321
        %v3702 = vpack.c.b16 %v3326, %v3322
        %v3703 = vpack.c.b16 %v3327, %v3323
        %v3704 = vpack.c.b16 %v3332, %v3328
        %v3705 = vpack.c.b16 %v3333, %v3329
        %v3706 = vpack.c.b16 %v3334, %v3330
        %v3707 = vpack.c.b16 %v3335, %v3331
        %v3708 = vpack.c.b16 %v3340, %v3336
        %v3709 = vpack.c.b16 %v3341, %v3337
        %v3710 = vpack.c.b16 %v3342, %v3338
        %v3711 = vpack.c.b16 %v3343, %v3339
        %v3712 = vpack.c.b16 %v3348, %v3344
        %v3713 = vpack.c.b16 %v3349, %v3345
        %v3714 = vpack.c.b16 %v3350, %v3346
        %v3715 = vpack.c.b16 %v3351, %v3347
        %v3716 = vpack.c.b16 %v3356, %v3352
        %v3717 = vpack.c.b16 %v3357, %v3353
        %v3718 = vpack.c.b16 %v3358, %v3354
        %v3719 = vpack.c.b16 %v3359, %v3355
        %v3720 = vpack.c.b16 %v3364, %v3360
        %v3721 = vpack.c.b16 %v3365, %v3361
        %v3722 = vpack.c.b16 %v3366, %v3362
        %v3723 = vpack.c.b16 %v3367, %v3363
        %v3724 = vpack.c.b16 %v3372, %v3368
        %v3725 = vpack.c.b16 %v3373, %v3369
        %v3726 = vpack.c.b16 %v3374, %v3370
        %v3727 = vpack.c.b16 %v3375, %v3371
        %v3728 = vpack.c.b16 %v3380, %v3376
        %v3729 = vpack.c.b16 %v3381, %v3377
        %v3730 = vpack.c.b16 %v3382, %v3378
        %v3731 = vpack.c.b16 %v3383, %v3379
        %v3732 = vpack.c.b16 %v3388, %v3384
        %v3733 = vpack.c.b16 %v3389, %v3385
        %v3734 = vpack.c.b16 %v3390, %v3386
        %v3735 = vpack.c.b16 %v3391, %v3387
        %v3736 = vpack.c.b16 %v3396, %v3392
        %v3737 = vpack.c.b16 %v3397, %v3393
        %v3738 = vpack.c.b16 %v3398, %v3394
        %v3739 = vpack.c.b16 %v3399, %v3395
        %v3740 = vpack.c.b16 %v3404, %v3400
        %v3741 = vpack.c.b16 %v3405, %v3401
        %v3742 = vpack.c.b16 %v3406, %v3402
        %v3743 = vpack.c.b16 %v3407, %v3403
        %v3744 = vpack.c.b16 %v3412, %v3408
        %v3745 = vpack.c.b16 %v3413, %v3409
        %v3746 = vpack.c.b16 %v3414, %v3410
        %v3747 = vpack.c.b16 %v3415, %v3411
        %v3748 = vpack.c.b16 %v3420, %v3416
        %v3749 = vpack.c.b16 %v3421, %v3417
        %v3750 = vpack.c.b16 %v3422, %v3418
        %v3751 = vpack.c.b16 %v3423, %v3419
        %v3752 = vpack.c.b16 %v3428, %v3424
        %v3753 = vpack.c.b16 %v3429, %v3425
        %v3754 = vpack.c.b16 %v3430, %v3426
        %v3755 = vpack.c.b16 %v3431, %v3427
        %v3756 = vpack.c.b16 %v3436, %v3432
        %v3757 = vpack.c.b16 %v3437, %v3433
        %v3758 = vpack.c.b16 %v3438, %v3434
        %v3759 = vpack.c.b16 %v3439, %v3435
        %v3760 = vpack.c.b16 %v3444, %v3440
        %v3761 = vpack.c.b16 %v3445, %v3441
        %v3762 = vpack.c.b16 %v3446, %v3442
        %v3763 = vpack.c.b16 %v3447, %v3443
        %v3764 = vpack.c.b16 %v3452, %v3448
        %v3765 = vpack.c.b16 %v3453, %v3449
        %v3766 = vpack.c.b16 %v3454, %v3450
        %v3767 = vpack.c.b16 %v3455, %v3451
        %v3768 = vpack.c.b16 %v3460, %v3456
        %v3769 = vpack.c.b16 %v3461, %v3457
        %v3770 = vpack.c.b16 %v3462, %v3458
        %v3771 = vpack.c.b16 %v3463, %v3459
        %v3772 = vpack.c.b16 %v3468, %v3464
        %v3773 = vpack.c.b16 %v3469, %v3465
        %v3774 = vpack.c.b16 %v3470, %v3466
        %v3775 = vpack.c.b16 %v3471, %v3467
        %v3776 = vpack.c.b16 %v3476, %v3472
        %v3777 = vpack.c.b16 %v3477, %v3473
        %v3778 = vpack.c.b16 %v3478, %v3474
        %v3779 = vpack.c.b16 %v3479, %v3475
        %v3780 = vpack.c.b16 %v3484, %v3480
        %v3781 = vpack.c.b16 %v3485, %v3481
        %v3782 = vpack.c.b16 %v3486, %v3482
        %v3783 = vpack.c.b16 %v3487, %v3483
        %v3784 = vpack.c.b16 %v3492, %v3488
        %v3785 = vpack.c.b16 %v3493, %v3489
        %v3786 = vpack.c.b16 %v3494, %v3490
        %v3787 = vpack.c.b16 %v3495, %v3491
        %v3788 = vpack.c.b16 %v3500, %v3496
        %v3789 = vpack.c.b16 %v3501, %v3497
        %v3790 = vpack.c.b16 %v3502, %v3498
        %v3791 = vpack.c.b16 %v3503, %v3499
        %v3792 = vpack.c.b16 %v3508, %v3504
        %v3793 = vpack.c.b16 %v3509, %v3505
        %v3794 = vpack.c.b16 %v3510, %v3506
        %v3795 = vpack.c.b16 %v3511, %v3507
        %v3796 = vpack.c.b16 %v3516, %v3512
        %v3797 = vpack.c.b16 %v3517, %v3513
        %v3798 = vpack.c.b16 %v3518, %v3514
        %v3799 = vpack.c.b16 %v3519, %v3515
        %v3800 = vpack.c.b16 %v3524, %v3520
        %v3801 = vpack.c.b16 %v3525, %v3521
        %v3802 = vpack.c.b16 %v3526, %v3522
        %v3803 = vpack.c.b16 %v3527, %v3523
        %v3804 = vpack.c.b16 %v3532, %v3528
        %v3805 = vpack.c.b16 %v3533, %v3529
        %v3806 = vpack.c.b16 %v3534, %v3530
        %v3807 = vpack.c.b16 %v3535, %v3531
        %v3808 = vpack.c.b16 %v3540, %v3536
        %v3809 = vpack.c.b16 %v3541, %v3537
        %v3810 = vpack.c.b16 %v3542, %v3538
        %v3811 = vpack.c.b16 %v3543, %v3539
        %v3812 = vpack.c.b16 %v3548, %v3544
        %v3813 = vpack.c.b16 %v3549, %v3545
        %v3814 = vpack.c.b16 %v3550, %v3546
        %v3815 = vpack.c.b16 %v3551, %v3547
        %v3816 = vpack.c.b16 %v3556, %v3552
        %v3817 = vpack.c.b16 %v3557, %v3553
        %v3818 = vpack.c.b16 %v3558, %v3554
        %v3819 = vpack.c.b16 %v3559, %v3555
        %v3820 = vpack.c.b16 %v3564, %v3560
        %v3821 = vpack.c.b16 %v3565, %v3561
        %v3822 = vpack.c.b16 %v3566, %v3562
        %v3823 = vpack.c.b16 %v3567, %v3563
        %4080 = vmatpush.bf16.msra.mxu0 %v3596
        %4081 = vmatpush.bf16.msra.mxu0 %v3592
        %4082 = vmatpush.bf16.msra.mxu0 %v3588
        %4083 = vmatpush.bf16.msra.mxu0 %v3584
        %4084 = vmatpush.bf16.msra.mxu0 %v3580
        %4085 = vmatpush.bf16.msra.mxu0 %v3576
        %4086 = vmatpush.bf16.msra.mxu0 %v3572
        %4087 = vmatpush.bf16.msra.mxu0 %v3568
        %4088 = vmatmul.bf16.gmra.mxu0 %v2502
        %v4089 = vpop.f32.mrf.mxu0
        %v4090 = vadd.f32 %v2792, %v4089
        %v4091 = vpop.f32.mrf.mxu0
        %v4092 = vadd.f32 %v2792, %v4091
        %4093 = vmatmul.bf16.gmra.mxu0 %v2510
        %v4094 = vpop.f32.mrf.mxu0
        %v4095 = vadd.f32 %v2792, %v4094
        %v4096 = vpop.f32.mrf.mxu0
        %v4097 = vadd.f32 %v2792, %v4096
        %4098 = vmatmul.bf16.gmra.mxu0 %v2518
        %v4099 = vpop.f32.mrf.mxu0
        %v4100 = vadd.f32 %v2792, %v4099
        %v4101 = vpop.f32.mrf.mxu0
        %v4102 = vadd.f32 %v2792, %v4101
        %4103 = vmatmul.bf16.gmra.mxu0 %v2526
        %v4104 = vpop.f32.mrf.mxu0
        %v4105 = vadd.f32 %v2792, %v4104
        %v4106 = vpop.f32.mrf.mxu0
        %4107 = vdwg.mxu0
        %4108 = vmatpush.bf16.msra.mxu0 %v3628
        %4109 = vmatpush.bf16.msra.mxu0 %v3624
        %4110 = vmatpush.bf16.msra.mxu0 %v3620
        %4111 = vmatpush.bf16.msra.mxu0 %v3616
        %4112 = vmatpush.bf16.msra.mxu0 %v3612
        %4113 = vmatpush.bf16.msra.mxu0 %v3608
        %4114 = vmatpush.bf16.msra.mxu0 %v3604
        %4115 = vmatpush.bf16.msra.mxu0 %v3600
        %4116 = vmatmul.bf16.gmra.mxu0 %v2503
        %v4117 = vpop.f32.mrf.mxu0
        %v4118 = vadd.f32 %v4090, %v4117
        %v4119 = vpop.f32.mrf.mxu0
        %v4120 = vadd.f32 %v4092, %v4119
        %4121 = vmatmul.bf16.gmra.mxu0 %v2511
        %v4122 = vpop.f32.mrf.mxu0
        %v4123 = vadd.f32 %v4095, %v4122
        %v4124 = vpop.f32.mrf.mxu0
        %v4125 = vadd.f32 %v4097, %v4124
        %4126 = vmatmul.bf16.gmra.mxu0 %v2519
        %v4127 = vpop.f32.mrf.mxu0
        %v4128 = vadd.f32 %v4100, %v4127
        %v4129 = vpop.f32.mrf.mxu0
        %v4130 = vadd.f32 %v4102, %v4129
        %4131 = vmatmul.bf16.gmra.mxu0 %v2527
        %v4132 = vpop.f32.mrf.mxu0
        %v4133 = vadd.f32 %v4105, %v4132
        %v4134 = vpop.f32.mrf.mxu0
        %4135 = vdwg.mxu0
        %4136 = vmatpush.bf16.msra.mxu0 %v3660
        %4137 = vmatpush.bf16.msra.mxu0 %v3656
        %4138 = vmatpush.bf16.msra.mxu0 %v3652
        %4139 = vmatpush.bf16.msra.mxu0 %v3648
        %4140 = vmatpush.bf16.msra.mxu0 %v3644
        %4141 = vmatpush.bf16.msra.mxu0 %v3640
        %4142 = vmatpush.bf16.msra.mxu0 %v3636
        %4143 = vmatpush.bf16.msra.mxu0 %v3632
        %4144 = vmatmul.bf16.gmra.mxu0 %v2504
        %v4145 = vpop.f32.mrf.mxu0
        %v4146 = vadd.f32 %v4118, %v4145
        %v4147 = vpop.f32.mrf.mxu0
        %v4148 = vadd.f32 %v4120, %v4147
        %4149 = vmatmul.bf16.gmra.mxu0 %v2512
        %v4150 = vpop.f32.mrf.mxu0
        %v4151 = vadd.f32 %v4123, %v4150
        %v4152 = vpop.f32.mrf.mxu0
        %v4153 = vadd.f32 %v4125, %v4152
        %4154 = vmatmul.bf16.gmra.mxu0 %v2520
        %v4155 = vpop.f32.mrf.mxu0
        %v4156 = vadd.f32 %v4128, %v4155
        %v4157 = vpop.f32.mrf.mxu0
        %v4158 = vadd.f32 %v4130, %v4157
        %4159 = vmatmul.bf16.gmra.mxu0 %v2528
        %v4160 = vpop.f32.mrf.mxu0
        %v4161 = vadd.f32 %v4133, %v4160
        %v4162 = vpop.f32.mrf.mxu0
        %4163 = vdwg.mxu0
        %4164 = vmatpush.bf16.msra.mxu0 %v3692
        %4165 = vmatpush.bf16.msra.mxu0 %v3688
        %4166 = vmatpush.bf16.msra.mxu0 %v3684
        %4167 = vmatpush.bf16.msra.mxu0 %v3680
        %4168 = vmatpush.bf16.msra.mxu0 %v3676
        %4169 = vmatpush.bf16.msra.mxu0 %v3672
        %4170 = vmatpush.bf16.msra.mxu0 %v3668
        %4171 = vmatpush.bf16.msra.mxu0 %v3664
        %4172 = vmatmul.bf16.gmra.mxu0 %v2505
        %v4173 = vpop.f32.mrf.mxu0
        %v4174 = vadd.f32 %v4146, %v4173
        %v4175 = vpop.f32.mrf.mxu0
        %v4176 = vadd.f32 %v4148, %v4175
        %4177 = vmatmul.bf16.gmra.mxu0 %v2513
        %v4178 = vpop.f32.mrf.mxu0
        %v4179 = vadd.f32 %v4151, %v4178
        %v4180 = vpop.f32.mrf.mxu0
        %v4181 = vadd.f32 %v4153, %v4180
        %4182 = vmatmul.bf16.gmra.mxu0 %v2521
        %v4183 = vpop.f32.mrf.mxu0
        %v4184 = vadd.f32 %v4156, %v4183
        %v4185 = vpop.f32.mrf.mxu0
        %v4186 = vadd.f32 %v4158, %v4185
        %4187 = vmatmul.bf16.gmra.mxu0 %v2529
        %v4188 = vpop.f32.mrf.mxu0
        %v4189 = vadd.f32 %v4161, %v4188
        %v4190 = vpop.f32.mrf.mxu0
        %4191 = vdwg.mxu0
        %4192 = vmatpush.bf16.msra.mxu0 %v3724
        %4193 = vmatpush.bf16.msra.mxu0 %v3720
        %4194 = vmatpush.bf16.msra.mxu0 %v3716
        %4195 = vmatpush.bf16.msra.mxu0 %v3712
        %4196 = vmatpush.bf16.msra.mxu0 %v3708
        %4197 = vmatpush.bf16.msra.mxu0 %v3704
        %4198 = vmatpush.bf16.msra.mxu0 %v3700
        %4199 = vmatpush.bf16.msra.mxu0 %v3696
        %4200 = vmatmul.bf16.gmra.mxu0 %v2506
        %v4201 = vpop.f32.mrf.mxu0
        %v4202 = vadd.f32 %v4174, %v4201
        %v4203 = vpop.f32.mrf.mxu0
        %v4204 = vadd.f32 %v4176, %v4203
        %4205 = vmatmul.bf16.gmra.mxu0 %v2514
        %v4206 = vpop.f32.mrf.mxu0
        %v4207 = vadd.f32 %v4179, %v4206
        %v4208 = vpop.f32.mrf.mxu0
        %v4209 = vadd.f32 %v4181, %v4208
        %4210 = vmatmul.bf16.gmra.mxu0 %v2522
        %v4211 = vpop.f32.mrf.mxu0
        %v4212 = vadd.f32 %v4184, %v4211
        %v4213 = vpop.f32.mrf.mxu0
        %v4214 = vadd.f32 %v4186, %v4213
        %4215 = vmatmul.bf16.gmra.mxu0 %v2530
        %v4216 = vpop.f32.mrf.mxu0
        %v4217 = vadd.f32 %v4189, %v4216
        %v4218 = vpop.f32.mrf.mxu0
        %4219 = vdwg.mxu0
        %4220 = vmatpush.bf16.msra.mxu0 %v3756
        %4221 = vmatpush.bf16.msra.mxu0 %v3752
        %4222 = vmatpush.bf16.msra.mxu0 %v3748
        %4223 = vmatpush.bf16.msra.mxu0 %v3744
        %4224 = vmatpush.bf16.msra.mxu0 %v3740
        %4225 = vmatpush.bf16.msra.mxu0 %v3736
        %4226 = vmatpush.bf16.msra.mxu0 %v3732
        %4227 = vmatpush.bf16.msra.mxu0 %v3728
        %4228 = vmatmul.bf16.gmra.mxu0 %v2507
        %v4229 = vpop.f32.mrf.mxu0
        %v4230 = vadd.f32 %v4202, %v4229
        %v4231 = vpop.f32.mrf.mxu0
        %v4232 = vadd.f32 %v4204, %v4231
        %4233 = vmatmul.bf16.gmra.mxu0 %v2515
        %v4234 = vpop.f32.mrf.mxu0
        %v4235 = vadd.f32 %v4207, %v4234
        %v4236 = vpop.f32.mrf.mxu0
        %v4237 = vadd.f32 %v4209, %v4236
        %4238 = vmatmul.bf16.gmra.mxu0 %v2523
        %v4239 = vpop.f32.mrf.mxu0
        %v4240 = vadd.f32 %v4212, %v4239
        %v4241 = vpop.f32.mrf.mxu0
        %v4242 = vadd.f32 %v4214, %v4241
        %4243 = vmatmul.bf16.gmra.mxu0 %v2531
        %v4244 = vpop.f32.mrf.mxu0
        %v4245 = vadd.f32 %v4217, %v4244
        %v4246 = vpop.f32.mrf.mxu0
        %4247 = vdwg.mxu0
        %4248 = vmatpush.bf16.msra.mxu0 %v3788
        %4249 = vmatpush.bf16.msra.mxu0 %v3784
        %4250 = vmatpush.bf16.msra.mxu0 %v3780
        %4251 = vmatpush.bf16.msra.mxu0 %v3776
        %4252 = vmatpush.bf16.msra.mxu0 %v3772
        %4253 = vmatpush.bf16.msra.mxu0 %v3768
        %4254 = vmatpush.bf16.msra.mxu0 %v3764
        %4255 = vmatpush.bf16.msra.mxu0 %v3760
        %4256 = vmatmul.bf16.gmra.mxu0 %v2508
        %v4257 = vpop.f32.mrf.mxu0
        %v4258 = vadd.f32 %v4230, %v4257
        %v4259 = vpop.f32.mrf.mxu0
        %v4260 = vadd.f32 %v4232, %v4259
        %4261 = vmatmul.bf16.gmra.mxu0 %v2516
        %v4262 = vpop.f32.mrf.mxu0
        %v4263 = vadd.f32 %v4235, %v4262
        %v4264 = vpop.f32.mrf.mxu0
        %v4265 = vadd.f32 %v4237, %v4264
        %4266 = vmatmul.bf16.gmra.mxu0 %v2524
        %v4267 = vpop.f32.mrf.mxu0
        %v4268 = vadd.f32 %v4240, %v4267
        %v4269 = vpop.f32.mrf.mxu0
        %v4270 = vadd.f32 %v4242, %v4269
        %4271 = vmatmul.bf16.gmra.mxu0 %v2532
        %v4272 = vpop.f32.mrf.mxu0
        %v4273 = vadd.f32 %v4245, %v4272
        %v4274 = vpop.f32.mrf.mxu0
        %4275 = vdwg.mxu0
        %4276 = vmatpush.bf16.msra.mxu0 %v3820
        %4277 = vmatpush.bf16.msra.mxu0 %v3816
        %4278 = vmatpush.bf16.msra.mxu0 %v3812
        %4279 = vmatpush.bf16.msra.mxu0 %v3808
        %4280 = vmatpush.bf16.msra.mxu0 %v3804
        %4281 = vmatpush.bf16.msra.mxu0 %v3800
        %4282 = vmatpush.bf16.msra.mxu0 %v3796
        %4283 = vmatpush.bf16.msra.mxu0 %v3792
        %4284 = vmatmul.bf16.gmra.mxu0 %v2509
        %v4285 = vpop.f32.mrf.mxu0
        %v4286 = vadd.f32 %v4258, %v4285
        %v4287 = vpop.f32.mrf.mxu0
        %v4288 = vadd.f32 %v4260, %v4287
        %4289 = vmatmul.bf16.gmra.mxu0 %v2517
        %v4290 = vpop.f32.mrf.mxu0
        %v4291 = vadd.f32 %v4263, %v4290
        %v4292 = vpop.f32.mrf.mxu0
        %v4293 = vadd.f32 %v4265, %v4292
        %4294 = vmatmul.bf16.gmra.mxu0 %v2525
        %v4295 = vpop.f32.mrf.mxu0
        %v4296 = vadd.f32 %v4268, %v4295
        %v4297 = vpop.f32.mrf.mxu0
        %v4298 = vadd.f32 %v4270, %v4297
        %4299 = vmatmul.bf16.gmra.mxu0 %v2533
        %v4300 = vpop.f32.mrf.mxu0
        %v4301 = vadd.f32 %v4273, %v4300
        %v4302 = vpop.f32.mrf.mxu0
        %4303 = vdwg.mxu0
        %4304 = vmatpush.bf16.msra.mxu0 %v3597
        %4305 = vmatpush.bf16.msra.mxu0 %v3593
        %4306 = vmatpush.bf16.msra.mxu0 %v3589
        %4307 = vmatpush.bf16.msra.mxu0 %v3585
        %4308 = vmatpush.bf16.msra.mxu0 %v3581
        %4309 = vmatpush.bf16.msra.mxu0 %v3577
        %4310 = vmatpush.bf16.msra.mxu0 %v3573
        %4311 = vmatpush.bf16.msra.mxu0 %v3569
        %4312 = vmatmul.bf16.gmra.mxu0 %v2502
        %v4313 = vpop.f32.mrf.mxu0
        %v4314 = vadd.f32 %v2793, %v4313
        %v4315 = vpop.f32.mrf.mxu0
        %v4316 = vadd.f32 %v2793, %v4315
        %4317 = vmatmul.bf16.gmra.mxu0 %v2510
        %v4318 = vpop.f32.mrf.mxu0
        %v4319 = vadd.f32 %v2793, %v4318
        %v4320 = vpop.f32.mrf.mxu0
        %v4321 = vadd.f32 %v2793, %v4320
        %4322 = vmatmul.bf16.gmra.mxu0 %v2518
        %v4323 = vpop.f32.mrf.mxu0
        %v4324 = vadd.f32 %v2793, %v4323
        %v4325 = vpop.f32.mrf.mxu0
        %v4326 = vadd.f32 %v2793, %v4325
        %4327 = vmatmul.bf16.gmra.mxu0 %v2526
        %v4328 = vpop.f32.mrf.mxu0
        %v4329 = vadd.f32 %v2793, %v4328
        %v4330 = vpop.f32.mrf.mxu0
        %4331 = vdwg.mxu0
        %4332 = vmatpush.bf16.msra.mxu0 %v3629
        %4333 = vmatpush.bf16.msra.mxu0 %v3625
        %4334 = vmatpush.bf16.msra.mxu0 %v3621
        %4335 = vmatpush.bf16.msra.mxu0 %v3617
        %4336 = vmatpush.bf16.msra.mxu0 %v3613
        %4337 = vmatpush.bf16.msra.mxu0 %v3609
        %4338 = vmatpush.bf16.msra.mxu0 %v3605
        %4339 = vmatpush.bf16.msra.mxu0 %v3601
        %4340 = vmatmul.bf16.gmra.mxu0 %v2503
        %v4341 = vpop.f32.mrf.mxu0
        %v4342 = vadd.f32 %v4314, %v4341
        %v4343 = vpop.f32.mrf.mxu0
        %v4344 = vadd.f32 %v4316, %v4343
        %4345 = vmatmul.bf16.gmra.mxu0 %v2511
        %v4346 = vpop.f32.mrf.mxu0
        %v4347 = vadd.f32 %v4319, %v4346
        %v4348 = vpop.f32.mrf.mxu0
        %v4349 = vadd.f32 %v4321, %v4348
        %4350 = vmatmul.bf16.gmra.mxu0 %v2519
        %v4351 = vpop.f32.mrf.mxu0
        %v4352 = vadd.f32 %v4324, %v4351
        %v4353 = vpop.f32.mrf.mxu0
        %v4354 = vadd.f32 %v4326, %v4353
        %4355 = vmatmul.bf16.gmra.mxu0 %v2527
        %v4356 = vpop.f32.mrf.mxu0
        %v4357 = vadd.f32 %v4329, %v4356
        %v4358 = vpop.f32.mrf.mxu0
        %4359 = vdwg.mxu0
        %4360 = vmatpush.bf16.msra.mxu0 %v3661
        %4361 = vmatpush.bf16.msra.mxu0 %v3657
        %4362 = vmatpush.bf16.msra.mxu0 %v3653
        %4363 = vmatpush.bf16.msra.mxu0 %v3649
        %4364 = vmatpush.bf16.msra.mxu0 %v3645
        %4365 = vmatpush.bf16.msra.mxu0 %v3641
        %4366 = vmatpush.bf16.msra.mxu0 %v3637
        %4367 = vmatpush.bf16.msra.mxu0 %v3633
        %4368 = vmatmul.bf16.gmra.mxu0 %v2504
        %v4369 = vpop.f32.mrf.mxu0
        %v4370 = vadd.f32 %v4342, %v4369
        %v4371 = vpop.f32.mrf.mxu0
        %v4372 = vadd.f32 %v4344, %v4371
        %4373 = vmatmul.bf16.gmra.mxu0 %v2512
        %v4374 = vpop.f32.mrf.mxu0
        %v4375 = vadd.f32 %v4347, %v4374
        %v4376 = vpop.f32.mrf.mxu0
        %v4377 = vadd.f32 %v4349, %v4376
        %4378 = vmatmul.bf16.gmra.mxu0 %v2520
        %v4379 = vpop.f32.mrf.mxu0
        %v4380 = vadd.f32 %v4352, %v4379
        %v4381 = vpop.f32.mrf.mxu0
        %v4382 = vadd.f32 %v4354, %v4381
        %4383 = vmatmul.bf16.gmra.mxu0 %v2528
        %v4384 = vpop.f32.mrf.mxu0
        %v4385 = vadd.f32 %v4357, %v4384
        %v4386 = vpop.f32.mrf.mxu0
        %4387 = vdwg.mxu0
        %4388 = vmatpush.bf16.msra.mxu0 %v3693
        %4389 = vmatpush.bf16.msra.mxu0 %v3689
        %4390 = vmatpush.bf16.msra.mxu0 %v3685
        %4391 = vmatpush.bf16.msra.mxu0 %v3681
        %4392 = vmatpush.bf16.msra.mxu0 %v3677
        %4393 = vmatpush.bf16.msra.mxu0 %v3673
        %4394 = vmatpush.bf16.msra.mxu0 %v3669
        %4395 = vmatpush.bf16.msra.mxu0 %v3665
        %4396 = vmatmul.bf16.gmra.mxu0 %v2505
        %v4397 = vpop.f32.mrf.mxu0
        %v4398 = vadd.f32 %v4370, %v4397
        %v4399 = vpop.f32.mrf.mxu0
        %v4400 = vadd.f32 %v4372, %v4399
        %4401 = vmatmul.bf16.gmra.mxu0 %v2513
        %v4402 = vpop.f32.mrf.mxu0
        %v4403 = vadd.f32 %v4375, %v4402
        %v4404 = vpop.f32.mrf.mxu0
        %v4405 = vadd.f32 %v4377, %v4404
        %4406 = vmatmul.bf16.gmra.mxu0 %v2521
        %v4407 = vpop.f32.mrf.mxu0
        %v4408 = vadd.f32 %v4380, %v4407
        %v4409 = vpop.f32.mrf.mxu0
        %v4410 = vadd.f32 %v4382, %v4409
        %4411 = vmatmul.bf16.gmra.mxu0 %v2529
        %v4412 = vpop.f32.mrf.mxu0
        %v4413 = vadd.f32 %v4385, %v4412
        %v4414 = vpop.f32.mrf.mxu0
        %4415 = vdwg.mxu0
        %4416 = vmatpush.bf16.msra.mxu0 %v3725
        %4417 = vmatpush.bf16.msra.mxu0 %v3721
        %4418 = vmatpush.bf16.msra.mxu0 %v3717
        %4419 = vmatpush.bf16.msra.mxu0 %v3713
        %4420 = vmatpush.bf16.msra.mxu0 %v3709
        %4421 = vmatpush.bf16.msra.mxu0 %v3705
        %4422 = vmatpush.bf16.msra.mxu0 %v3701
        %4423 = vmatpush.bf16.msra.mxu0 %v3697
        %4424 = vmatmul.bf16.gmra.mxu0 %v2506
        %v4425 = vpop.f32.mrf.mxu0
        %v4426 = vadd.f32 %v4398, %v4425
        %v4427 = vpop.f32.mrf.mxu0
        %v4428 = vadd.f32 %v4400, %v4427
        %4429 = vmatmul.bf16.gmra.mxu0 %v2514
        %v4430 = vpop.f32.mrf.mxu0
        %v4431 = vadd.f32 %v4403, %v4430
        %v4432 = vpop.f32.mrf.mxu0
        %v4433 = vadd.f32 %v4405, %v4432
        %4434 = vmatmul.bf16.gmra.mxu0 %v2522
        %v4435 = vpop.f32.mrf.mxu0
        %v4436 = vadd.f32 %v4408, %v4435
        %v4437 = vpop.f32.mrf.mxu0
        %v4438 = vadd.f32 %v4410, %v4437
        %4439 = vmatmul.bf16.gmra.mxu0 %v2530
        %v4440 = vpop.f32.mrf.mxu0
        %v4441 = vadd.f32 %v4413, %v4440
        %v4442 = vpop.f32.mrf.mxu0
        %4443 = vdwg.mxu0
        %4444 = vmatpush.bf16.msra.mxu0 %v3757
        %4445 = vmatpush.bf16.msra.mxu0 %v3753
        %4446 = vmatpush.bf16.msra.mxu0 %v3749
        %4447 = vmatpush.bf16.msra.mxu0 %v3745
        %4448 = vmatpush.bf16.msra.mxu0 %v3741
        %4449 = vmatpush.bf16.msra.mxu0 %v3737
        %4450 = vmatpush.bf16.msra.mxu0 %v3733
        %4451 = vmatpush.bf16.msra.mxu0 %v3729
        %4452 = vmatmul.bf16.gmra.mxu0 %v2507
        %v4453 = vpop.f32.mrf.mxu0
        %v4454 = vadd.f32 %v4426, %v4453
        %v4455 = vpop.f32.mrf.mxu0
        %v4456 = vadd.f32 %v4428, %v4455
        %4457 = vmatmul.bf16.gmra.mxu0 %v2515
        %v4458 = vpop.f32.mrf.mxu0
        %v4459 = vadd.f32 %v4431, %v4458
        %v4460 = vpop.f32.mrf.mxu0
        %v4461 = vadd.f32 %v4433, %v4460
        %4462 = vmatmul.bf16.gmra.mxu0 %v2523
        %v4463 = vpop.f32.mrf.mxu0
        %v4464 = vadd.f32 %v4436, %v4463
        %v4465 = vpop.f32.mrf.mxu0
        %v4466 = vadd.f32 %v4438, %v4465
        %4467 = vmatmul.bf16.gmra.mxu0 %v2531
        %v4468 = vpop.f32.mrf.mxu0
        %v4469 = vadd.f32 %v4441, %v4468
        %v4470 = vpop.f32.mrf.mxu0
        %4471 = vdwg.mxu0
        %4472 = vmatpush.bf16.msra.mxu0 %v3789
        %4473 = vmatpush.bf16.msra.mxu0 %v3785
        %4474 = vmatpush.bf16.msra.mxu0 %v3781
        %4475 = vmatpush.bf16.msra.mxu0 %v3777
        %4476 = vmatpush.bf16.msra.mxu0 %v3773
        %4477 = vmatpush.bf16.msra.mxu0 %v3769
        %4478 = vmatpush.bf16.msra.mxu0 %v3765
        %4479 = vmatpush.bf16.msra.mxu0 %v3761
        %4480 = vmatmul.bf16.gmra.mxu0 %v2508
        %v4481 = vpop.f32.mrf.mxu0
        %v4482 = vadd.f32 %v4454, %v4481
        %v4483 = vpop.f32.mrf.mxu0
        %v4484 = vadd.f32 %v4456, %v4483
        %4485 = vmatmul.bf16.gmra.mxu0 %v2516
        %v4486 = vpop.f32.mrf.mxu0
        %v4487 = vadd.f32 %v4459, %v4486
        %v4488 = vpop.f32.mrf.mxu0
        %v4489 = vadd.f32 %v4461, %v4488
        %4490 = vmatmul.bf16.gmra.mxu0 %v2524
        %v4491 = vpop.f32.mrf.mxu0
        %v4492 = vadd.f32 %v4464, %v4491
        %v4493 = vpop.f32.mrf.mxu0
        %v4494 = vadd.f32 %v4466, %v4493
        %4495 = vmatmul.bf16.gmra.mxu0 %v2532
        %v4496 = vpop.f32.mrf.mxu0
        %v4497 = vadd.f32 %v4469, %v4496
        %v4498 = vpop.f32.mrf.mxu0
        %4499 = vdwg.mxu0
        %4500 = vmatpush.bf16.msra.mxu0 %v3821
        %4501 = vmatpush.bf16.msra.mxu0 %v3817
        %4502 = vmatpush.bf16.msra.mxu0 %v3813
        %4503 = vmatpush.bf16.msra.mxu0 %v3809
        %4504 = vmatpush.bf16.msra.mxu0 %v3805
        %4505 = vmatpush.bf16.msra.mxu0 %v3801
        %4506 = vmatpush.bf16.msra.mxu0 %v3797
        %4507 = vmatpush.bf16.msra.mxu0 %v3793
        %4508 = vmatmul.bf16.gmra.mxu0 %v2509
        %v4509 = vpop.f32.mrf.mxu0
        %v4510 = vadd.f32 %v4482, %v4509
        %v4511 = vpop.f32.mrf.mxu0
        %v4512 = vadd.f32 %v4484, %v4511
        %4513 = vmatmul.bf16.gmra.mxu0 %v2517
        %v4514 = vpop.f32.mrf.mxu0
        %v4515 = vadd.f32 %v4487, %v4514
        %v4516 = vpop.f32.mrf.mxu0
        %v4517 = vadd.f32 %v4489, %v4516
        %4518 = vmatmul.bf16.gmra.mxu0 %v2525
        %v4519 = vpop.f32.mrf.mxu0
        %v4520 = vadd.f32 %v4492, %v4519
        %v4521 = vpop.f32.mrf.mxu0
        %v4522 = vadd.f32 %v4494, %v4521
        %4523 = vmatmul.bf16.gmra.mxu0 %v2533
        %v4524 = vpop.f32.mrf.mxu0
        %v4525 = vadd.f32 %v4497, %v4524
        %v4526 = vpop.f32.mrf.mxu0
        %4527 = vdwg.mxu0
        %4528 = vmatpush.bf16.msra.mxu0 %v3598
        %4529 = vmatpush.bf16.msra.mxu0 %v3594
        %4530 = vmatpush.bf16.msra.mxu0 %v3590
        %4531 = vmatpush.bf16.msra.mxu0 %v3586
        %4532 = vmatpush.bf16.msra.mxu0 %v3582
        %4533 = vmatpush.bf16.msra.mxu0 %v3578
        %4534 = vmatpush.bf16.msra.mxu0 %v3574
        %4535 = vmatpush.bf16.msra.mxu0 %v3570
        %4536 = vmatmul.bf16.gmra.mxu0 %v2502
        %v4537 = vpop.f32.mrf.mxu0
        %v4538 = vadd.f32 %v2794, %v4537
        %v4539 = vpop.f32.mrf.mxu0
        %v4540 = vadd.f32 %v2794, %v4539
        %4541 = vmatmul.bf16.gmra.mxu0 %v2510
        %v4542 = vpop.f32.mrf.mxu0
        %v4543 = vadd.f32 %v2794, %v4542
        %v4544 = vpop.f32.mrf.mxu0
        %v4545 = vadd.f32 %v2794, %v4544
        %4546 = vmatmul.bf16.gmra.mxu0 %v2518
        %v4547 = vpop.f32.mrf.mxu0
        %v4548 = vadd.f32 %v2794, %v4547
        %v4549 = vpop.f32.mrf.mxu0
        %v4550 = vadd.f32 %v2794, %v4549
        %4551 = vmatmul.bf16.gmra.mxu0 %v2526
        %v4552 = vpop.f32.mrf.mxu0
        %v4553 = vadd.f32 %v2794, %v4552
        %v4554 = vpop.f32.mrf.mxu0
        %4555 = vdwg.mxu0
        %4556 = vmatpush.bf16.msra.mxu0 %v3630
        %4557 = vmatpush.bf16.msra.mxu0 %v3626
        %4558 = vmatpush.bf16.msra.mxu0 %v3622
        %4559 = vmatpush.bf16.msra.mxu0 %v3618
        %4560 = vmatpush.bf16.msra.mxu0 %v3614
        %4561 = vmatpush.bf16.msra.mxu0 %v3610
        %4562 = vmatpush.bf16.msra.mxu0 %v3606
        %4563 = vmatpush.bf16.msra.mxu0 %v3602
        %4564 = vmatmul.bf16.gmra.mxu0 %v2503
        %v4565 = vpop.f32.mrf.mxu0
        %v4566 = vadd.f32 %v4538, %v4565
        %v4567 = vpop.f32.mrf.mxu0
        %v4568 = vadd.f32 %v4540, %v4567
        %4569 = vmatmul.bf16.gmra.mxu0 %v2511
        %v4570 = vpop.f32.mrf.mxu0
        %v4571 = vadd.f32 %v4543, %v4570
        %v4572 = vpop.f32.mrf.mxu0
        %v4573 = vadd.f32 %v4545, %v4572
        %4574 = vmatmul.bf16.gmra.mxu0 %v2519
        %v4575 = vpop.f32.mrf.mxu0
        %v4576 = vadd.f32 %v4548, %v4575
        %v4577 = vpop.f32.mrf.mxu0
        %v4578 = vadd.f32 %v4550, %v4577
        %4579 = vmatmul.bf16.gmra.mxu0 %v2527
        %v4580 = vpop.f32.mrf.mxu0
        %v4581 = vadd.f32 %v4553, %v4580
        %v4582 = vpop.f32.mrf.mxu0
        %4583 = vdwg.mxu0
        %4584 = vmatpush.bf16.msra.mxu0 %v3662
        %4585 = vmatpush.bf16.msra.mxu0 %v3658
        %4586 = vmatpush.bf16.msra.mxu0 %v3654
        %4587 = vmatpush.bf16.msra.mxu0 %v3650
        %4588 = vmatpush.bf16.msra.mxu0 %v3646
        %4589 = vmatpush.bf16.msra.mxu0 %v3642
        %4590 = vmatpush.bf16.msra.mxu0 %v3638
        %4591 = vmatpush.bf16.msra.mxu0 %v3634
        %4592 = vmatmul.bf16.gmra.mxu0 %v2504
        %v4593 = vpop.f32.mrf.mxu0
        %v4594 = vadd.f32 %v4566, %v4593
        %v4595 = vpop.f32.mrf.mxu0
        %v4596 = vadd.f32 %v4568, %v4595
        %4597 = vmatmul.bf16.gmra.mxu0 %v2512
        %v4598 = vpop.f32.mrf.mxu0
        %v4599 = vadd.f32 %v4571, %v4598
        %v4600 = vpop.f32.mrf.mxu0
        %v4601 = vadd.f32 %v4573, %v4600
        %4602 = vmatmul.bf16.gmra.mxu0 %v2520
        %v4603 = vpop.f32.mrf.mxu0
        %v4604 = vadd.f32 %v4576, %v4603
        %v4605 = vpop.f32.mrf.mxu0
        %v4606 = vadd.f32 %v4578, %v4605
        %4607 = vmatmul.bf16.gmra.mxu0 %v2528
        %v4608 = vpop.f32.mrf.mxu0
        %v4609 = vadd.f32 %v4581, %v4608
        %v4610 = vpop.f32.mrf.mxu0
        %4611 = vdwg.mxu0
        %4612 = vmatpush.bf16.msra.mxu0 %v3694
        %4613 = vmatpush.bf16.msra.mxu0 %v3690
        %4614 = vmatpush.bf16.msra.mxu0 %v3686
        %4615 = vmatpush.bf16.msra.mxu0 %v3682
        %4616 = vmatpush.bf16.msra.mxu0 %v3678
        %4617 = vmatpush.bf16.msra.mxu0 %v3674
        %4618 = vmatpush.bf16.msra.mxu0 %v3670
        %4619 = vmatpush.bf16.msra.mxu0 %v3666
        %4620 = vmatmul.bf16.gmra.mxu0 %v2505
        %v4621 = vpop.f32.mrf.mxu0
        %v4622 = vadd.f32 %v4594, %v4621
        %v4623 = vpop.f32.mrf.mxu0
        %v4624 = vadd.f32 %v4596, %v4623
        %4625 = vmatmul.bf16.gmra.mxu0 %v2513
        %v4626 = vpop.f32.mrf.mxu0
        %v4627 = vadd.f32 %v4599, %v4626
        %v4628 = vpop.f32.mrf.mxu0
        %v4629 = vadd.f32 %v4601, %v4628
        %4630 = vmatmul.bf16.gmra.mxu0 %v2521
        %v4631 = vpop.f32.mrf.mxu0
        %v4632 = vadd.f32 %v4604, %v4631
        %v4633 = vpop.f32.mrf.mxu0
        %v4634 = vadd.f32 %v4606, %v4633
        %4635 = vmatmul.bf16.gmra.mxu0 %v2529
        %v4636 = vpop.f32.mrf.mxu0
        %v4637 = vadd.f32 %v4609, %v4636
        %v4638 = vpop.f32.mrf.mxu0
        %4639 = vdwg.mxu0
        %4640 = vmatpush.bf16.msra.mxu0 %v3726
        %4641 = vmatpush.bf16.msra.mxu0 %v3722
        %4642 = vmatpush.bf16.msra.mxu0 %v3718
        %4643 = vmatpush.bf16.msra.mxu0 %v3714
        %4644 = vmatpush.bf16.msra.mxu0 %v3710
        %4645 = vmatpush.bf16.msra.mxu0 %v3706
        %4646 = vmatpush.bf16.msra.mxu0 %v3702
        %4647 = vmatpush.bf16.msra.mxu0 %v3698
        %4648 = vmatmul.bf16.gmra.mxu0 %v2506
        %v4649 = vpop.f32.mrf.mxu0
        %v4650 = vadd.f32 %v4622, %v4649
        %v4651 = vpop.f32.mrf.mxu0
        %v4652 = vadd.f32 %v4624, %v4651
        %4653 = vmatmul.bf16.gmra.mxu0 %v2514
        %v4654 = vpop.f32.mrf.mxu0
        %v4655 = vadd.f32 %v4627, %v4654
        %v4656 = vpop.f32.mrf.mxu0
        %v4657 = vadd.f32 %v4629, %v4656
        %4658 = vmatmul.bf16.gmra.mxu0 %v2522
        %v4659 = vpop.f32.mrf.mxu0
        %v4660 = vadd.f32 %v4632, %v4659
        %v4661 = vpop.f32.mrf.mxu0
        %v4662 = vadd.f32 %v4634, %v4661
        %4663 = vmatmul.bf16.gmra.mxu0 %v2530
        %v4664 = vpop.f32.mrf.mxu0
        %v4665 = vadd.f32 %v4637, %v4664
        %v4666 = vpop.f32.mrf.mxu0
        %4667 = vdwg.mxu0
        %4668 = vmatpush.bf16.msra.mxu0 %v3758
        %4669 = vmatpush.bf16.msra.mxu0 %v3754
        %4670 = vmatpush.bf16.msra.mxu0 %v3750
        %4671 = vmatpush.bf16.msra.mxu0 %v3746
        %4672 = vmatpush.bf16.msra.mxu0 %v3742
        %4673 = vmatpush.bf16.msra.mxu0 %v3738
        %4674 = vmatpush.bf16.msra.mxu0 %v3734
        %4675 = vmatpush.bf16.msra.mxu0 %v3730
        %4676 = vmatmul.bf16.gmra.mxu0 %v2507
        %v4677 = vpop.f32.mrf.mxu0
        %v4678 = vadd.f32 %v4650, %v4677
        %v4679 = vpop.f32.mrf.mxu0
        %v4680 = vadd.f32 %v4652, %v4679
        %4681 = vmatmul.bf16.gmra.mxu0 %v2515
        %v4682 = vpop.f32.mrf.mxu0
        %v4683 = vadd.f32 %v4655, %v4682
        %v4684 = vpop.f32.mrf.mxu0
        %v4685 = vadd.f32 %v4657, %v4684
        %4686 = vmatmul.bf16.gmra.mxu0 %v2523
        %v4687 = vpop.f32.mrf.mxu0
        %v4688 = vadd.f32 %v4660, %v4687
        %v4689 = vpop.f32.mrf.mxu0
        %v4690 = vadd.f32 %v4662, %v4689
        %4691 = vmatmul.bf16.gmra.mxu0 %v2531
        %v4692 = vpop.f32.mrf.mxu0
        %v4693 = vadd.f32 %v4665, %v4692
        %v4694 = vpop.f32.mrf.mxu0
        %4695 = vdwg.mxu0
        %4696 = vmatpush.bf16.msra.mxu0 %v3790
        %4697 = vmatpush.bf16.msra.mxu0 %v3786
        %4698 = vmatpush.bf16.msra.mxu0 %v3782
        %4699 = vmatpush.bf16.msra.mxu0 %v3778
        %4700 = vmatpush.bf16.msra.mxu0 %v3774
        %4701 = vmatpush.bf16.msra.mxu0 %v3770
        %4702 = vmatpush.bf16.msra.mxu0 %v3766
        %4703 = vmatpush.bf16.msra.mxu0 %v3762
        %4704 = vmatmul.bf16.gmra.mxu0 %v2508
        %v4705 = vpop.f32.mrf.mxu0
        %v4706 = vadd.f32 %v4678, %v4705
        %v4707 = vpop.f32.mrf.mxu0
        %v4708 = vadd.f32 %v4680, %v4707
        %4709 = vmatmul.bf16.gmra.mxu0 %v2516
        %v4710 = vpop.f32.mrf.mxu0
        %v4711 = vadd.f32 %v4683, %v4710
        %v4712 = vpop.f32.mrf.mxu0
        %v4713 = vadd.f32 %v4685, %v4712
        %4714 = vmatmul.bf16.gmra.mxu0 %v2524
        %v4715 = vpop.f32.mrf.mxu0
        %v4716 = vadd.f32 %v4688, %v4715
        %v4717 = vpop.f32.mrf.mxu0
        %v4718 = vadd.f32 %v4690, %v4717
        %4719 = vmatmul.bf16.gmra.mxu0 %v2532
        %v4720 = vpop.f32.mrf.mxu0
        %v4721 = vadd.f32 %v4693, %v4720
        %v4722 = vpop.f32.mrf.mxu0
        %4723 = vdwg.mxu0
        %4724 = vmatpush.bf16.msra.mxu0 %v3822
        %4725 = vmatpush.bf16.msra.mxu0 %v3818
        %4726 = vmatpush.bf16.msra.mxu0 %v3814
        %4727 = vmatpush.bf16.msra.mxu0 %v3810
        %4728 = vmatpush.bf16.msra.mxu0 %v3806
        %4729 = vmatpush.bf16.msra.mxu0 %v3802
        %4730 = vmatpush.bf16.msra.mxu0 %v3798
        %4731 = vmatpush.bf16.msra.mxu0 %v3794
        %4732 = vmatmul.bf16.gmra.mxu0 %v2509
        %v4733 = vpop.f32.mrf.mxu0
        %v4734 = vadd.f32 %v4706, %v4733
        %v4735 = vpop.f32.mrf.mxu0
        %v4736 = vadd.f32 %v4708, %v4735
        %4737 = vmatmul.bf16.gmra.mxu0 %v2517
        %v4738 = vpop.f32.mrf.mxu0
        %v4739 = vadd.f32 %v4711, %v4738
        %v4740 = vpop.f32.mrf.mxu0
        %v4741 = vadd.f32 %v4713, %v4740
        %4742 = vmatmul.bf16.gmra.mxu0 %v2525
        %v4743 = vpop.f32.mrf.mxu0
        %v4744 = vadd.f32 %v4716, %v4743
        %v4745 = vpop.f32.mrf.mxu0
        %v4746 = vadd.f32 %v4718, %v4745
        %4747 = vmatmul.bf16.gmra.mxu0 %v2533
        %v4748 = vpop.f32.mrf.mxu0
        %v4749 = vadd.f32 %v4721, %v4748
        %v4750 = vpop.f32.mrf.mxu0
        %4751 = vdwg.mxu0
        %4752 = vmatpush.bf16.msra.mxu0 %v3599
        %4753 = vmatpush.bf16.msra.mxu0 %v3595
        %4754 = vmatpush.bf16.msra.mxu0 %v3591
        %4755 = vmatpush.bf16.msra.mxu0 %v3587
        %4756 = vmatpush.bf16.msra.mxu0 %v3583
        %4757 = vmatpush.bf16.msra.mxu0 %v3579
        %4758 = vmatpush.bf16.msra.mxu0 %v3575
        %4759 = vmatpush.bf16.msra.mxu0 %v3571
        %4760 = vmatmul.bf16.gmra.mxu0 %v2502
        %v4761 = vpop.f32.mrf.mxu0
        %v4762 = vadd.f32 %v2795, %v4761
        %v4763 = vpop.f32.mrf.mxu0
        %v4764 = vadd.f32 %v2795, %v4763
        %4765 = vmatmul.bf16.gmra.mxu0 %v2510
        %v4766 = vpop.f32.mrf.mxu0
        %v4767 = vadd.f32 %v2795, %v4766
        %v4768 = vpop.f32.mrf.mxu0
        %v4769 = vadd.f32 %v2795, %v4768
        %4770 = vmatmul.bf16.gmra.mxu0 %v2518
        %v4771 = vpop.f32.mrf.mxu0
        %v4772 = vadd.f32 %v2795, %v4771
        %v4773 = vpop.f32.mrf.mxu0
        %v4774 = vadd.f32 %v2795, %v4773
        %4775 = vmatmul.bf16.gmra.mxu0 %v2526
        %v4776 = vpop.f32.mrf.mxu0
        %v4777 = vadd.f32 %v2795, %v4776
        %v4778 = vpop.f32.mrf.mxu0
        %4779 = vdwg.mxu0
        %4780 = vmatpush.bf16.msra.mxu0 %v3631
        %4781 = vmatpush.bf16.msra.mxu0 %v3627
        %4782 = vmatpush.bf16.msra.mxu0 %v3623
        %4783 = vmatpush.bf16.msra.mxu0 %v3619
        %4784 = vmatpush.bf16.msra.mxu0 %v3615
        %4785 = vmatpush.bf16.msra.mxu0 %v3611
        %4786 = vmatpush.bf16.msra.mxu0 %v3607
        %4787 = vmatpush.bf16.msra.mxu0 %v3603
        %4788 = vmatmul.bf16.gmra.mxu0 %v2503
        %v4789 = vpop.f32.mrf.mxu0
        %v4790 = vadd.f32 %v4762, %v4789
        %v4791 = vpop.f32.mrf.mxu0
        %v4792 = vadd.f32 %v4764, %v4791
        %4793 = vmatmul.bf16.gmra.mxu0 %v2511
        %v4794 = vpop.f32.mrf.mxu0
        %v4795 = vadd.f32 %v4767, %v4794
        %v4796 = vpop.f32.mrf.mxu0
        %v4797 = vadd.f32 %v4769, %v4796
        %4798 = vmatmul.bf16.gmra.mxu0 %v2519
        %v4799 = vpop.f32.mrf.mxu0
        %v4800 = vadd.f32 %v4772, %v4799
        %v4801 = vpop.f32.mrf.mxu0
        %v4802 = vadd.f32 %v4774, %v4801
        %4803 = vmatmul.bf16.gmra.mxu0 %v2527
        %v4804 = vpop.f32.mrf.mxu0
        %v4805 = vadd.f32 %v4777, %v4804
        %v4806 = vpop.f32.mrf.mxu0
        %4807 = vdwg.mxu0
        %4808 = vmatpush.bf16.msra.mxu0 %v3663
        %4809 = vmatpush.bf16.msra.mxu0 %v3659
        %4810 = vmatpush.bf16.msra.mxu0 %v3655
        %4811 = vmatpush.bf16.msra.mxu0 %v3651
        %4812 = vmatpush.bf16.msra.mxu0 %v3647
        %4813 = vmatpush.bf16.msra.mxu0 %v3643
        %4814 = vmatpush.bf16.msra.mxu0 %v3639
        %4815 = vmatpush.bf16.msra.mxu0 %v3635
        %4816 = vmatmul.bf16.gmra.mxu0 %v2504
        %v4817 = vpop.f32.mrf.mxu0
        %v4818 = vadd.f32 %v4790, %v4817
        %v4819 = vpop.f32.mrf.mxu0
        %v4820 = vadd.f32 %v4792, %v4819
        %4821 = vmatmul.bf16.gmra.mxu0 %v2512
        %v4822 = vpop.f32.mrf.mxu0
        %v4823 = vadd.f32 %v4795, %v4822
        %v4824 = vpop.f32.mrf.mxu0
        %v4825 = vadd.f32 %v4797, %v4824
        %4826 = vmatmul.bf16.gmra.mxu0 %v2520
        %v4827 = vpop.f32.mrf.mxu0
        %v4828 = vadd.f32 %v4800, %v4827
        %v4829 = vpop.f32.mrf.mxu0
        %v4830 = vadd.f32 %v4802, %v4829
        %4831 = vmatmul.bf16.gmra.mxu0 %v2528
        %v4832 = vpop.f32.mrf.mxu0
        %v4833 = vadd.f32 %v4805, %v4832
        %v4834 = vpop.f32.mrf.mxu0
        %4835 = vdwg.mxu0
        %4836 = vmatpush.bf16.msra.mxu0 %v3695
        %4837 = vmatpush.bf16.msra.mxu0 %v3691
        %4838 = vmatpush.bf16.msra.mxu0 %v3687
        %4839 = vmatpush.bf16.msra.mxu0 %v3683
        %4840 = vmatpush.bf16.msra.mxu0 %v3679
        %4841 = vmatpush.bf16.msra.mxu0 %v3675
        %4842 = vmatpush.bf16.msra.mxu0 %v3671
        %4843 = vmatpush.bf16.msra.mxu0 %v3667
        %4844 = vmatmul.bf16.gmra.mxu0 %v2505
        %v4845 = vpop.f32.mrf.mxu0
        %v4846 = vadd.f32 %v4818, %v4845
        %v4847 = vpop.f32.mrf.mxu0
        %v4848 = vadd.f32 %v4820, %v4847
        %4849 = vmatmul.bf16.gmra.mxu0 %v2513
        %v4850 = vpop.f32.mrf.mxu0
        %v4851 = vadd.f32 %v4823, %v4850
        %v4852 = vpop.f32.mrf.mxu0
        %v4853 = vadd.f32 %v4825, %v4852
        %4854 = vmatmul.bf16.gmra.mxu0 %v2521
        %v4855 = vpop.f32.mrf.mxu0
        %v4856 = vadd.f32 %v4828, %v4855
        %v4857 = vpop.f32.mrf.mxu0
        %v4858 = vadd.f32 %v4830, %v4857
        %4859 = vmatmul.bf16.gmra.mxu0 %v2529
        %v4860 = vpop.f32.mrf.mxu0
        %v4861 = vadd.f32 %v4833, %v4860
        %v4862 = vpop.f32.mrf.mxu0
        %4863 = vdwg.mxu0
        %4864 = vmatpush.bf16.msra.mxu0 %v3727
        %4865 = vmatpush.bf16.msra.mxu0 %v3723
        %4866 = vmatpush.bf16.msra.mxu0 %v3719
        %4867 = vmatpush.bf16.msra.mxu0 %v3715
        %4868 = vmatpush.bf16.msra.mxu0 %v3711
        %4869 = vmatpush.bf16.msra.mxu0 %v3707
        %4870 = vmatpush.bf16.msra.mxu0 %v3703
        %4871 = vmatpush.bf16.msra.mxu0 %v3699
        %4872 = vmatmul.bf16.gmra.mxu0 %v2506
        %v4873 = vpop.f32.mrf.mxu0
        %v4874 = vadd.f32 %v4846, %v4873
        %v4875 = vpop.f32.mrf.mxu0
        %v4876 = vadd.f32 %v4848, %v4875
        %4877 = vmatmul.bf16.gmra.mxu0 %v2514
        %v4878 = vpop.f32.mrf.mxu0
        %v4879 = vadd.f32 %v4851, %v4878
        %v4880 = vpop.f32.mrf.mxu0
        %v4881 = vadd.f32 %v4853, %v4880
        %4882 = vmatmul.bf16.gmra.mxu0 %v2522
        %v4883 = vpop.f32.mrf.mxu0
        %v4884 = vadd.f32 %v4856, %v4883
        %v4885 = vpop.f32.mrf.mxu0
        %v4886 = vadd.f32 %v4858, %v4885
        %4887 = vmatmul.bf16.gmra.mxu0 %v2530
        %v4888 = vpop.f32.mrf.mxu0
        %v4889 = vadd.f32 %v4861, %v4888
        %v4890 = vpop.f32.mrf.mxu0
        %4891 = vdwg.mxu0
        %4892 = vmatpush.bf16.msra.mxu0 %v3759
        %4893 = vmatpush.bf16.msra.mxu0 %v3755
        %4894 = vmatpush.bf16.msra.mxu0 %v3751
        %4895 = vmatpush.bf16.msra.mxu0 %v3747
        %4896 = vmatpush.bf16.msra.mxu0 %v3743
        %4897 = vmatpush.bf16.msra.mxu0 %v3739
        %4898 = vmatpush.bf16.msra.mxu0 %v3735
        %4899 = vmatpush.bf16.msra.mxu0 %v3731
        %4900 = vmatmul.bf16.gmra.mxu0 %v2507
        %v4901 = vpop.f32.mrf.mxu0
        %v4902 = vadd.f32 %v4874, %v4901
        %v4903 = vpop.f32.mrf.mxu0
        %v4904 = vadd.f32 %v4876, %v4903
        %4905 = vmatmul.bf16.gmra.mxu0 %v2515
        %v4906 = vpop.f32.mrf.mxu0
        %v4907 = vadd.f32 %v4879, %v4906
        %v4908 = vpop.f32.mrf.mxu0
        %v4909 = vadd.f32 %v4881, %v4908
        %4910 = vmatmul.bf16.gmra.mxu0 %v2523
        %v4911 = vpop.f32.mrf.mxu0
        %v4912 = vadd.f32 %v4884, %v4911
        %v4913 = vpop.f32.mrf.mxu0
        %v4914 = vadd.f32 %v4886, %v4913
        %4915 = vmatmul.bf16.gmra.mxu0 %v2531
        %v4916 = vpop.f32.mrf.mxu0
        %v4917 = vadd.f32 %v4889, %v4916
        %v4918 = vpop.f32.mrf.mxu0
        %4919 = vdwg.mxu0
        %4920 = vmatpush.bf16.msra.mxu0 %v3791
        %4921 = vmatpush.bf16.msra.mxu0 %v3787
        %4922 = vmatpush.bf16.msra.mxu0 %v3783
        %4923 = vmatpush.bf16.msra.mxu0 %v3779
        %4924 = vmatpush.bf16.msra.mxu0 %v3775
        %4925 = vmatpush.bf16.msra.mxu0 %v3771
        %4926 = vmatpush.bf16.msra.mxu0 %v3767
        %4927 = vmatpush.bf16.msra.mxu0 %v3763
        %4928 = vmatmul.bf16.gmra.mxu0 %v2508
        %v4929 = vpop.f32.mrf.mxu0
        %v4930 = vadd.f32 %v4902, %v4929
        %v4931 = vpop.f32.mrf.mxu0
        %v4932 = vadd.f32 %v4904, %v4931
        %4933 = vmatmul.bf16.gmra.mxu0 %v2516
        %v4934 = vpop.f32.mrf.mxu0
        %v4935 = vadd.f32 %v4907, %v4934
        %v4936 = vpop.f32.mrf.mxu0
        %v4937 = vadd.f32 %v4909, %v4936
        %4938 = vmatmul.bf16.gmra.mxu0 %v2524
        %v4939 = vpop.f32.mrf.mxu0
        %v4940 = vadd.f32 %v4912, %v4939
        %v4941 = vpop.f32.mrf.mxu0
        %v4942 = vadd.f32 %v4914, %v4941
        %4943 = vmatmul.bf16.gmra.mxu0 %v2532
        %v4944 = vpop.f32.mrf.mxu0
        %v4945 = vadd.f32 %v4917, %v4944
        %v4946 = vpop.f32.mrf.mxu0
        %4947 = vdwg.mxu0
        %4948 = vmatpush.bf16.msra.mxu0 %v3823
        %4949 = vmatpush.bf16.msra.mxu0 %v3819
        %4950 = vmatpush.bf16.msra.mxu0 %v3815
        %4951 = vmatpush.bf16.msra.mxu0 %v3811
        %4952 = vmatpush.bf16.msra.mxu0 %v3807
        %4953 = vmatpush.bf16.msra.mxu0 %v3803
        %4954 = vmatpush.bf16.msra.mxu0 %v3799
        %4955 = vmatpush.bf16.msra.mxu0 %v3795
        %4956 = vmatmul.bf16.gmra.mxu0 %v2509
        %v4957 = vpop.f32.mrf.mxu0
        %v4958 = vadd.f32 %v4930, %v4957
        %v4959 = vpop.f32.mrf.mxu0
        %v4960 = vadd.f32 %v4932, %v4959
        %4961 = vmatmul.bf16.gmra.mxu0 %v2517
        %v4962 = vpop.f32.mrf.mxu0
        %v4963 = vadd.f32 %v4935, %v4962
        %v4964 = vpop.f32.mrf.mxu0
        %v4965 = vadd.f32 %v4937, %v4964
        %4966 = vmatmul.bf16.gmra.mxu0 %v2525
        %v4967 = vpop.f32.mrf.mxu0
        %v4968 = vadd.f32 %v4940, %v4967
        %v4969 = vpop.f32.mrf.mxu0
        %v4970 = vadd.f32 %v4942, %v4969
        %4971 = vmatmul.bf16.gmra.mxu0 %v2533
        %v4972 = vpop.f32.mrf.mxu0
        %v4973 = vadd.f32 %v4945, %v4972
        %v4974 = vpop.f32.mrf.mxu0
        %4975 = vdwg.mxu0
        %v4976 = vmul.f32 %v4286, 0.5
        %v4977 = vmul.f32 %v4510, 0.5
        %v4978 = vmul.f32 %v4734, 0.5
        %v4979 = vmul.f32 %v4958, 0.5
        %v4980 = vmul.f32 %v4288, 0.5
        %v4981 = vmul.f32 %v4512, 0.5
        %v4982 = vmul.f32 %v4736, 0.5
        %v4983 = vmul.f32 %v4960, 0.5
        %v4984 = vmul.f32 %v4291, 0.5
        %v4985 = vmul.f32 %v4515, 0.5
        %v4986 = vmul.f32 %v4739, 0.5
        %v4987 = vmul.f32 %v4963, 0.5
        %v4988 = vmul.f32 %v4293, 0.5
        %v4989 = vmul.f32 %v4517, 0.5
        %v4990 = vmul.f32 %v4741, 0.5
        %v4991 = vmul.f32 %v4965, 0.5
        %v4992 = vmul.f32 %v4296, 0.5
        %v4993 = vmul.f32 %v4520, 0.5
        %v4994 = vmul.f32 %v4744, 0.5
        %v4995 = vmul.f32 %v4968, 0.5
        %v4996 = vmul.f32 %v4298, 0.5
        %v4997 = vmul.f32 %v4522, 0.5
        %v4998 = vmul.f32 %v4746, 0.5
        %v4999 = vmul.f32 %v4970, 0.5
        %v5000 = vmul.f32 %v4301, 0.5
        %v5001 = vmul.f32 %v4525, 0.5
        %v5002 = vmul.f32 %v4749, 0.5
        %v5003 = vmul.f32 %v4973, 0.5
        %v5004 = vtanh.pop %v4976
        %v5005 = vtanh.pop %v4977
        %v5006 = vtanh.pop %v4978
        %v5007 = vtanh.pop %v4979
        %v5008 = vtanh.pop %v4980
        %v5009 = vtanh.pop %v4981
        %v5010 = vtanh.pop %v4982
        %v5011 = vtanh.pop %v4983
        %v5012 = vtanh.pop %v4984
        %v5013 = vtanh.pop %v4985
        %v5014 = vtanh.pop %v4986
        %v5015 = vtanh.pop %v4987
        %v5016 = vtanh.pop %v4988
        %v5017 = vtanh.pop %v4989
        %v5018 = vtanh.pop %v4990
        %v5019 = vtanh.pop %v4991
        %v5020 = vtanh.pop %v4992
        %v5021 = vtanh.pop %v4993
        %v5022 = vtanh.pop %v4994
        %v5023 = vtanh.pop %v4995
        %v5024 = vtanh.pop %v4996
        %v5025 = vtanh.pop %v4997
        %v5026 = vtanh.pop %v4998
        %v5027 = vtanh.pop %v4999
        %v5028 = vtanh.pop %v5000
        %v5029 = vtanh.pop %v5001
        %v5030 = vtanh.pop %v5002
        %v5031 = vtanh.pop %v5003
        %v5032 = vmul.f32 %v5004, 0.5
        %v5033 = vmul.f32 %v5005, 0.5
        %v5034 = vmul.f32 %v5006, 0.5
        %v5035 = vmul.f32 %v5007, 0.5
        %v5036 = vmul.f32 %v5008, 0.5
        %v5037 = vmul.f32 %v5009, 0.5
        %v5038 = vmul.f32 %v5010, 0.5
        %v5039 = vmul.f32 %v5011, 0.5
        %v5040 = vmul.f32 %v5012, 0.5
        %v5041 = vmul.f32 %v5013, 0.5
        %v5042 = vmul.f32 %v5014, 0.5
        %v5043 = vmul.f32 %v5015, 0.5
        %v5044 = vmul.f32 %v5016, 0.5
        %v5045 = vmul.f32 %v5017, 0.5
        %v5046 = vmul.f32 %v5018, 0.5
        %v5047 = vmul.f32 %v5019, 0.5
        %v5048 = vmul.f32 %v5020, 0.5
        %v5049 = vmul.f32 %v5021, 0.5
        %v5050 = vmul.f32 %v5022, 0.5
        %v5051 = vmul.f32 %v5023, 0.5
        %v5052 = vmul.f32 %v5024, 0.5
        %v5053 = vmul.f32 %v5025, 0.5
        %v5054 = vmul.f32 %v5026, 0.5
        %v5055 = vmul.f32 %v5027, 0.5
        %v5056 = vmul.f32 %v5028, 0.5
        %v5057 = vmul.f32 %v5029, 0.5
        %v5058 = vmul.f32 %v5030, 0.5
        %v5059 = vmul.f32 %v5031, 0.5
        %v5060 = vadd.f32 %v5032, 0.5
        %v5061 = vadd.f32 %v5033, 0.5
        %v5062 = vadd.f32 %v5034, 0.5
        %v5063 = vadd.f32 %v5035, 0.5
        %v5064 = vadd.f32 %v5036, 0.5
        %v5065 = vadd.f32 %v5037, 0.5
        %v5066 = vadd.f32 %v5038, 0.5
        %v5067 = vadd.f32 %v5039, 0.5
        %v5068 = vadd.f32 %v5040, 0.5
        %v5069 = vadd.f32 %v5041, 0.5
        %v5070 = vadd.f32 %v5042, 0.5
        %v5071 = vadd.f32 %v5043, 0.5
        %v5072 = vadd.f32 %v5044, 0.5
        %v5073 = vadd.f32 %v5045, 0.5
        %v5074 = vadd.f32 %v5046, 0.5
        %v5075 = vadd.f32 %v5047, 0.5
        %v5076 = vadd.f32 %v5048, 0.5
        %v5077 = vadd.f32 %v5049, 0.5
        %v5078 = vadd.f32 %v5050, 0.5
        %v5079 = vadd.f32 %v5051, 0.5
        %v5080 = vadd.f32 %v5052, 0.5
        %v5081 = vadd.f32 %v5053, 0.5
        %v5082 = vadd.f32 %v5054, 0.5
        %v5083 = vadd.f32 %v5055, 0.5
        %v5084 = vadd.f32 %v5056, 0.5
        %v5085 = vadd.f32 %v5057, 0.5
        %v5086 = vadd.f32 %v5058, 0.5
        %v5087 = vadd.f32 %v5059, 0.5
        %v5088 = vpack.c.bf16 %v5064, %v5060
        %v5089 = vpack.c.bf16 %v5065, %v5061
        %v5090 = vpack.c.bf16 %v5066, %v5062
        %v5091 = vpack.c.bf16 %v5067, %v5063
        %v5092 = vpack.c.bf16 %v5072, %v5068
        %v5093 = vpack.c.bf16 %v5073, %v5069
        %v5094 = vpack.c.bf16 %v5074, %v5070
        %v5095 = vpack.c.bf16 %v5075, %v5071
        %v5096 = vpack.c.bf16 %v5080, %v5076
        %v5097 = vpack.c.bf16 %v5081, %v5077
        %v5098 = vpack.c.bf16 %v5082, %v5078
        %v5099 = vpack.c.bf16 %v5083, %v5079
        %v5100 = vpack.c.bf16 %v5084, %v5084
        %v5101 = vpack.c.bf16 %v5085, %v5085
        %v5102 = vpack.c.bf16 %v5086, %v5086
        %v5103 = vpack.c.bf16 %v5087, %v5087
        %v5104 = vld [vmem:[#allocation11] sm:$0xff]
        %v5105 = vld [vmem:[#allocation11 + $0x8] sm:$0xff]
        %v5106 = vld [vmem:[#allocation11 + $0x10] sm:$0xff]
        %v5107 = vld [vmem:[#allocation11 + $0x18] sm:$0xff]
        %v5108 = vld [vmem:[#allocation11 + $0x20] sm:$0xff]
        %v5109 = vld [vmem:[#allocation11 + $0x28] sm:$0xff]
        %v5110 = vld [vmem:[#allocation11 + $0x30] sm:$0xff]
        %v5111 = vld [vmem:[#allocation11 + $0x38] sm:$0xff]
        %v5112 = vld [vmem:[#allocation11 + $0x40] sm:$0xff]
        %v5113 = vld [vmem:[#allocation11 + $0x48] sm:$0xff]
        %v5114 = vld [vmem:[#allocation11 + $0x50] sm:$0xff]
        %v5115 = vld [vmem:[#allocation11 + $0x58] sm:$0xff]
        %v5116 = vld [vmem:[#allocation11 + $0x60] sm:$0xff]
        %v5117 = vld [vmem:[#allocation11 + $0x68] sm:$0xff]
        %v5118 = vld [vmem:[#allocation11 + $0x70] sm:$0xff]
        %v5119 = vld [vmem:[#allocation11 + $0x78] sm:$0xff]
        %v5120 = vld [vmem:[#allocation11 + $0x80] sm:$0xff]
        %v5121 = vld [vmem:[#allocation11 + $0x88] sm:$0xff]
        %v5122 = vld [vmem:[#allocation11 + $0x90] sm:$0xff]
        %v5123 = vld [vmem:[#allocation11 + $0x98] sm:$0xff]
        %v5124 = vld [vmem:[#allocation11 + $0xa0] sm:$0xff]
        %v5125 = vld [vmem:[#allocation11 + $0xa8] sm:$0xff]
        %v5126 = vld [vmem:[#allocation11 + $0xb0] sm:$0xff]
        %v5127 = vld [vmem:[#allocation11 + $0xb8] sm:$0xff]
        %v5128 = vld [vmem:[#allocation11 + $0xc0] sm:$0xff]
        %v5129 = vld [vmem:[#allocation11 + $0xc8] sm:$0xff]
        %v5130 = vld [vmem:[#allocation11 + $0xd0] sm:$0xff]
        %v5131 = vld [vmem:[#allocation11 + $0xd8] sm:$0xff]
        %v5132 = vld [vmem:[#allocation11 + $0xe0] sm:$0xff]
        %v5133 = vld [vmem:[#allocation11 + $0xe8] sm:$0xff]
        %v5134 = vld [vmem:[#allocation11 + $0xf0] sm:$0xff]
        %v5135 = vld [vmem:[#allocation11 + $0xf8] sm:$0xff]
        %v5136 = vld [vmem:[#allocation11 + $0x100] sm:$0xff]
        %v5137 = vld [vmem:[#allocation11 + $0x108] sm:$0xff]
        %v5138 = vld [vmem:[#allocation11 + $0x110] sm:$0xff]
        %v5139 = vld [vmem:[#allocation11 + $0x118] sm:$0xff]
        %v5140 = vld [vmem:[#allocation11 + $0x120] sm:$0xff]
        %v5141 = vld [vmem:[#allocation11 + $0x128] sm:$0xff]
        %v5142 = vld [vmem:[#allocation11 + $0x130] sm:$0xff]
        %v5143 = vld [vmem:[#allocation11 + $0x138] sm:$0xff]
        %v5144 = vld [vmem:[#allocation11 + $0x140] sm:$0xff]
        %v5145 = vld [vmem:[#allocation11 + $0x148] sm:$0xff]
        %v5146 = vld [vmem:[#allocation11 + $0x150] sm:$0xff]
        %v5147 = vld [vmem:[#allocation11 + $0x158] sm:$0xff]
        %v5148 = vld [vmem:[#allocation11 + $0x160] sm:$0xff]
        %v5149 = vld [vmem:[#allocation11 + $0x168] sm:$0xff]
        %v5150 = vld [vmem:[#allocation11 + $0x170] sm:$0xff]
        %v5151 = vld [vmem:[#allocation11 + $0x178] sm:$0xff]
        %v5152 = vld [vmem:[#allocation11 + $0x180] sm:$0xff]
        %v5153 = vld [vmem:[#allocation11 + $0x188] sm:$0xff]
        %v5154 = vld [vmem:[#allocation11 + $0x190] sm:$0xff]
        %v5155 = vld [vmem:[#allocation11 + $0x198] sm:$0xff]
        %v5156 = vld [vmem:[#allocation11 + $0x1a0] sm:$0xff]
        %v5157 = vld [vmem:[#allocation11 + $0x1a8] sm:$0xff]
        %v5158 = vld [vmem:[#allocation11 + $0x1b0] sm:$0xff]
        %v5159 = vld [vmem:[#allocation11 + $0x1b8] sm:$0xff]
        %v5160 = vld [vmem:[#allocation11 + $0x1c0] sm:$0xff]
        %v5161 = vld [vmem:[#allocation11 + $0x1c8] sm:$0xff]
        %v5162 = vld [vmem:[#allocation11 + $0x1d0] sm:$0xff]
        %v5163 = vld [vmem:[#allocation11 + $0x1d8] sm:$0xff]
        %v5164 = vld [vmem:[#allocation11 + $0x1e0] sm:$0xff]
        %v5165 = vld [vmem:[#allocation11 + $0x1e8] sm:$0xff]
        %v5166 = vld [vmem:[#allocation11 + $0x1f0] sm:$0xff]
        %v5167 = vld [vmem:[#allocation11 + $0x1f8] sm:$0xff]
        %v5168 = vld [vmem:[%s6] sm:$0x3]
        %v5170 = vperm.slane %v5168, 0
        %v5171 = vperm.slane %v5168, 1
        %v5238 = vunpack.c.l.b16 %v5104
        %v5239 = vunpack.c.h.b16 %v5104
        %v5240 = vunpack.c.l.b16 %v5105
        %v5241 = vunpack.c.h.b16 %v5105
        %v5242 = vunpack.c.l.b16 %v5106
        %v5243 = vunpack.c.h.b16 %v5106
        %v5244 = vunpack.c.l.b16 %v5107
        %v5245 = vunpack.c.h.b16 %v5107
        %v5246 = vunpack.c.l.b16 %v5108
        %v5247 = vunpack.c.h.b16 %v5108
        %v5248 = vunpack.c.l.b16 %v5109
        %v5249 = vunpack.c.h.b16 %v5109
        %v5250 = vunpack.c.l.b16 %v5110
        %v5251 = vunpack.c.h.b16 %v5110
        %v5252 = vunpack.c.l.b16 %v5111
        %v5253 = vunpack.c.h.b16 %v5111
        %v5254 = vunpack.c.l.b16 %v5112
        %v5255 = vunpack.c.h.b16 %v5112
        %v5256 = vunpack.c.l.b16 %v5113
        %v5257 = vunpack.c.h.b16 %v5113
        %v5258 = vunpack.c.l.b16 %v5114
        %v5259 = vunpack.c.h.b16 %v5114
        %v5260 = vunpack.c.l.b16 %v5115
        %v5261 = vunpack.c.h.b16 %v5115
        %v5262 = vunpack.c.l.b16 %v5116
        %v5263 = vunpack.c.h.b16 %v5116
        %v5264 = vunpack.c.l.b16 %v5117
        %v5265 = vunpack.c.h.b16 %v5117
        %v5266 = vunpack.c.l.b16 %v5118
        %v5267 = vunpack.c.h.b16 %v5118
        %v5268 = vunpack.c.l.b16 %v5119
        %v5269 = vunpack.c.h.b16 %v5119
        %v5270 = vunpack.c.l.b16 %v5120
        %v5271 = vunpack.c.h.b16 %v5120
        %v5272 = vunpack.c.l.b16 %v5121
        %v5273 = vunpack.c.h.b16 %v5121
        %v5274 = vunpack.c.l.b16 %v5122
        %v5275 = vunpack.c.h.b16 %v5122
        %v5276 = vunpack.c.l.b16 %v5123
        %v5277 = vunpack.c.h.b16 %v5123
        %v5278 = vunpack.c.l.b16 %v5124
        %v5279 = vunpack.c.h.b16 %v5124
        %v5280 = vunpack.c.l.b16 %v5125
        %v5281 = vunpack.c.h.b16 %v5125
        %v5282 = vunpack.c.l.b16 %v5126
        %v5283 = vunpack.c.h.b16 %v5126
        %v5284 = vunpack.c.l.b16 %v5127
        %v5285 = vunpack.c.h.b16 %v5127
        %v5286 = vunpack.c.l.b16 %v5128
        %v5287 = vunpack.c.h.b16 %v5128
        %v5288 = vunpack.c.l.b16 %v5129
        %v5289 = vunpack.c.h.b16 %v5129
        %v5290 = vunpack.c.l.b16 %v5130
        %v5291 = vunpack.c.h.b16 %v5130
        %v5292 = vunpack.c.l.b16 %v5131
        %v5293 = vunpack.c.h.b16 %v5131
        %v5294 = vunpack.c.l.b16 %v5132
        %v5295 = vunpack.c.h.b16 %v5132
        %v5296 = vunpack.c.l.b16 %v5133
        %v5297 = vunpack.c.h.b16 %v5133
        %v5298 = vunpack.c.l.b16 %v5134
        %v5299 = vunpack.c.h.b16 %v5134
        %v5300 = vunpack.c.l.b16 %v5135
        %v5301 = vunpack.c.h.b16 %v5135
        %v5302 = vunpack.c.l.b16 %v5136
        %v5303 = vunpack.c.h.b16 %v5136
        %v5304 = vunpack.c.l.b16 %v5137
        %v5305 = vunpack.c.h.b16 %v5137
        %v5306 = vunpack.c.l.b16 %v5138
        %v5307 = vunpack.c.h.b16 %v5138
        %v5308 = vunpack.c.l.b16 %v5139
        %v5309 = vunpack.c.h.b16 %v5139
        %v5310 = vunpack.c.l.b16 %v5140
        %v5311 = vunpack.c.h.b16 %v5140
        %v5312 = vunpack.c.l.b16 %v5141
        %v5313 = vunpack.c.h.b16 %v5141
        %v5314 = vunpack.c.l.b16 %v5142
        %v5315 = vunpack.c.h.b16 %v5142
        %v5316 = vunpack.c.l.b16 %v5143
        %v5317 = vunpack.c.h.b16 %v5143
        %v5318 = vunpack.c.l.b16 %v5144
        %v5319 = vunpack.c.h.b16 %v5144
        %v5320 = vunpack.c.l.b16 %v5145
        %v5321 = vunpack.c.h.b16 %v5145
        %v5322 = vunpack.c.l.b16 %v5146
        %v5323 = vunpack.c.h.b16 %v5146
        %v5324 = vunpack.c.l.b16 %v5147
        %v5325 = vunpack.c.h.b16 %v5147
        %v5326 = vunpack.c.l.b16 %v5148
        %v5327 = vunpack.c.h.b16 %v5148
        %v5328 = vunpack.c.l.b16 %v5149
        %v5329 = vunpack.c.h.b16 %v5149
        %v5330 = vunpack.c.l.b16 %v5150
        %v5331 = vunpack.c.h.b16 %v5150
        %v5332 = vunpack.c.l.b16 %v5151
        %v5333 = vunpack.c.h.b16 %v5151
        %v5334 = vunpack.c.l.b16 %v5152
        %v5335 = vunpack.c.h.b16 %v5152
        %v5336 = vunpack.c.l.b16 %v5153
        %v5337 = vunpack.c.h.b16 %v5153
        %v5338 = vunpack.c.l.b16 %v5154
        %v5339 = vunpack.c.h.b16 %v5154
        %v5340 = vunpack.c.l.b16 %v5155
        %v5341 = vunpack.c.h.b16 %v5155
        %v5342 = vunpack.c.l.b16 %v5156
        %v5343 = vunpack.c.h.b16 %v5156
        %v5344 = vunpack.c.l.b16 %v5157
        %v5345 = vunpack.c.h.b16 %v5157
        %v5346 = vunpack.c.l.b16 %v5158
        %v5347 = vunpack.c.h.b16 %v5158
        %v5348 = vunpack.c.l.b16 %v5159
        %v5349 = vunpack.c.h.b16 %v5159
        %v5350 = vunpack.c.l.b16 %v5160
        %v5351 = vunpack.c.h.b16 %v5160
        %v5352 = vunpack.c.l.b16 %v5161
        %v5353 = vunpack.c.h.b16 %v5161
        %v5354 = vunpack.c.l.b16 %v5162
        %v5355 = vunpack.c.h.b16 %v5162
        %v5356 = vunpack.c.l.b16 %v5163
        %v5357 = vunpack.c.h.b16 %v5163
        %v5358 = vunpack.c.l.b16 %v5164
        %v5359 = vunpack.c.h.b16 %v5164
        %v5360 = vunpack.c.l.b16 %v5165
        %v5361 = vunpack.c.h.b16 %v5165
        %v5362 = vunpack.c.l.b16 %v5166
        %v5363 = vunpack.c.h.b16 %v5166
        %v5364 = vunpack.c.l.b16 %v5167
        %v5365 = vunpack.c.h.b16 %v5167
        %v5366 = vpack.c.b16 %v5240, %v5238
        %v5367 = vpack.c.b16 %v5241, %v5239
        %v5368 = vpack.c.b16 %v5244, %v5242
        %v5369 = vpack.c.b16 %v5245, %v5243
        %v5370 = vpack.c.b16 %v5248, %v5246
        %v5371 = vpack.c.b16 %v5249, %v5247
        %v5372 = vpack.c.b16 %v5252, %v5250
        %v5373 = vpack.c.b16 %v5253, %v5251
        %v5374 = vpack.c.b16 %v5256, %v5254
        %v5375 = vpack.c.b16 %v5257, %v5255
        %v5376 = vpack.c.b16 %v5260, %v5258
        %v5377 = vpack.c.b16 %v5261, %v5259
        %v5378 = vpack.c.b16 %v5264, %v5262
        %v5379 = vpack.c.b16 %v5265, %v5263
        %v5380 = vpack.c.b16 %v5268, %v5266
        %v5381 = vpack.c.b16 %v5269, %v5267
        %v5382 = vpack.c.b16 %v5272, %v5270
        %v5383 = vpack.c.b16 %v5273, %v5271
        %v5384 = vpack.c.b16 %v5276, %v5274
        %v5385 = vpack.c.b16 %v5277, %v5275
        %v5386 = vpack.c.b16 %v5280, %v5278
        %v5387 = vpack.c.b16 %v5281, %v5279
        %v5388 = vpack.c.b16 %v5284, %v5282
        %v5389 = vpack.c.b16 %v5285, %v5283
        %v5390 = vpack.c.b16 %v5288, %v5286
        %v5391 = vpack.c.b16 %v5289, %v5287
        %v5392 = vpack.c.b16 %v5292, %v5290
        %v5393 = vpack.c.b16 %v5293, %v5291
        %v5394 = vpack.c.b16 %v5296, %v5294
        %v5395 = vpack.c.b16 %v5297, %v5295
        %v5396 = vpack.c.b16 %v5300, %v5298
        %v5397 = vpack.c.b16 %v5301, %v5299
        %v5398 = vpack.c.b16 %v5304, %v5302
        %v5399 = vpack.c.b16 %v5305, %v5303
        %v5400 = vpack.c.b16 %v5308, %v5306
        %v5401 = vpack.c.b16 %v5309, %v5307
        %v5402 = vpack.c.b16 %v5312, %v5310
        %v5403 = vpack.c.b16 %v5313, %v5311
        %v5404 = vpack.c.b16 %v5316, %v5314
        %v5405 = vpack.c.b16 %v5317, %v5315
        %v5406 = vpack.c.b16 %v5320, %v5318
        %v5407 = vpack.c.b16 %v5321, %v5319
        %v5408 = vpack.c.b16 %v5324, %v5322
        %v5409 = vpack.c.b16 %v5325, %v5323
        %v5410 = vpack.c.b16 %v5328, %v5326
        %v5411 = vpack.c.b16 %v5329, %v5327
        %v5412 = vpack.c.b16 %v5332, %v5330
        %v5413 = vpack.c.b16 %v5333, %v5331
        %v5414 = vpack.c.b16 %v5336, %v5334
        %v5415 = vpack.c.b16 %v5337, %v5335
        %v5416 = vpack.c.b16 %v5340, %v5338
        %v5417 = vpack.c.b16 %v5341, %v5339
        %v5418 = vpack.c.b16 %v5344, %v5342
        %v5419 = vpack.c.b16 %v5345, %v5343
        %v5420 = vpack.c.b16 %v5348, %v5346
        %v5421 = vpack.c.b16 %v5349, %v5347
        %v5422 = vpack.c.b16 %v5352, %v5350
        %v5423 = vpack.c.b16 %v5353, %v5351
        %v5424 = vpack.c.b16 %v5356, %v5354
        %v5425 = vpack.c.b16 %v5357, %v5355
        %v5426 = vpack.c.b16 %v5360, %v5358
        %v5427 = vpack.c.b16 %v5361, %v5359
        %v5428 = vpack.c.b16 %v5364, %v5362
        %v5429 = vpack.c.b16 %v5365, %v5363
        %5494 = vmatpush.bf16.msra.mxu0 %v5380
        %5495 = vmatpush.bf16.msra.mxu0 %v5378
        %5496 = vmatpush.bf16.msra.mxu0 %v5376
        %5497 = vmatpush.bf16.msra.mxu0 %v5374
        %5498 = vmatpush.bf16.msra.mxu0 %v5372
        %5499 = vmatpush.bf16.msra.mxu0 %v5370
        %5500 = vmatpush.bf16.msra.mxu0 %v5368
        %5501 = vmatpush.bf16.msra.mxu0 %v5366
        %5502 = vmatmul.bf16.gmra.mxu0 %v5088
        %v5503 = vpop.f32.mrf.mxu0
        %v5504 = vadd.f32 %v5170, %v5503
        %v5505 = vpop.f32.mrf.mxu0
        %v5506 = vadd.f32 %v5170, %v5505
        %5507 = vmatmul.bf16.gmra.mxu0 %v5092
        %v5508 = vpop.f32.mrf.mxu0
        %v5509 = vadd.f32 %v5170, %v5508
        %v5510 = vpop.f32.mrf.mxu0
        %v5511 = vadd.f32 %v5170, %v5510
        %5512 = vmatmul.bf16.gmra.mxu0 %v5096
        %v5513 = vpop.f32.mrf.mxu0
        %v5514 = vadd.f32 %v5170, %v5513
        %v5515 = vpop.f32.mrf.mxu0
        %v5516 = vadd.f32 %v5170, %v5515
        %5517 = vmatmul.bf16.gmra.mxu0 %v5100
        %v5518 = vpop.f32.mrf.mxu0
        %v5519 = vadd.f32 %v5170, %v5518
        %v5520 = vpop.f32.mrf.mxu0
        %5521 = vdwg.mxu0
        %5522 = vmatpush.bf16.msra.mxu0 %v5396
        %5523 = vmatpush.bf16.msra.mxu0 %v5394
        %5524 = vmatpush.bf16.msra.mxu0 %v5392
        %5525 = vmatpush.bf16.msra.mxu0 %v5390
        %5526 = vmatpush.bf16.msra.mxu0 %v5388
        %5527 = vmatpush.bf16.msra.mxu0 %v5386
        %5528 = vmatpush.bf16.msra.mxu0 %v5384
        %5529 = vmatpush.bf16.msra.mxu0 %v5382
        %5530 = vmatmul.bf16.gmra.mxu0 %v5089
        %v5531 = vpop.f32.mrf.mxu0
        %v5532 = vadd.f32 %v5504, %v5531
        %v5533 = vpop.f32.mrf.mxu0
        %v5534 = vadd.f32 %v5506, %v5533
        %5535 = vmatmul.bf16.gmra.mxu0 %v5093
        %v5536 = vpop.f32.mrf.mxu0
        %v5537 = vadd.f32 %v5509, %v5536
        %v5538 = vpop.f32.mrf.mxu0
        %v5539 = vadd.f32 %v5511, %v5538
        %5540 = vmatmul.bf16.gmra.mxu0 %v5097
        %v5541 = vpop.f32.mrf.mxu0
        %v5542 = vadd.f32 %v5514, %v5541
        %v5543 = vpop.f32.mrf.mxu0
        %v5544 = vadd.f32 %v5516, %v5543
        %5545 = vmatmul.bf16.gmra.mxu0 %v5101
        %v5546 = vpop.f32.mrf.mxu0
        %v5547 = vadd.f32 %v5519, %v5546
        %v5548 = vpop.f32.mrf.mxu0
        %5549 = vdwg.mxu0
        %5550 = vmatpush.bf16.msra.mxu0 %v5412
        %5551 = vmatpush.bf16.msra.mxu0 %v5410
        %5552 = vmatpush.bf16.msra.mxu0 %v5408
        %5553 = vmatpush.bf16.msra.mxu0 %v5406
        %5554 = vmatpush.bf16.msra.mxu0 %v5404
        %5555 = vmatpush.bf16.msra.mxu0 %v5402
        %5556 = vmatpush.bf16.msra.mxu0 %v5400
        %5557 = vmatpush.bf16.msra.mxu0 %v5398
        %5558 = vmatmul.bf16.gmra.mxu0 %v5090
        %v5559 = vpop.f32.mrf.mxu0
        %v5560 = vadd.f32 %v5532, %v5559
        %v5561 = vpop.f32.mrf.mxu0
        %v5562 = vadd.f32 %v5534, %v5561
        %5563 = vmatmul.bf16.gmra.mxu0 %v5094
        %v5564 = vpop.f32.mrf.mxu0
        %v5565 = vadd.f32 %v5537, %v5564
        %v5566 = vpop.f32.mrf.mxu0
        %v5567 = vadd.f32 %v5539, %v5566
        %5568 = vmatmul.bf16.gmra.mxu0 %v5098
        %v5569 = vpop.f32.mrf.mxu0
        %v5570 = vadd.f32 %v5542, %v5569
        %v5571 = vpop.f32.mrf.mxu0
        %v5572 = vadd.f32 %v5544, %v5571
        %5573 = vmatmul.bf16.gmra.mxu0 %v5102
        %v5574 = vpop.f32.mrf.mxu0
        %v5575 = vadd.f32 %v5547, %v5574
        %v5576 = vpop.f32.mrf.mxu0
        %5577 = vdwg.mxu0
        %5578 = vmatpush.bf16.msra.mxu0 %v5428
        %5579 = vmatpush.bf16.msra.mxu0 %v5426
        %5580 = vmatpush.bf16.msra.mxu0 %v5424
        %5581 = vmatpush.bf16.msra.mxu0 %v5422
        %5582 = vmatpush.bf16.msra.mxu0 %v5420
        %5583 = vmatpush.bf16.msra.mxu0 %v5418
        %5584 = vmatpush.bf16.msra.mxu0 %v5416
        %5585 = vmatpush.bf16.msra.mxu0 %v5414
        %5586 = vmatmul.bf16.gmra.mxu0 %v5091
        %v5587 = vpop.f32.mrf.mxu0
        %v5588 = vadd.f32 %v5560, %v5587
        %v5589 = vpop.f32.mrf.mxu0
        %v5590 = vadd.f32 %v5562, %v5589
        %5591 = vmatmul.bf16.gmra.mxu0 %v5095
        %v5592 = vpop.f32.mrf.mxu0
        %v5593 = vadd.f32 %v5565, %v5592
        %v5594 = vpop.f32.mrf.mxu0
        %v5595 = vadd.f32 %v5567, %v5594
        %5596 = vmatmul.bf16.gmra.mxu0 %v5099
        %v5597 = vpop.f32.mrf.mxu0
        %v5598 = vadd.f32 %v5570, %v5597
        %v5599 = vpop.f32.mrf.mxu0
        %v5600 = vadd.f32 %v5572, %v5599
        %5601 = vmatmul.bf16.gmra.mxu0 %v5103
        %v5602 = vpop.f32.mrf.mxu0
        %v5603 = vadd.f32 %v5575, %v5602
        %v5604 = vpop.f32.mrf.mxu0
        %5605 = vdwg.mxu0
        %5606 = vmatpush.bf16.msra.mxu0 %v5381
        %5607 = vmatpush.bf16.msra.mxu0 %v5379
        %5608 = vmatpush.bf16.msra.mxu0 %v5377
        %5609 = vmatpush.bf16.msra.mxu0 %v5375
        %5610 = vmatpush.bf16.msra.mxu0 %v5373
        %5611 = vmatpush.bf16.msra.mxu0 %v5371
        %5612 = vmatpush.bf16.msra.mxu0 %v5369
        %5613 = vmatpush.bf16.msra.mxu0 %v5367
        %5614 = vmatmul.bf16.gmra.mxu0 %v5088
        %v5615 = vpop.f32.mrf.mxu0
        %v5616 = vadd.f32 %v5171, %v5615
        %v5617 = vpop.f32.mrf.mxu0
        %v5618 = vadd.f32 %v5171, %v5617
        %5619 = vmatmul.bf16.gmra.mxu0 %v5092
        %v5620 = vpop.f32.mrf.mxu0
        %v5621 = vadd.f32 %v5171, %v5620
        %v5622 = vpop.f32.mrf.mxu0
        %v5623 = vadd.f32 %v5171, %v5622
        %5624 = vmatmul.bf16.gmra.mxu0 %v5096
        %v5625 = vpop.f32.mrf.mxu0
        %v5626 = vadd.f32 %v5171, %v5625
        %v5627 = vpop.f32.mrf.mxu0
        %v5628 = vadd.f32 %v5171, %v5627
        %5629 = vmatmul.bf16.gmra.mxu0 %v5100
        %v5630 = vpop.f32.mrf.mxu0
        %v5631 = vadd.f32 %v5171, %v5630
        %v5632 = vpop.f32.mrf.mxu0
        %5633 = vdwg.mxu0
        %5634 = vmatpush.bf16.msra.mxu0 %v5397
        %5635 = vmatpush.bf16.msra.mxu0 %v5395
        %5636 = vmatpush.bf16.msra.mxu0 %v5393
        %5637 = vmatpush.bf16.msra.mxu0 %v5391
        %5638 = vmatpush.bf16.msra.mxu0 %v5389
        %5639 = vmatpush.bf16.msra.mxu0 %v5387
        %5640 = vmatpush.bf16.msra.mxu0 %v5385
        %5641 = vmatpush.bf16.msra.mxu0 %v5383
        %5642 = vmatmul.bf16.gmra.mxu0 %v5089
        %v5643 = vpop.f32.mrf.mxu0
        %v5644 = vadd.f32 %v5616, %v5643
        %v5645 = vpop.f32.mrf.mxu0
        %v5646 = vadd.f32 %v5618, %v5645
        %5647 = vmatmul.bf16.gmra.mxu0 %v5093
        %v5648 = vpop.f32.mrf.mxu0
        %v5649 = vadd.f32 %v5621, %v5648
        %v5650 = vpop.f32.mrf.mxu0
        %v5651 = vadd.f32 %v5623, %v5650
        %5652 = vmatmul.bf16.gmra.mxu0 %v5097
        %v5653 = vpop.f32.mrf.mxu0
        %v5654 = vadd.f32 %v5626, %v5653
        %v5655 = vpop.f32.mrf.mxu0
        %v5656 = vadd.f32 %v5628, %v5655
        %5657 = vmatmul.bf16.gmra.mxu0 %v5101
        %v5658 = vpop.f32.mrf.mxu0
        %v5659 = vadd.f32 %v5631, %v5658
        %v5660 = vpop.f32.mrf.mxu0
        %5661 = vdwg.mxu0
        %5662 = vmatpush.bf16.msra.mxu0 %v5413
        %5663 = vmatpush.bf16.msra.mxu0 %v5411
        %5664 = vmatpush.bf16.msra.mxu0 %v5409
        %5665 = vmatpush.bf16.msra.mxu0 %v5407
        %5666 = vmatpush.bf16.msra.mxu0 %v5405
        %5667 = vmatpush.bf16.msra.mxu0 %v5403
        %5668 = vmatpush.bf16.msra.mxu0 %v5401
        %5669 = vmatpush.bf16.msra.mxu0 %v5399
        %5670 = vmatmul.bf16.gmra.mxu0 %v5090
        %v5671 = vpop.f32.mrf.mxu0
        %v5672 = vadd.f32 %v5644, %v5671
        %v5673 = vpop.f32.mrf.mxu0
        %v5674 = vadd.f32 %v5646, %v5673
        %5675 = vmatmul.bf16.gmra.mxu0 %v5094
        %v5676 = vpop.f32.mrf.mxu0
        %v5677 = vadd.f32 %v5649, %v5676
        %v5678 = vpop.f32.mrf.mxu0
        %v5679 = vadd.f32 %v5651, %v5678
        %5680 = vmatmul.bf16.gmra.mxu0 %v5098
        %v5681 = vpop.f32.mrf.mxu0
        %v5682 = vadd.f32 %v5654, %v5681
        %v5683 = vpop.f32.mrf.mxu0
        %v5684 = vadd.f32 %v5656, %v5683
        %5685 = vmatmul.bf16.gmra.mxu0 %v5102
        %v5686 = vpop.f32.mrf.mxu0
        %v5687 = vadd.f32 %v5659, %v5686
        %v5688 = vpop.f32.mrf.mxu0
        %5689 = vdwg.mxu0
        %5690 = vmatpush.bf16.msra.mxu0 %v5429
        %5691 = vmatpush.bf16.msra.mxu0 %v5427
        %5692 = vmatpush.bf16.msra.mxu0 %v5425
        %5693 = vmatpush.bf16.msra.mxu0 %v5423
        %5694 = vmatpush.bf16.msra.mxu0 %v5421
        %5695 = vmatpush.bf16.msra.mxu0 %v5419
        %5696 = vmatpush.bf16.msra.mxu0 %v5417
        %5697 = vmatpush.bf16.msra.mxu0 %v5415
        %5698 = vmatmul.bf16.gmra.mxu0 %v5091
        %v5699 = vpop.f32.mrf.mxu0
        %v5700 = vadd.f32 %v5672, %v5699
        %v5701 = vpop.f32.mrf.mxu0
        %v5702 = vadd.f32 %v5674, %v5701
        %5703 = vmatmul.bf16.gmra.mxu0 %v5095
        %v5704 = vpop.f32.mrf.mxu0
        %v5705 = vadd.f32 %v5677, %v5704
        %v5706 = vpop.f32.mrf.mxu0
        %v5707 = vadd.f32 %v5679, %v5706
        %5708 = vmatmul.bf16.gmra.mxu0 %v5099
        %v5709 = vpop.f32.mrf.mxu0
        %v5710 = vadd.f32 %v5682, %v5709
        %v5711 = vpop.f32.mrf.mxu0
        %v5712 = vadd.f32 %v5684, %v5711
        %5713 = vmatmul.bf16.gmra.mxu0 %v5103
        %v5714 = vpop.f32.mrf.mxu0
        %v5715 = vadd.f32 %v5687, %v5714
        %v5716 = vpop.f32.mrf.mxu0
        %5717 = vdwg.mxu0
        %v5718 = vmul.f32 %v5588, 0.5
        %v5719 = vmul.f32 %v5700, 0.5
        %v5720 = vmul.f32 %v5590, 0.5
        %v5721 = vmul.f32 %v5702, 0.5
        %v5722 = vmul.f32 %v5593, 0.5
        %v5723 = vmul.f32 %v5705, 0.5
        %v5724 = vmul.f32 %v5595, 0.5
        %v5725 = vmul.f32 %v5707, 0.5
        %v5726 = vmul.f32 %v5598, 0.5
        %v5727 = vmul.f32 %v5710, 0.5
        %v5728 = vmul.f32 %v5600, 0.5
        %v5729 = vmul.f32 %v5712, 0.5
        %v5730 = vmul.f32 %v5603, 0.5
        %v5731 = vmul.f32 %v5715, 0.5
        %v5732 = vtanh.pop %v5718
        %v5733 = vtanh.pop %v5719
        %v5734 = vtanh.pop %v5720
        %v5735 = vtanh.pop %v5721
        %v5736 = vtanh.pop %v5722
        %v5737 = vtanh.pop %v5723
        %v5738 = vtanh.pop %v5724
        %v5739 = vtanh.pop %v5725
        %v5740 = vtanh.pop %v5726
        %v5741 = vtanh.pop %v5727
        %v5742 = vtanh.pop %v5728
        %v5743 = vtanh.pop %v5729
        %v5744 = vtanh.pop %v5730
        %v5745 = vtanh.pop %v5731
        %v5746 = vmul.f32 %v5732, 0.5
        %v5747 = vmul.f32 %v5733, 0.5
        %v5748 = vmul.f32 %v5734, 0.5
        %v5749 = vmul.f32 %v5735, 0.5
        %v5750 = vmul.f32 %v5736, 0.5
        %v5751 = vmul.f32 %v5737, 0.5
        %v5752 = vmul.f32 %v5738, 0.5
        %v5753 = vmul.f32 %v5739, 0.5
        %v5754 = vmul.f32 %v5740, 0.5
        %v5755 = vmul.f32 %v5741, 0.5
        %v5756 = vmul.f32 %v5742, 0.5
        %v5757 = vmul.f32 %v5743, 0.5
        %v5758 = vmul.f32 %v5744, 0.5
        %v5759 = vmul.f32 %v5745, 0.5
        %v5760 = vadd.f32 %v5746, 0.5
        %v5761 = vadd.f32 %v5747, 0.5
        %v5762 = vadd.f32 %v5748, 0.5
        %v5763 = vadd.f32 %v5749, 0.5
        %v5764 = vadd.f32 %v5750, 0.5
        %v5765 = vadd.f32 %v5751, 0.5
        %v5766 = vadd.f32 %v5752, 0.5
        %v5767 = vadd.f32 %v5753, 0.5
        %v5768 = vadd.f32 %v5754, 0.5
        %v5769 = vadd.f32 %v5755, 0.5
        %v5770 = vadd.f32 %v5756, 0.5
        %v5771 = vadd.f32 %v5757, 0.5
        %v5772 = vadd.f32 %v5758, 0.5
        %v5773 = vadd.f32 %v5759, 0.5
        %v5774 = vpack.c.bf16 %v5762, %v5760
        %v5775 = vpack.c.bf16 %v5763, %v5761
        %v5776 = vpack.c.bf16 %v5766, %v5764
        %v5777 = vpack.c.bf16 %v5767, %v5765
        %v5778 = vpack.c.bf16 %v5770, %v5768
        %v5779 = vpack.c.bf16 %v5771, %v5769
        %v5780 = vpack.c.bf16 %v5772, %v5772
        %v5781 = vpack.c.bf16 %v5773, %v5773
        %v5782 = vld [vmem:[#allocation13] sm:$0xf]
        %v5783 = vld [vmem:[#allocation13 + $0x4] sm:$0xf]
        %v5784 = vld [vmem:[#allocation13 + $0x8] sm:$0xf]
        %v5785 = vld [vmem:[#allocation13 + $0xc] sm:$0xf]
        %v5786 = vld [vmem:[#allocation13 + $0x10] sm:$0xf]
        %v5787 = vld [vmem:[#allocation13 + $0x14] sm:$0xf]
        %v5788 = vld [vmem:[#allocation13 + $0x18] sm:$0xf]
        %v5789 = vld [vmem:[#allocation13 + $0x1c] sm:$0xf]
        %v5790 = vld [vmem:[#allocation13 + $0x20] sm:$0xf]
        %v5791 = vld [vmem:[#allocation13 + $0x24] sm:$0xf]
        %v5792 = vld [vmem:[#allocation13 + $0x28] sm:$0xf]
        %v5793 = vld [vmem:[#allocation13 + $0x2c] sm:$0xf]
        %v5794 = vld [vmem:[#allocation13 + $0x30] sm:$0xf]
        %v5795 = vld [vmem:[#allocation13 + $0x34] sm:$0xf]
        %v5796 = vld [vmem:[#allocation13 + $0x38] sm:$0xf]
        %v5797 = vld [vmem:[#allocation13 + $0x3c] sm:$0xf]
        %v5798 = vld [vmem:[#allocation13 + $0x40] sm:$0xf]
        %v5799 = vld [vmem:[#allocation13 + $0x44] sm:$0xf]
        %v5800 = vld [vmem:[#allocation13 + $0x48] sm:$0xf]
        %v5801 = vld [vmem:[#allocation13 + $0x4c] sm:$0xf]
        %v5802 = vld [vmem:[#allocation13 + $0x50] sm:$0xf]
        %v5803 = vld [vmem:[#allocation13 + $0x54] sm:$0xf]
        %v5804 = vld [vmem:[#allocation13 + $0x58] sm:$0xf]
        %v5805 = vld [vmem:[#allocation13 + $0x5c] sm:$0xf]
        %v5806 = vld [vmem:[#allocation13 + $0x60] sm:$0xf]
        %v5807 = vld [vmem:[#allocation13 + $0x64] sm:$0xf]
        %v5808 = vld [vmem:[#allocation13 + $0x68] sm:$0xf]
        %v5809 = vld [vmem:[#allocation13 + $0x6c] sm:$0xf]
        %v5810 = vld [vmem:[#allocation13 + $0x70] sm:$0xf]
        %v5811 = vld [vmem:[#allocation13 + $0x74] sm:$0xf]
        %v5812 = vld [vmem:[#allocation13 + $0x78] sm:$0xf]
        %v5813 = vld [vmem:[#allocation13 + $0x7c] sm:$0xf]
        %v5814 = vld [vmem:[%s8] sm:$0x1]
        %v5816 = vperm.slane %v5814, 0
        %v5850 = vunpack.c.l.b16 %v5782
        %v5851 = vunpack.c.l.b16 %v5783
        %v5852 = vunpack.c.l.b16 %v5784
        %v5853 = vunpack.c.l.b16 %v5785
        %v5854 = vunpack.c.l.b16 %v5786
        %v5855 = vunpack.c.l.b16 %v5787
        %v5856 = vunpack.c.l.b16 %v5788
        %v5857 = vunpack.c.l.b16 %v5789
        %v5858 = vunpack.c.l.b16 %v5790
        %v5859 = vunpack.c.l.b16 %v5791
        %v5860 = vunpack.c.l.b16 %v5792
        %v5861 = vunpack.c.l.b16 %v5793
        %v5862 = vunpack.c.l.b16 %v5794
        %v5863 = vunpack.c.l.b16 %v5795
        %v5864 = vunpack.c.l.b16 %v5796
        %v5865 = vunpack.c.l.b16 %v5797
        %v5866 = vunpack.c.l.b16 %v5798
        %v5867 = vunpack.c.l.b16 %v5799
        %v5868 = vunpack.c.l.b16 %v5800
        %v5869 = vunpack.c.l.b16 %v5801
        %v5870 = vunpack.c.l.b16 %v5802
        %v5871 = vunpack.c.l.b16 %v5803
        %v5872 = vunpack.c.l.b16 %v5804
        %v5873 = vunpack.c.l.b16 %v5805
        %v5874 = vunpack.c.l.b16 %v5806
        %v5875 = vunpack.c.l.b16 %v5807
        %v5876 = vunpack.c.l.b16 %v5808
        %v5877 = vunpack.c.l.b16 %v5809
        %v5878 = vunpack.c.l.b16 %v5810
        %v5879 = vunpack.c.l.b16 %v5811
        %v5880 = vunpack.c.l.b16 %v5812
        %v5881 = vunpack.c.l.b16 %v5813
        %v5882 = vpack.c.b16 %v5851, %v5850
        %v5883 = vpack.c.b16 %v5853, %v5852
        %v5884 = vpack.c.b16 %v5855, %v5854
        %v5885 = vpack.c.b16 %v5857, %v5856
        %v5886 = vpack.c.b16 %v5859, %v5858
        %v5887 = vpack.c.b16 %v5861, %v5860
        %v5888 = vpack.c.b16 %v5863, %v5862
        %v5889 = vpack.c.b16 %v5865, %v5864
        %v5890 = vpack.c.b16 %v5867, %v5866
        %v5891 = vpack.c.b16 %v5869, %v5868
        %v5892 = vpack.c.b16 %v5871, %v5870
        %v5893 = vpack.c.b16 %v5873, %v5872
        %v5894 = vpack.c.b16 %v5875, %v5874
        %v5895 = vpack.c.b16 %v5877, %v5876
        %v5896 = vpack.c.b16 %v5879, %v5878
        %v5897 = vpack.c.b16 %v5881, %v5880
        %5914 = vmatpush.bf16.msra.mxu0 %v5889
        %5915 = vmatpush.bf16.msra.mxu0 %v5888
        %5916 = vmatpush.bf16.msra.mxu0 %v5887
        %5917 = vmatpush.bf16.msra.mxu0 %v5886
        %5918 = vmatpush.bf16.msra.mxu0 %v5885
        %5919 = vmatpush.bf16.msra.mxu0 %v5884
        %5920 = vmatpush.bf16.msra.mxu0 %v5883
        %5921 = vmatpush.bf16.msra.mxu0 %v5882
        %5922 = vmatmul.bf16.gmra.mxu0 %v5774
        %v5923 = vpop.f32.mrf.mxu0
        %v5924 = vadd.f32 %v5816, %v5923
        %v5925 = vpop.f32.mrf.mxu0
        %v5926 = vadd.f32 %v5816, %v5925
        %5927 = vmatmul.bf16.gmra.mxu0 %v5776
        %v5928 = vpop.f32.mrf.mxu0
        %v5929 = vadd.f32 %v5816, %v5928
        %v5930 = vpop.f32.mrf.mxu0
        %v5931 = vadd.f32 %v5816, %v5930
        %5932 = vmatmul.bf16.gmra.mxu0 %v5778
        %v5933 = vpop.f32.mrf.mxu0
        %v5934 = vadd.f32 %v5816, %v5933
        %v5935 = vpop.f32.mrf.mxu0
        %v5936 = vadd.f32 %v5816, %v5935
        %5937 = vmatmul.bf16.gmra.mxu0 %v5780
        %v5938 = vpop.f32.mrf.mxu0
        %v5939 = vadd.f32 %v5816, %v5938
        %v5940 = vpop.f32.mrf.mxu0
        %5941 = vdwg.mxu0
        %5942 = vmatpush.bf16.msra.mxu0 %v5897
        %5943 = vmatpush.bf16.msra.mxu0 %v5896
        %5944 = vmatpush.bf16.msra.mxu0 %v5895
        %5945 = vmatpush.bf16.msra.mxu0 %v5894
        %5946 = vmatpush.bf16.msra.mxu0 %v5893
        %5947 = vmatpush.bf16.msra.mxu0 %v5892
        %5948 = vmatpush.bf16.msra.mxu0 %v5891
        %5949 = vmatpush.bf16.msra.mxu0 %v5890
        %5950 = vmatmul.bf16.gmra.mxu0 %v5775
        %v5951 = vpop.f32.mrf.mxu0
        %v5952 = vadd.f32 %v5924, %v5951
        %v5953 = vpop.f32.mrf.mxu0
        %v5954 = vadd.f32 %v5926, %v5953
        %5955 = vmatmul.bf16.gmra.mxu0 %v5777
        %v5956 = vpop.f32.mrf.mxu0
        %v5957 = vadd.f32 %v5929, %v5956
        %v5958 = vpop.f32.mrf.mxu0
        %v5959 = vadd.f32 %v5931, %v5958
        %5960 = vmatmul.bf16.gmra.mxu0 %v5779
        %v5961 = vpop.f32.mrf.mxu0
        %v5962 = vadd.f32 %v5934, %v5961
        %v5963 = vpop.f32.mrf.mxu0
        %v5964 = vadd.f32 %v5936, %v5963
        %5965 = vmatmul.bf16.gmra.mxu0 %v5781
        %v5966 = vpop.f32.mrf.mxu0
        %v5967 = vadd.f32 %v5939, %v5966
        %v5968 = vpop.f32.mrf.mxu0
        %5969 = vdwg.mxu0
        %5970 = vst [vmem:[%s456] sm:$0xff] %v5952
        %5971 = vst [vmem:[%s456 + $0x8] sm:$0xff] %v5954
        %5972 = vst [vmem:[%s456 + $0x10] sm:$0xff] %v5957
        %5973 = vst [vmem:[%s456 + $0x18] sm:$0xff] %v5959
        %5974 = vst [vmem:[%s456 + $0x20] sm:$0xff] %v5962
        %5975 = vst [vmem:[%s456 + $0x28] sm:$0xff] %v5964
        %5976 = vst [vmem:[%s456 + $0x30] sm:$0xff] %v5967
        %s5977 = sand.u32 %s231, 1
        %s5978 = scalar_lea.sflag [#allocation4], %s5977
        %s5979 = sand.u32 %s231, 1
        %s5980 = smul.addr %s5979, 56
        %s5981 = scalar_lea.vmem [#allocation14], %s5980
        // Predicated region
        $region85: #{tpu_custom_call.1} parent=55 // pred_check
          %p5982 = pneg %p241
        $region86: #{tpu_custom_call.1} parent=55 // pred_check_branch
          %5984 = sbr.rel (%p5982) target = $region88
        $region87: #{tpu_custom_call.1} parent=55 // pred_region
          %s5985 = smul.u32 7, %s29
          %s5986 = ssub.s32 13, %s5985
          %p5987 = scmp.lt.s32.totalorder %s5986, 7
          %s5988 = scalar_select %p5987, %s5986, 7
          %s5989 = smul.u32 8, %s5988
          %s5990 = ssub.s32 56, %s5989
          %s5991 = sshll.u32 %s5990, 4
          %5992 = vsyncadd %s5978, %s5991
          %p5993 = scmp.ne.s32.totalorder 0, %s5989
          %s5994 = smul.addr %s5985, 8
          %s5995 = scalar_lea.hbm %s9, %s5994
          %s5996 = smul.u32 8, %s5988
          %s5997 = sshll.u32 %s5981, 4
          %s5998 = int_to_ptr.vmem [resolvable:$true] %s5997
          %s5999 = sshll.u32 %s5995, 4
          %s6000 = int_to_ptr.hbm [resolvable:$true] %s5999
          %s6001 = sshll.u32 %s5996, 4
          %6005 = dma.vmem_to_hbm [thread:$0]  (%p5993), %s5998, %s6001, %s6000, %s5978, 128, 128, 8
        $region88: #{tpu_custom_call.1} parent=55 // pred_fallthru
          _
      $region56: #{tpu_custom_call.1} parent=5 // pred_fallthru
        _
      %p6006 = scmp.le.s32.totalorder 2, %s24
      // Predicated region
      $region89: #{tpu_custom_call.1} parent=5 // pred_check
        %p6007 = pneg %p6006
      $region90: #{tpu_custom_call.1} parent=5 // pred_check_branch
        %6009 = sbr.rel (%p6007) target = $region92
      $region91: #{tpu_custom_call.1} parent=5 // pred_region
        %s6010 = ssub.s32 %s24, 2
        // Predicated region
        $region93: #{tpu_custom_call.1} parent=91 // pred_check
          %p6011 = pneg %p247
        $region94: #{tpu_custom_call.1} parent=91 // pred_check_branch
          %6013 = sbr.rel (%p6011) target = $region96
        $region95: #{tpu_custom_call.1} parent=91 // pred_region
          %s6014 = sand.u32 %s232, 1
          %s6015 = scalar_lea.sflag [#allocation4], %s6014
          %s6016 = sand.u32 %s232, 1
          %s6017 = smul.addr %s6016, 56
          %s6018 = scalar_lea.vmem [#allocation14], %s6017
          %6020 = dma.done %s6015, 896
        $region96: #{tpu_custom_call.1} parent=91 // pred_fallthru
          _
      $region92: #{tpu_custom_call.1} parent=5 // pred_fallthru
        _
    $region6: #{tpu_custom_call.1} parent=1 // loop_footer
      %s28 = sadd.s32 1, %s24
    $region7: #{tpu_custom_call.1} parent=1 // loop_footer_branch
      %23 = sbr.rel target = $region3
    $region8: #{tpu_custom_call.1} parent=1 // loop_exit
      _
    %6021 = vsyncpa [#allocation3], 1
    %s6022 = scalar_lea.sflag [#allocation3], 1
    %6023 = vsyncpa %s6022, 1
    %6024 = vsyncpa [#allocation6], 1
    %6025 = vsyncpa [#allocation9], 1
    %6026 = vsyncpa [#allocation12], 1
    %6027 = vsyncpa [#allocation4], 1
    %s6028 = scalar_lea.sflag [#allocation4], 1
    %6029 = vsyncpa %s6028, 1

</llo_original>
